<compile_context>
chip_gen: v5e
topology: v5e:2x2
jax: 0.10.0
libtpu: 0.0.40
codegen_flags: <defaults>
</compile_context>

<pallas_src>
import functools

import jax
import jax.numpy as jnp
import numpy as np
from jax import lax
from jax.experimental import pallas as pl
from jax.experimental.pallas import tpu as pltpu


def _mpn_group_kernel(bond_blk_ref, atom_blk_ref,        # scalar-prefetch refs (used by the index_maps)
                      f_atoms_ref, f_bonds_ref, a_ref, s_ref, pool_ref,
                      wi_ref, wh_ref, woa_ref, wom_ref, bo_ref,
                      out_ref, *, depth):
    """Full MPNEncoder forward (bond messages, eval mode) for one molecule group."""
    del bond_blk_ref, atom_blk_ref
    f32 = jnp.float32
    HI = lax.Precision.HIGHEST

    f_atoms = f_atoms_ref[...]            # (TA, atom_fdim_pad)
    f_bonds = f_bonds_ref[...]            # (TB, bond_fdim_pad)
    A = a_ref[0]                          # (TA, TB) bf16: incoming-bond incidence == index_select_ND(.,a2b).sum(1)
    S = s_ref[0]                          # (TB, TA) bf16: one-hot(b2a)            == a_message[b2a]
    pool = pool_ref[0]                    # (M,  TA) f32 : 1/a_size over each molecule's a_scope
    tb, h = f_bonds.shape[0], wh_ref.shape[0]

    # input = W_i(f_bonds); message = act(input)      (args.bias=False -> no b_i / b_h)
    inp = jnp.dot(f_bonds, wi_ref[...], precision=HI, preferred_element_type=f32)
    message = jnp.maximum(inp, 0.0)

    # b2revb == b ^ 1 (reverse bonds are adjacent pairs): rev_message is an even/odd sublane swap.
    is_even = (lax.broadcasted_iota(jnp.int32, (tb, h), 0) & 1) == 0

    def rev_swap(m):                      # m[b ^ 1] via two XLU rolls + one select; no REV matmul
        up = pltpu.roll(m, shift=tb - 1, axis=0)     # up[b] = m[(b + 1) % tb]
        dn = pltpu.roll(m, shift=1, axis=0)          # dn[b] = m[(b - 1) % tb]
        return jnp.where(is_even, up, dn)

    # (depth - 1) directed message-passing steps; F.dropout is identity in eval mode.
    # TODO(synk): switch to lax.fori_loop if depth grows beyond ~4 (keeps vreg live ranges bounded).
    for _ in range(depth - 1):
        a_msg = jnp.dot(A, message.astype(jnp.bfloat16), preferred_element_type=f32)    # sum incoming msgs
        gathered = jnp.dot(S, a_msg.astype(jnp.bfloat16), preferred_element_type=f32)   # a_message[b2a]
        msg = gathered - rev_swap(message)                                              # - rev_message (exact f32)
        msg = jnp.dot(msg, wh_ref[...], precision=HI, preferred_element_type=f32)
        message = jnp.maximum(inp + msg, 0.0)

    # readout: a_input = cat([f_atoms, sum incoming msgs]); atom_hiddens = act(W_o(a_input))
    a_msg = jnp.dot(A, message.astype(jnp.bfloat16), preferred_element_type=f32)
    atom_h = (jnp.dot(f_atoms, woa_ref[...], precision=HI, preferred_element_type=f32)
              + jnp.dot(a_msg, wom_ref[...], precision=HI, preferred_element_type=f32)
              + bo_ref[...])
    atom_h = jnp.maximum(atom_h, 0.0)

    # per-molecule mean over a_scope; an all-zero pool row reproduces cached_zero_vector (empty molecule).
    out_ref[0] = jnp.dot(pool, atom_h, precision=HI, preferred_element_type=f32)


def mpn_forward(grp_bond_blk, grp_atom_blk, f_atoms, f_bonds, A, S, pool, params, *, depth):
    G, m_per_group, ta = pool.shape
    tb = S.shape[1]
    afdim, bfdim = f_atoms.shape[1], f_bonds.shape[1]
    hidden = params["W_h"].shape[0]
    assert tb % 2 == 0 and ta % 8 == 0 and tb % 8 == 0
    assert afdim % 128 == 0 and bfdim % 128 == 0 and hidden % 128 == 0

    # index_maps receive (grid index, *scalar-prefetch refs); group offsets support ragged placement.
    def atoms_map(g, bond_blk, atom_blk): return (atom_blk[g], 0)
    def bonds_map(g, bond_blk, atom_blk): return (bond_blk[g], 0)
    def group_map(g, bond_blk, atom_blk): return (g, 0, 0)
    def weight_map(g, bond_blk, atom_blk): return (0, 0)

    grid_spec = pltpu.PrefetchScalarGridSpec(
        num_scalar_prefetch=2,
        grid=(G,),
        in_specs=[
            pl.BlockSpec((ta, afdim), atoms_map),            # f_atoms rows of this group
            pl.BlockSpec((tb, bfdim), bonds_map),            # f_bonds rows of this group
            pl.BlockSpec((1, ta, tb), group_map),            # A  (bf16 incidence)
            pl.BlockSpec((1, tb, ta), group_map),            # S  (bf16 one-hot b2a)
            pl.BlockSpec((1, m_per_group, ta), group_map),   # pool (f32 mean over a_scope)
            pl.BlockSpec((bfdim, hidden), weight_map),       # W_i      (constant block -> VMEM-resident)
            pl.BlockSpec((hidden, hidden), weight_map),      # W_h
            pl.BlockSpec((afdim, hidden), weight_map),       # W_o[:atom_fdim]
            pl.BlockSpec((hidden, hidden), weight_map),      # W_o[atom_fdim:]
            pl.BlockSpec((1, hidden), weight_map),           # b_o
        ],
        out_specs=pl.BlockSpec((1, m_per_group, hidden), group_map),
    )
    return pl.pallas_call(
        functools.partial(_mpn_group_kernel, depth=depth),
        out_shape=jax.ShapeDtypeStruct((G, m_per_group, hidden), jnp.float32),
        grid_spec=grid_spec,
        compiler_params=pltpu.CompilerParams(
            dimension_semantics=("parallel",),               # independent molecule groups -> both v7x TCs
            vmem_limit_bytes=32 * 1024 * 1024,               # explicit scoped VMEM (v5e default is only 16 MiB)
        ),
    )(grp_bond_blk, grp_atom_blk, f_atoms, f_bonds, A, S, pool,
      params["W_i"], params["W_h"], params["W_o_atom"], params["W_o_msg"], params["b_o"])


def mpn_reference(f_atoms, f_bonds, a2b, b2a, b2revb, a_scope, params, depth):
    """Pure-JAX transcription of MPNEncoder.forward (torch index_select semantics, exact f32)."""
    HI = lax.Precision.HIGHEST
    hidden = params["W_h"].shape[0]
    inp = jnp.dot(f_bonds, params["W_i"], precision=HI)          # bias=False
    message = jnp.maximum(inp, 0.0)
    for _ in range(depth - 1):
        nei_a_message = message[a2b]                             # index_select_ND(message, a2b)
        a_message = nei_a_message.sum(axis=1)
        rev_message = message[b2revb]
        message = a_message[b2a] - rev_message
        message = jnp.dot(message, params["W_h"], precision=HI)
        message = jnp.maximum(inp + message, 0.0)
    nei_a_message = message[a2b]
    a_message = nei_a_message.sum(axis=1)
    # W_o(cat([f_atoms, a_message])) == f_atoms @ W_o[:atom_fdim] + a_message @ W_o[atom_fdim:] + b_o
    atom_hiddens = jnp.maximum(
        jnp.dot(f_atoms, params["W_o_atom"], precision=HI)
        + jnp.dot(a_message, params["W_o_msg"], precision=HI)
        + params["b_o"], 0.0)
    mol_vecs = []
    for a_start, a_size in a_scope:
        if a_size == 0:
            mol_vecs.append(jnp.zeros((hidden,), jnp.float32))   # cached_zero_vector
        else:
            mol_vecs.append(atom_hiddens[a_start:a_start + a_size].sum(axis=0) / a_size)
    return jnp.stack(mol_vecs, axis=0)


if __name__ == "__main__":
    # Config mirrored from the module defaults (chemprop-style).
    ATOM_FDIM, BOND_FDIM = 133, 147          # bond_fdim = 14 + atom_fdim when atom_messages=False
    FDIM_PAD = 256                           # feature dims zero-padded to a multiple of 128
    HIDDEN, DEPTH = 128, 3

    # --- tiny deterministic BatchMolGraph-equivalent: two ring molecules ------------------------
    # TODO(synk): mol2graph / SMILES featurization is host-side preprocessing; graph arrays are built
    # directly here, with bonds laid out so b2revb == b XOR 1 (reverse pairs adjacent).
    mol_sizes = [7, 8]
    n_mols = len(mol_sizes)
    TA, TB, M_PER_GROUP = 8, 16, 1           # per-group tile sizes: atoms / directed bonds / molecules
    G = n_mols // M_PER_GROUP
    n_atoms, n_bonds = G * TA, G * TB

    a2b_lists = [[] for _ in range(n_atoms)]
    b2a = np.zeros((n_bonds,), np.int32)
    b2revb = np.arange(n_bonds, dtype=np.int32) ^ 1
    real_atom = np.zeros((n_atoms,), np.float32)
    real_bond = np.zeros((n_bonds,), np.float32)
    a_scope = []
    for g, size in enumerate(mol_sizes):
        assert size <= TA and 2 * size <= TB
        a0, b0 = g * TA, g * TB
        a_scope.append((a0, size))
        real_atom[a0:a0 + size] = 1.0
        for e in range(size):                                   # ring molecule: edge e = (e, e+1 mod size)
            u, v = a0 + e, a0 + (e + 1) % size
            b_uv, b_vu = b0 + 2 * e, b0 + 2 * e + 1             # reverse pair at (2e, 2e+1)
            b2a[b_uv], b2a[b_vu] = u, v
            a2b_lists[v].append(b_uv)                           # u->v is incoming to v
            a2b_lists[u].append(b_vu)                           # v->u is incoming to u
            real_bond[b_uv] = real_bond[b_vu] = 1.0
        for pb in range(2 * size, TB):                          # pad bonds: source = a pad atom of this
            b2a[b0 + pb] = a0 + size                            # group -> their message stays 0 forever

    pad_bonds = np.where(real_bond == 0)[0]
    zero_bond = int(pad_bonds[0])                               # guaranteed-zero-message bond for a2b padding
    max_nb = max(len(l) for l in a2b_lists)
    a2b = np.full((n_atoms, max_nb), zero_bond, np.int32)
    for a, lst in enumerate(a2b_lists):
        a2b[a, :len(lst)] = lst

    # Per-group structural blocks (every torch gather/scatter -> small dense MXU matmul).
    A = np.zeros((G, TA, TB), np.float32)                       # incoming-bond incidence
    S = np.zeros((G, TB, TA), np.float32)                       # one-hot(b2a)
    POOL = np.zeros((G, M_PER_GROUP, TA), np.float32)           # 1/a_size over each molecule's scope
    for g in range(G):
        a0, b0 = g * TA, g * TB
        for a_loc in range(TA):
            for b in a2b_lists[a0 + a_loc]:
                A[g, a_loc, b - b0] += 1.0
        for b_loc in range(TB):
            S[g, b_loc, b2a[b0 + b_loc] - a0] = 1.0
        for m in range(M_PER_GROUP):
            a_start, a_size = a_scope[g * M_PER_GROUP + m]
            if a_size > 0:
                POOL[g, m, a_start - a0:a_start - a0 + a_size] = 1.0 / a_size

    grp_bond_blk = np.arange(G, dtype=np.int32)                 # group -> bond row-block in the packed table
    grp_atom_blk = np.arange(G, dtype=np.int32)                 # group -> atom row-block

    key = jax.random.PRNGKey(0)
    k_fa, k_fb, k_wi, k_wh, k_wo, k_bo = jax.random.split(key, 6)
    f_atoms = jnp.zeros((n_atoms, FDIM_PAD), jnp.float32)
    f_atoms = f_atoms.at[:, :ATOM_FDIM].set(jax.random.normal(k_fa, (n_atoms, ATOM_FDIM), jnp.float32))
    f_atoms = f_atoms * jnp.asarray(real_atom)[:, None]         # zero the padding atoms
    f_bonds = jnp.zeros((n_bonds, FDIM_PAD), jnp.float32)
    f_bonds = f_bonds.at[:, :BOND_FDIM].set(jax.random.normal(k_fb, (n_bonds, BOND_FDIM), jnp.float32))
    f_bonds = f_bonds * jnp.asarray(real_bond)[:, None]         # zero the padding bonds

    W_o_full = 0.1 * jax.random.normal(k_wo, (ATOM_FDIM + HIDDEN, HIDDEN), jnp.float32)
    params = {
        # args.bias=False for W_i / W_h (module default); W_o keeps its bias (nn.Linear default).
        # K dims are zero-padded to FDIM_PAD so the feature padding is mathematically inert.
        "W_i": jnp.zeros((FDIM_PAD, HIDDEN), jnp.float32).at[:BOND_FDIM].set(
            0.1 * jax.random.normal(k_wi, (BOND_FDIM, HIDDEN), jnp.float32)),
        "W_h": 0.1 * jax.random.normal(k_wh, (HIDDEN, HIDDEN), jnp.float32),
        "W_o_atom": jnp.zeros((FDIM_PAD, HIDDEN), jnp.float32).at[:ATOM_FDIM].set(W_o_full[:ATOM_FDIM]),
        "W_o_msg": W_o_full[ATOM_FDIM:],
        "b_o": 0.1 * jax.random.normal(k_bo, (1, HIDDEN), jnp.float32),
    }

    out = mpn_forward(jnp.asarray(grp_bond_blk), jnp.asarray(grp_atom_blk),
                      f_atoms, f_bonds,
                      jnp.asarray(A, jnp.bfloat16), jnp.asarray(S, jnp.bfloat16), jnp.asarray(POOL),
                      params, depth=DEPTH)
    out = jax.block_until_ready(out)
    out = np.asarray(out).reshape(G * M_PER_GROUP, HIDDEN)[:n_mols]
    assert out.shape == (n_mols, HIDDEN)

    ref = mpn_reference(f_atoms, f_bonds, jnp.asarray(a2b), jnp.asarray(b2a), jnp.asarray(b2revb),
                        a_scope, params, DEPTH)
    # Tolerance reflects the intentional single-pass bf16 MXU matmuls for the 0/1 incidence matrices
    # (review-recommended); weight matmuls and the mean-pool stay exact f32 / Precision.HIGHEST.
    np.testing.assert_allclose(out, np.asarray(ref), rtol=5e-2, atol=5e-2)

    print("KERNEL_OK")
</pallas_src>

<mosaic_0001>
module attributes {stable_mosaic.version = 11 : i64} {
  func.func @_mpn_group_kernel(%arg0: i32, %arg1: memref<2xi32, #tpu.memory_space<smem>>, %arg2: memref<2xi32, #tpu.memory_space<smem>>, %arg3: memref<8x256xf32, #tpu.memory_space<vmem>>, %arg4: memref<16x256xf32, #tpu.memory_space<vmem>>, %arg5: memref<1x8x16xbf16, #tpu.memory_space<vmem>>, %arg6: memref<1x16x8xbf16, #tpu.memory_space<vmem>>, %arg7: memref<1x1x8xf32, #tpu.memory_space<vmem>>, %arg8: memref<256x128xf32, #tpu.memory_space<vmem>>, %arg9: memref<128x128xf32, #tpu.memory_space<vmem>>, %arg10: memref<256x128xf32, #tpu.memory_space<vmem>>, %arg11: memref<128x128xf32, #tpu.memory_space<vmem>>, %arg12: memref<1x128xf32, #tpu.memory_space<vmem>>, %arg13: memref<1x1x128xf32, #tpu.memory_space<vmem>>) attributes {dimension_semantics = [#tpu.dimension_semantics<parallel>], iteration_bounds = array<i64: 2>, scalar_prefetch = 2 : i64, scratch_operands = 0 : i64, tpu.core_type = #tpu.core_type<tc>, window_params = [{transform_indices = @transform_0, window_bounds = array<i64: 8, 256>}, {transform_indices = @transform_1, window_bounds = array<i64: 16, 256>}, {transform_indices = @transform_2, window_bounds = array<i64: 1, 8, 16>}, {transform_indices = @transform_3, window_bounds = array<i64: 1, 16, 8>}, {transform_indices = @transform_4, window_bounds = array<i64: 1, 1, 8>}, {pipeline_mode = #tpu.pipeline_mode<synchronous>, transform_indices = @transform_5, window_bounds = array<i64: 256, 128>}, {pipeline_mode = #tpu.pipeline_mode<synchronous>, transform_indices = @transform_6, window_bounds = array<i64: 128, 128>}, {pipeline_mode = #tpu.pipeline_mode<synchronous>, transform_indices = @transform_7, window_bounds = array<i64: 256, 128>}, {pipeline_mode = #tpu.pipeline_mode<synchronous>, transform_indices = @transform_8, window_bounds = array<i64: 128, 128>}, {pipeline_mode = #tpu.pipeline_mode<synchronous>, transform_indices = @transform_9, window_bounds = array<i64: 1, 128>}, {transform_indices = @transform_10, window_bounds = array<i64: 1, 1, 128>}]} {
    %c0 = arith.constant 0 : index
    %c0_0 = arith.constant 0 : index
    %0 = vector.load %arg3[%c0, %c0_0] : memref<8x256xf32, #tpu.memory_space<vmem>>, vector<8x256xf32>
    %c0_1 = arith.constant 0 : index
    %c0_2 = arith.constant 0 : index
    %1 = vector.load %arg4[%c0_1, %c0_2] : memref<16x256xf32, #tpu.memory_space<vmem>>, vector<16x256xf32>
    %c0_3 = arith.constant 0 : index
    %c0_4 = arith.constant 0 : index
    %c0_5 = arith.constant 0 : index
    %2 = vector.load %arg5[%c0_3, %c0_4, %c0_5] : memref<1x8x16xbf16, #tpu.memory_space<vmem>>, vector<1x8x16xbf16>
    %3 = vector.shape_cast %2 : vector<1x8x16xbf16> to vector<8x16xbf16>
    %c0_6 = arith.constant 0 : index
    %c0_7 = arith.constant 0 : index
    %c0_8 = arith.constant 0 : index
    %4 = vector.load %arg6[%c0_6, %c0_7, %c0_8] : memref<1x16x8xbf16, #tpu.memory_space<vmem>>, vector<1x16x8xbf16>
    %5 = vector.shape_cast %4 : vector<1x16x8xbf16> to vector<16x8xbf16>
    %c0_9 = arith.constant 0 : index
    %c0_10 = arith.constant 0 : index
    %c0_11 = arith.constant 0 : index
    %6 = vector.load %arg7[%c0_9, %c0_10, %c0_11] : memref<1x1x8xf32, #tpu.memory_space<vmem>>, vector<1x1x8xf32>
    %7 = vector.shape_cast %6 : vector<1x1x8xf32> to vector<1x8xf32>
    %c0_12 = arith.constant 0 : index
    %c0_13 = arith.constant 0 : index
    %8 = vector.load %arg8[%c0_12, %c0_13] : memref<256x128xf32, #tpu.memory_space<vmem>>, vector<256x128xf32>
    %cst = arith.constant dense<0.000000e+00> : vector<16x128xf32>
    %9 = tpu.matmul %1, %8, %cst {dimension_numbers = #tpu.dot_dimension_numbers<[1], [0], [0], [1], [0, 0, 1, 1], [], []>, precision = #tpu.contract_precision<fp32>} : vector<16x256xf32>, vector<256x128xf32>, vector<16x128xf32> -> vector<16x128xf32>
    %cst_14 = arith.constant 0.000000e+00 : f32
    %10 = vector.broadcast %cst_14 : f32 to vector<16x128xf32>
    %11 = arith.maximumf %9, %10 : vector<16x128xf32>
    %12 = tpu.iota {dimensions = array<i32: 0>} : vector<16x128xi32>
    %c1_i32 = arith.constant 1 : i32
    %13 = vector.broadcast %c1_i32 : i32 to vector<16x128xi32>
    %14 = arith.andi %12, %13 : vector<16x128xi32>
    %c0_i32 = arith.constant 0 : i32
    %15 = vector.broadcast %c0_i32 : i32 to vector<16x128xi32>
    %16 = arith.cmpi eq, %14, %15 : vector<16x128xi32>
    %17 = arith.truncf %11 : vector<16x128xf32> to vector<16x128xbf16>
    %cst_15 = arith.constant dense<0.000000e+00> : vector<8x128xf32>
    %18 = tpu.matmul %3, %17, %cst_15 {dimension_numbers = #tpu.dot_dimension_numbers<[1], [0], [0], [1], [0, 0, 1, 1], [], []>} : vector<8x16xbf16>, vector<16x128xbf16>, vector<8x128xf32> -> vector<8x128xf32>
    %19 = arith.truncf %18 : vector<8x128xf32> to vector<8x128xbf16>
    %cst_16 = arith.constant dense<0.000000e+00> : vector<16x128xf32>
    %20 = tpu.matmul %5, %19, %cst_16 {dimension_numbers = #tpu.dot_dimension_numbers<[1], [0], [0], [1], [0, 0, 1, 1], [], []>} : vector<16x8xbf16>, vector<8x128xbf16>, vector<16x128xf32> -> vector<16x128xf32>
    %c15_i32 = arith.constant 15 : i32
    %21 = tpu.dynamic_rotate %11 by %c15_i32 dim 0 : vector<16x128xf32>, i32 -> vector<16x128xf32>
    %c1_i32_17 = arith.constant 1 : i32
    %22 = tpu.dynamic_rotate %11 by %c1_i32_17 dim 0 : vector<16x128xf32>, i32 -> vector<16x128xf32>
    %23 = arith.select %16, %21, %22 : vector<16x128xi1>, vector<16x128xf32>
    %24 = arith.subf %20, %23 : vector<16x128xf32>
    %c0_18 = arith.constant 0 : index
    %c0_19 = arith.constant 0 : index
    %25 = vector.load %arg9[%c0_18, %c0_19] : memref<128x128xf32, #tpu.memory_space<vmem>>, vector<128x128xf32>
    %cst_20 = arith.constant dense<0.000000e+00> : vector<16x128xf32>
    %26 = tpu.matmul %24, %25, %cst_20 {dimension_numbers = #tpu.dot_dimension_numbers<[1], [0], [0], [1], [0, 0, 1, 1], [], []>, precision = #tpu.contract_precision<fp32>} : vector<16x128xf32>, vector<128x128xf32>, vector<16x128xf32> -> vector<16x128xf32>
    %27 = arith.addf %9, %26 : vector<16x128xf32>
    %cst_21 = arith.constant 0.000000e+00 : f32
    %28 = vector.broadcast %cst_21 : f32 to vector<16x128xf32>
    %29 = arith.maximumf %27, %28 : vector<16x128xf32>
    %30 = arith.truncf %29 : vector<16x128xf32> to vector<16x128xbf16>
    %cst_22 = arith.constant dense<0.000000e+00> : vector<8x128xf32>
    %31 = tpu.matmul %3, %30, %cst_22 {dimension_numbers = #tpu.dot_dimension_numbers<[1], [0], [0], [1], [0, 0, 1, 1], [], []>} : vector<8x16xbf16>, vector<16x128xbf16>, vector<8x128xf32> -> vector<8x128xf32>
    %32 = arith.truncf %31 : vector<8x128xf32> to vector<8x128xbf16>
    %cst_23 = arith.constant dense<0.000000e+00> : vector<16x128xf32>
    %33 = tpu.matmul %5, %32, %cst_23 {dimension_numbers = #tpu.dot_dimension_numbers<[1], [0], [0], [1], [0, 0, 1, 1], [], []>} : vector<16x8xbf16>, vector<8x128xbf16>, vector<16x128xf32> -> vector<16x128xf32>
    %c15_i32_24 = arith.constant 15 : i32
    %34 = tpu.dynamic_rotate %29 by %c15_i32_24 dim 0 : vector<16x128xf32>, i32 -> vector<16x128xf32>
    %c1_i32_25 = arith.constant 1 : i32
    %35 = tpu.dynamic_rotate %29 by %c1_i32_25 dim 0 : vector<16x128xf32>, i32 -> vector<16x128xf32>
    %36 = arith.select %16, %34, %35 : vector<16x128xi1>, vector<16x128xf32>
    %37 = arith.subf %33, %36 : vector<16x128xf32>
    %c0_26 = arith.constant 0 : index
    %c0_27 = arith.constant 0 : index
    %38 = vector.load %arg9[%c0_26, %c0_27] : memref<128x128xf32, #tpu.memory_space<vmem>>, vector<128x128xf32>
    %cst_28 = arith.constant dense<0.000000e+00> : vector<16x128xf32>
    %39 = tpu.matmul %37, %38, %cst_28 {dimension_numbers = #tpu.dot_dimension_numbers<[1], [0], [0], [1], [0, 0, 1, 1], [], []>, precision = #tpu.contract_precision<fp32>} : vector<16x128xf32>, vector<128x128xf32>, vector<16x128xf32> -> vector<16x128xf32>
    %40 = arith.addf %9, %39 : vector<16x128xf32>
    %cst_29 = arith.constant 0.000000e+00 : f32
    %41 = vector.broadcast %cst_29 : f32 to vector<16x128xf32>
    %42 = arith.maximumf %40, %41 : vector<16x128xf32>
    %43 = arith.truncf %42 : vector<16x128xf32> to vector<16x128xbf16>
    %cst_30 = arith.constant dense<0.000000e+00> : vector<8x128xf32>
    %44 = tpu.matmul %3, %43, %cst_30 {dimension_numbers = #tpu.dot_dimension_numbers<[1], [0], [0], [1], [0, 0, 1, 1], [], []>} : vector<8x16xbf16>, vector<16x128xbf16>, vector<8x128xf32> -> vector<8x128xf32>
    %c0_31 = arith.constant 0 : index
    %c0_32 = arith.constant 0 : index
    %45 = vector.load %arg10[%c0_31, %c0_32] : memref<256x128xf32, #tpu.memory_space<vmem>>, vector<256x128xf32>
    %cst_33 = arith.constant dense<0.000000e+00> : vector<8x128xf32>
    %46 = tpu.matmul %0, %45, %cst_33 {dimension_numbers = #tpu.dot_dimension_numbers<[1], [0], [0], [1], [0, 0, 1, 1], [], []>, precision = #tpu.contract_precision<fp32>} : vector<8x256xf32>, vector<256x128xf32>, vector<8x128xf32> -> vector<8x128xf32>
    %c0_34 = arith.constant 0 : index
    %c0_35 = arith.constant 0 : index
    %47 = vector.load %arg11[%c0_34, %c0_35] : memref<128x128xf32, #tpu.memory_space<vmem>>, vector<128x128xf32>
    %cst_36 = arith.constant dense<0.000000e+00> : vector<8x128xf32>
    %48 = tpu.matmul %44, %47, %cst_36 {dimension_numbers = #tpu.dot_dimension_numbers<[1], [0], [0], [1], [0, 0, 1, 1], [], []>, precision = #tpu.contract_precision<fp32>} : vector<8x128xf32>, vector<128x128xf32>, vector<8x128xf32> -> vector<8x128xf32>
    %49 = arith.addf %46, %48 : vector<8x128xf32>
    %c0_37 = arith.constant 0 : index
    %c0_38 = arith.constant 0 : index
    %50 = vector.load %arg12[%c0_37, %c0_38] : memref<1x128xf32, #tpu.memory_space<vmem>>, vector<1x128xf32>
    %51 = vector.broadcast %50 : vector<1x128xf32> to vector<8x128xf32>
    %52 = arith.addf %49, %51 : vector<8x128xf32>
    %cst_39 = arith.constant 0.000000e+00 : f32
    %53 = vector.broadcast %cst_39 : f32 to vector<8x128xf32>
    %54 = arith.maximumf %52, %53 : vector<8x128xf32>
    %cst_40 = arith.constant dense<0.000000e+00> : vector<1x128xf32>
    %55 = tpu.matmul %7, %54, %cst_40 {dimension_numbers = #tpu.dot_dimension_numbers<[1], [0], [0], [1], [0, 0, 1, 1], [], []>, precision = #tpu.contract_precision<fp32>} : vector<1x8xf32>, vector<8x128xf32>, vector<1x128xf32> -> vector<1x128xf32>
    %c0_41 = arith.constant 0 : index
    %c0_42 = arith.constant 0 : index
    %c0_43 = arith.constant 0 : index
    %56 = vector.load %arg13[%c0_41, %c0_42, %c0_43] : memref<1x1x128xf32, #tpu.memory_space<vmem>>, vector<1x1x128xf32>
    %57 = vector.shape_cast %56 : vector<1x1x128xf32> to vector<1x128xf32>
    %58 = vector.shape_cast %55 : vector<1x128xf32> to vector<1x1x128xf32>
    tpu.vector_store %arg13[%c0_41, %c0_42, %c0_43], %58 {strides = array<i32>} : memref<1x1x128xf32, #tpu.memory_space<vmem>>, vector<1x1x128xf32>,
    return
  }
  func.func @transform_0(%arg0: i32, %arg1: memref<2xi32, #tpu.memory_space<smem>>, %arg2: memref<2xi32, #tpu.memory_space<smem>>) -> (i32, i32) {
    %0 = arith.index_cast %arg0 : i32 to index
    %1 = memref.load %arg2[%0] : memref<2xi32, #tpu.memory_space<smem>>
    %c0_i32 = arith.constant 0 : i32
    %c0_i32_0 = arith.constant 0 : i32
    return %1, %c0_i32 : i32, i32
  }
  func.func @transform_1(%arg0: i32, %arg1: memref<2xi32, #tpu.memory_space<smem>>, %arg2: memref<2xi32, #tpu.memory_space<smem>>) -> (i32, i32) {
    %0 = arith.index_cast %arg0 : i32 to index
    %1 = memref.load %arg1[%0] : memref<2xi32, #tpu.memory_space<smem>>
    %c0_i32 = arith.constant 0 : i32
    %c0_i32_0 = arith.constant 0 : i32
    return %1, %c0_i32 : i32, i32
  }
  func.func @transform_2(%arg0: i32, %arg1: memref<2xi32, #tpu.memory_space<smem>>, %arg2: memref<2xi32, #tpu.memory_space<smem>>) -> (i32, i32, i32) {
    %c0_i32 = arith.constant 0 : i32
    %c0_i32_0 = arith.constant 0 : i32
    %c0_i32_1 = arith.constant 0 : i32
    return %arg0, %c0_i32, %c0_i32_0 : i32, i32, i32
  }
  func.func @transform_3(%arg0: i32, %arg1: memref<2xi32, #tpu.memory_space<smem>>, %arg2: memref<2xi32, #tpu.memory_space<smem>>) -> (i32, i32, i32) {
    %c0_i32 = arith.constant 0 : i32
    %c0_i32_0 = arith.constant 0 : i32
    %c0_i32_1 = arith.constant 0 : i32
    return %arg0, %c0_i32, %c0_i32_0 : i32, i32, i32
  }
  func.func @transform_4(%arg0: i32, %arg1: memref<2xi32, #tpu.memory_space<smem>>, %arg2: memref<2xi32, #tpu.memory_space<smem>>) -> (i32, i32, i32) {
    %c0_i32 = arith.constant 0 : i32
    %c0_i32_0 = arith.constant 0 : i32
    %c0_i32_1 = arith.constant 0 : i32
    return %arg0, %c0_i32, %c0_i32_0 : i32, i32, i32
  }
  func.func @transform_5(%arg0: i32, %arg1: memref<2xi32, #tpu.memory_space<smem>>, %arg2: memref<2xi32, #tpu.memory_space<smem>>) -> (i32, i32) {
    %c0_i32 = arith.constant 0 : i32
    %c0_i32_0 = arith.constant 0 : i32
    %c0_i32_1 = arith.constant 0 : i32
    return %c0_i32, %c0_i32_0 : i32, i32
  }
  func.func @transform_6(%arg0: i32, %arg1: memref<2xi32, #tpu.memory_space<smem>>, %arg2: memref<2xi32, #tpu.memory_space<smem>>) -> (i32, i32) {
    %c0_i32 = arith.constant 0 : i32
    %c0_i32_0 = arith.constant 0 : i32
    %c0_i32_1 = arith.constant 0 : i32
    return %c0_i32, %c0_i32_0 : i32, i32
  }
  func.func @transform_7(%arg0: i32, %arg1: memref<2xi32, #tpu.memory_space<smem>>, %arg2: memref<2xi32, #tpu.memory_space<smem>>) -> (i32, i32) {
    %c0_i32 = arith.constant 0 : i32
    %c0_i32_0 = arith.constant 0 : i32
    %c0_i32_1 = arith.constant 0 : i32
    return %c0_i32, %c0_i32_0 : i32, i32
  }
  func.func @transform_8(%arg0: i32, %arg1: memref<2xi32, #tpu.memory_space<smem>>, %arg2: memref<2xi32, #tpu.memory_space<smem>>) -> (i32, i32) {
    %c0_i32 = arith.constant 0 : i32
    %c0_i32_0 = arith.constant 0 : i32
    %c0_i32_1 = arith.constant 0 : i32
    return %c0_i32, %c0_i32_0 : i32, i32
  }
  func.func @transform_9(%arg0: i32, %arg1: memref<2xi32, #tpu.memory_space<smem>>, %arg2: memref<2xi32, #tpu.memory_space<smem>>) -> (i32, i32) {
    %c0_i32 = arith.constant 0 : i32
    %c0_i32_0 = arith.constant 0 : i32
    %c0_i32_1 = arith.constant 0 : i32
    return %c0_i32, %c0_i32_0 : i32, i32
  }
  func.func @transform_10(%arg0: i32, %arg1: memref<2xi32, #tpu.memory_space<smem>>, %arg2: memref<2xi32, #tpu.memory_space<smem>>) -> (i32, i32, i32) {
    %c0_i32 = arith.constant 0 : i32
    %c0_i32_0 = arith.constant 0 : i32
    %c0_i32_1 = arith.constant 0 : i32
    return %arg0, %c0_i32, %c0_i32_0 : i32, i32, i32
  }
}

</mosaic_0001>

<llo_original>
// kernel: tpu_custom_call.1
$region0: #{tpu_custom_call.1}
  #allocation0 [shape = 'u32[]', space=smem, size = 0x4, offset = 0x4, fixed_abs, tag = 'smem constant byte address 0x4 - core index']
  #allocation1 [shape = 'u32[72,128]{1,0:T(1,128)}', space=vmem, size = 0x9000, scoped, tag = 'internal scratch']
  #allocation2 [shape = 's32[1]{0}', space=sflag, size = 0x4, scoped, tag = 'scoped memory for tpu_custom_call.1']
  #allocation3 [shape = 'u8[512]{0}', space=smem, size = 0x200, scoped, tag = 'prefetched SMEM operand 0']
  #allocation4 [shape = 'u8[512]{0}', space=smem, size = 0x200, scoped, tag = 'prefetched SMEM operand 1']
  %s0 = inlined_call_operand.vmem [shape: s32[2], index: 0, kind: input, shape index: {}]
  %s1 = inlined_call_operand.vmem [shape: s32[2], index: 1, kind: input, shape index: {}]
  %s2 = inlined_call_operand.hbm [shape: f32[16,256], index: 2, kind: input, shape index: {}]
  %s3 = inlined_call_operand.hbm [shape: f32[32,256], index: 3, kind: input, shape index: {}]
  %s4 = inlined_call_operand.vmem [shape: bf16[2,8,16], index: 4, kind: input, shape index: {}]
  %s5 = inlined_call_operand.vmem [shape: bf16[2,16,8], index: 5, kind: input, shape index: {}]
  %s6 = inlined_call_operand.vmem [shape: f32[2,1,8], index: 6, kind: input, shape index: {}]
  %s7 = inlined_call_operand.hbm [shape: f32[256,128], index: 7, kind: input, shape index: {}]
  %s8 = inlined_call_operand.hbm [shape: f32[128,128], index: 8, kind: input, shape index: {}]
  %s9 = inlined_call_operand.hbm [shape: f32[256,128], index: 9, kind: input, shape index: {}]
  %s10 = inlined_call_operand.hbm [shape: f32[128,128], index: 10, kind: input, shape index: {}]
  %s11 = inlined_call_operand.vmem [shape: f32[1,128], index: 11, kind: input, shape index: {}]
  %s12 = inlined_call_operand.hbm [shape: f32[2,1,128], index: 12, kind: output, shape index: {}]
  %s13 = sld [smem:[#allocation0]]
  $region97: #{tpu_custom_call.1} parent=0
    _
  %s15 = ssub.s32 1, %s13
  %s16 = scalar_select 0, %s15, %s13
  %s18 = sshll.u32 %s0, 4
  %s19 = int_to_ptr.vmem [resolvable:$true] %s18
  %21 = dma.vmem_to_smem %s19, 16, [#allocation3], [#allocation2]
  %s23 = sshll.u32 %s1, 4
  %s24 = int_to_ptr.vmem [resolvable:$true] %s23
  %26 = dma.vmem_to_smem %s24, 16, [#allocation4], [#allocation2]
  %28 = dma.done [#allocation2], 32
  %29 = sfence
  $region1: #{tpu_custom_call.1} parent=0
    #allocation5 [shape = 'u8[16384]{0}', space=vmem, size = 0x4000, scoped, tag = 'input window, operand 2']
    #allocation6 [shape = 's32[2]{0}', space=sflag, size = 0x8, scoped, tag = 'scoped memory for tpu_custom_call.1']
    #allocation7 [shape = 's32[2]{0}', space=sflag, size = 0x8, scoped, tag = 'scoped memory for tpu_custom_call.1']
    #allocation8 [shape = 'u8[32768]{0}', space=vmem, size = 0x8000, scoped, tag = 'input window, operand 3']
    #allocation9 [shape = 's32[2]{0}', space=sflag, size = 0x8, scoped, tag = 'scoped memory for tpu_custom_call.1']
    #allocation10 [shape = 'u8[131072]{0}', space=vmem, size = 0x20000, scoped, tag = 'input window, operand 7, single buffered']
    #allocation11 [shape = 'u8[65536]{0}', space=vmem, size = 0x10000, scoped, tag = 'input window, operand 8, single buffered']
    #allocation12 [shape = 's32[1]{0}', space=sflag, size = 0x4, scoped, tag = 'scoped memory for tpu_custom_call.1']
    #allocation13 [shape = 'u8[131072]{0}', space=vmem, size = 0x20000, scoped, tag = 'input window, operand 9, single buffered']
    #allocation14 [shape = 'u8[65536]{0}', space=vmem, size = 0x10000, scoped, tag = 'input window, operand 10, single buffered']
    #allocation15 [shape = 's32[1]{0}', space=sflag, size = 0x4, scoped, tag = 'scoped memory for tpu_custom_call.1']
    #allocation16 [shape = 'u8[1024]{0}', space=vmem, size = 0x400, scoped, tag = 'output window, operand 0']
    %30 = vsyncpa [#allocation6], 0
    %s31 = scalar_lea.sflag [#allocation6], 1
    %32 = vsyncpa %s31, 0
    %33 = vsyncpa [#allocation9], 0
    %s34 = scalar_lea.sflag [#allocation9], 1
    %35 = vsyncpa %s34, 0
    %36 = vsyncpa [#allocation12], 0
    %37 = vsyncpa [#allocation15], 0
    %38 = vsyncpa [#allocation7], 0
    %s39 = scalar_lea.sflag [#allocation7], 1
    %40 = vsyncpa %s39, 0
    loop: start=0, step=1, limit=4
    $region2: #{tpu_custom_call.1} parent=1 // loop_pre_header
      _
    $region3: #{tpu_custom_call.1} parent=1 // loop_header
      %s42 = sphi 0, %s46
      %p43 = scmp.ge.s32.totalorder %s42, 4
      %s54 = sphi 0, %s56
      %s57 = sphi 0, %s54
      %s58 = sphi 0, %s57
      %s74 = sphi 0, %s58
      %s82 = sphi 0, %s84
      %s85 = sphi 0, %s82
      %s86 = sphi 0, %s85
      %s102 = sphi 0, %s86
      %s108 = sphi 0, %s110
      %s111 = sphi 0, %s108
      %s112 = sphi 0, %s111
      %s128 = sphi 0, %s112
      %s134 = sphi 0, %s136
      %s137 = sphi 0, %s134
      %s138 = sphi 0, %s137
      %s154 = sphi 0, %s138
      %s160 = sphi 0, %s162
      %s163 = sphi 0, %s160
      %s164 = sphi 0, %s163
      %s180 = sphi 0, %s164
      %s184 = sphi 0, %s184
      %s186 = sphi 0, %s184
      %s187 = sphi 0, %s186
      %s201 = sphi 0, %s187
      %s205 = sphi 0, %s205
      %s207 = sphi 0, %s205
      %s208 = sphi 0, %s207
      %s222 = sphi 0, %s208
      %s226 = sphi 0, %s226
      %s228 = sphi 0, %s226
      %s229 = sphi 0, %s228
      %s243 = sphi 0, %s229
      %s247 = sphi 0, %s247
      %s249 = sphi 0, %s247
      %s250 = sphi 0, %s249
      %s264 = sphi 0, %s250
      %s268 = sphi 0, %s268
      %s270 = sphi 0, %s268
      %s271 = sphi 0, %s270
      %s285 = sphi 0, %s271
      %s291 = sphi 0, %s293
      %s294 = sphi 0, %s291
      %s295 = sphi 0, %s294
      %s311 = sphi 0, %s295
    $region4: #{tpu_custom_call.1} parent=1 // loop_header_branch
      %45 = sbr.rel (%p43) target = $region8
    $region5: #{tpu_custom_call.1} parent=1 // loop_body
      %s47 = ssub.s32 %s42, 1
      %s48 = ssub.s32 %s42, 2
      %s49 = sadd.s32 %s42, 1
      %s50 = sld [smem:[#allocation4 + %s42]]
      %s51 = sld [smem:[#allocation4 + %s49]]
      %s52 = ssub.s32 %s50, %s51
      %p53 = scmp.eq.s32.totalorder %s52, 0
      %s55 = sadd.s32 %s54, 1
      %s56 = scalar_select %p53, %s54, %s55
      %p59 = pneg %p53
      %p60 = scmp.eq.s32.totalorder %s42, 1
      %p61 = por %p59, %p60
      %p62 = scmp.ne.s32.totalorder %s54, %s57
      %p63 = scmp.eq.s32.totalorder %s42, 0
      %p64 = por %p62, %p63
      %p65 = scmp.ne.s32.totalorder %s54, %s57
      %p66 = scmp.eq.s32.totalorder %s47, 1
      %p67 = por %p65, %p66
      %p68 = scmp.ne.s32.totalorder %s57, %s58
      %p69 = scmp.eq.s32.totalorder %s47, 0
      %p70 = por %p68, %p69
      %p71 = scmp.ne.s32.totalorder %s57, %s58
      %p72 = scmp.eq.s32.totalorder %s48, 1
      %p73 = por %p71, %p72
      %p75 = scmp.ne.s32.totalorder %s58, %s74
      %p76 = scmp.eq.s32.totalorder %s48, 0
      %p77 = por %p75, %p76
      %s78 = sld [smem:[#allocation3 + %s42]]
      %s79 = sld [smem:[#allocation3 + %s49]]
      %s80 = ssub.s32 %s78, %s79
      %p81 = scmp.eq.s32.totalorder %s80, 0
      %s83 = sadd.s32 %s82, 1
      %s84 = scalar_select %p81, %s82, %s83
      %p87 = pneg %p81
      %p88 = scmp.eq.s32.totalorder %s42, 1
      %p89 = por %p87, %p88
      %p90 = scmp.ne.s32.totalorder %s82, %s85
      %p91 = scmp.eq.s32.totalorder %s42, 0
      %p92 = por %p90, %p91
      %p93 = scmp.ne.s32.totalorder %s82, %s85
      %p94 = scmp.eq.s32.totalorder %s47, 1
      %p95 = por %p93, %p94
      %p96 = scmp.ne.s32.totalorder %s85, %s86
      %p97 = scmp.eq.s32.totalorder %s47, 0
      %p98 = por %p96, %p97
      %p99 = scmp.ne.s32.totalorder %s85, %s86
      %p100 = scmp.eq.s32.totalorder %s48, 1
      %p101 = por %p99, %p100
      %p103 = scmp.ne.s32.totalorder %s86, %s102
      %p104 = scmp.eq.s32.totalorder %s48, 0
      %p105 = por %p103, %p104
      %s106 = ssub.s32 %s42, %s49
      %p107 = scmp.eq.s32.totalorder %s106, 0
      %s109 = sadd.s32 %s108, 1
      %s110 = scalar_select %p107, %s108, %s109
      %p113 = pneg %p107
      %p114 = scmp.eq.s32.totalorder %s42, 1
      %p115 = por %p113, %p114
      %p116 = scmp.ne.s32.totalorder %s108, %s111
      %p117 = scmp.eq.s32.totalorder %s42, 0
      %p118 = por %p116, %p117
      %p119 = scmp.ne.s32.totalorder %s108, %s111
      %p120 = scmp.eq.s32.totalorder %s47, 1
      %p121 = por %p119, %p120
      %p122 = scmp.ne.s32.totalorder %s111, %s112
      %p123 = scmp.eq.s32.totalorder %s47, 0
      %p124 = por %p122, %p123
      %p125 = scmp.ne.s32.totalorder %s111, %s112
      %p126 = scmp.eq.s32.totalorder %s48, 1
      %p127 = por %p125, %p126
      %p129 = scmp.ne.s32.totalorder %s112, %s128
      %p130 = scmp.eq.s32.totalorder %s48, 0
      %p131 = por %p129, %p130
      %s132 = ssub.s32 %s42, %s49
      %p133 = scmp.eq.s32.totalorder %s132, 0
      %s135 = sadd.s32 %s134, 1
      %s136 = scalar_select %p133, %s134, %s135
      %p139 = pneg %p133
      %p140 = scmp.eq.s32.totalorder %s42, 1
      %p141 = por %p139, %p140
      %p142 = scmp.ne.s32.totalorder %s134, %s137
      %p143 = scmp.eq.s32.totalorder %s42, 0
      %p144 = por %p142, %p143
      %p145 = scmp.ne.s32.totalorder %s134, %s137
      %p146 = scmp.eq.s32.totalorder %s47, 1
      %p147 = por %p145, %p146
      %p148 = scmp.ne.s32.totalorder %s137, %s138
      %p149 = scmp.eq.s32.totalorder %s47, 0
      %p150 = por %p148, %p149
      %p151 = scmp.ne.s32.totalorder %s137, %s138
      %p152 = scmp.eq.s32.totalorder %s48, 1
      %p153 = por %p151, %p152
      %p155 = scmp.ne.s32.totalorder %s138, %s154
      %p156 = scmp.eq.s32.totalorder %s48, 0
      %p157 = por %p155, %p156
      %s158 = ssub.s32 %s42, %s49
      %p159 = scmp.eq.s32.totalorder %s158, 0
      %s161 = sadd.s32 %s160, 1
      %s162 = scalar_select %p159, %s160, %s161
      %p165 = pneg %p159
      %p166 = scmp.eq.s32.totalorder %s42, 1
      %p167 = por %p165, %p166
      %p168 = scmp.ne.s32.totalorder %s160, %s163
      %p169 = scmp.eq.s32.totalorder %s42, 0
      %p170 = por %p168, %p169
      %p171 = scmp.ne.s32.totalorder %s160, %s163
      %p172 = scmp.eq.s32.totalorder %s47, 1
      %p173 = por %p171, %p172
      %p174 = scmp.ne.s32.totalorder %s163, %s164
      %p175 = scmp.eq.s32.totalorder %s47, 0
      %p176 = por %p174, %p175
      %p177 = scmp.ne.s32.totalorder %s163, %s164
      %p178 = scmp.eq.s32.totalorder %s48, 1
      %p179 = por %p177, %p178
      %p181 = scmp.ne.s32.totalorder %s164, %s180
      %p182 = scmp.eq.s32.totalorder %s48, 0
      %p183 = por %p181, %p182
      %s185 = sadd.s32 %s184, 1
      %p188 = scmp.eq.s32.totalorder %s42, 1
      %p189 = scmp.ne.s32.totalorder %s184, %s186
      %p190 = scmp.eq.s32.totalorder %s42, 0
      %p191 = por %p189, %p190
      %p192 = scmp.ne.s32.totalorder %s184, %s186
      %p193 = scmp.eq.s32.totalorder %s47, 1
      %p194 = por %p192, %p193
      %p195 = scmp.ne.s32.totalorder %s186, %s187
      %p196 = scmp.eq.s32.totalorder %s47, 0
      %p197 = por %p195, %p196
      %p198 = scmp.ne.s32.totalorder %s186, %s187
      %p199 = scmp.eq.s32.totalorder %s48, 1
      %p200 = por %p198, %p199
      %p202 = scmp.ne.s32.totalorder %s187, %s201
      %p203 = scmp.eq.s32.totalorder %s48, 0
      %p204 = por %p202, %p203
      %s206 = sadd.s32 %s205, 1
      %p209 = scmp.eq.s32.totalorder %s42, 1
      %p210 = scmp.ne.s32.totalorder %s205, %s207
      %p211 = scmp.eq.s32.totalorder %s42, 0
      %p212 = por %p210, %p211
      %p213 = scmp.ne.s32.totalorder %s205, %s207
      %p214 = scmp.eq.s32.totalorder %s47, 1
      %p215 = por %p213, %p214
      %p216 = scmp.ne.s32.totalorder %s207, %s208
      %p217 = scmp.eq.s32.totalorder %s47, 0
      %p218 = por %p216, %p217
      %p219 = scmp.ne.s32.totalorder %s207, %s208
      %p220 = scmp.eq.s32.totalorder %s48, 1
      %p221 = por %p219, %p220
      %p223 = scmp.ne.s32.totalorder %s208, %s222
      %p224 = scmp.eq.s32.totalorder %s48, 0
      %p225 = por %p223, %p224
      %s227 = sadd.s32 %s226, 1
      %p230 = scmp.eq.s32.totalorder %s42, 1
      %p231 = scmp.ne.s32.totalorder %s226, %s228
      %p232 = scmp.eq.s32.totalorder %s42, 0
      %p233 = por %p231, %p232
      %p234 = scmp.ne.s32.totalorder %s226, %s228
      %p235 = scmp.eq.s32.totalorder %s47, 1
      %p236 = por %p234, %p235
      %p237 = scmp.ne.s32.totalorder %s228, %s229
      %p238 = scmp.eq.s32.totalorder %s47, 0
      %p239 = por %p237, %p238
      %p240 = scmp.ne.s32.totalorder %s228, %s229
      %p241 = scmp.eq.s32.totalorder %s48, 1
      %p242 = por %p240, %p241
      %p244 = scmp.ne.s32.totalorder %s229, %s243
      %p245 = scmp.eq.s32.totalorder %s48, 0
      %p246 = por %p244, %p245
      %s248 = sadd.s32 %s247, 1
      %p251 = scmp.eq.s32.totalorder %s42, 1
      %p252 = scmp.ne.s32.totalorder %s247, %s249
      %p253 = scmp.eq.s32.totalorder %s42, 0
      %p254 = por %p252, %p253
      %p255 = scmp.ne.s32.totalorder %s247, %s249
      %p256 = scmp.eq.s32.totalorder %s47, 1
      %p257 = por %p255, %p256
      %p258 = scmp.ne.s32.totalorder %s249, %s250
      %p259 = scmp.eq.s32.totalorder %s47, 0
      %p260 = por %p258, %p259
      %p261 = scmp.ne.s32.totalorder %s249, %s250
      %p262 = scmp.eq.s32.totalorder %s48, 1
      %p263 = por %p261, %p262
      %p265 = scmp.ne.s32.totalorder %s250, %s264
      %p266 = scmp.eq.s32.totalorder %s48, 0
      %p267 = por %p265, %p266
      %s269 = sadd.s32 %s268, 1
      %p272 = scmp.eq.s32.totalorder %s42, 1
      %p273 = scmp.ne.s32.totalorder %s268, %s270
      %p274 = scmp.eq.s32.totalorder %s42, 0
      %p275 = por %p273, %p274
      %p276 = scmp.ne.s32.totalorder %s268, %s270
      %p277 = scmp.eq.s32.totalorder %s47, 1
      %p278 = por %p276, %p277
      %p279 = scmp.ne.s32.totalorder %s270, %s271
      %p280 = scmp.eq.s32.totalorder %s47, 0
      %p281 = por %p279, %p280
      %p282 = scmp.ne.s32.totalorder %s270, %s271
      %p283 = scmp.eq.s32.totalorder %s48, 1
      %p284 = por %p282, %p283
      %p286 = scmp.ne.s32.totalorder %s271, %s285
      %p287 = scmp.eq.s32.totalorder %s48, 0
      %p288 = por %p286, %p287
      %s289 = ssub.s32 %s42, %s49
      %p290 = scmp.eq.s32.totalorder %s289, 0
      %s292 = sadd.s32 %s291, 1
      %s293 = scalar_select %p290, %s291, %s292
      %p296 = pneg %p290
      %p297 = scmp.eq.s32.totalorder %s42, 1
      %p298 = por %p296, %p297
      %p299 = scmp.ne.s32.totalorder %s291, %s294
      %p300 = scmp.eq.s32.totalorder %s42, 0
      %p301 = por %p299, %p300
      %p302 = scmp.ne.s32.totalorder %s291, %s294
      %p303 = scmp.eq.s32.totalorder %s47, 1
      %p304 = por %p302, %p303
      %p305 = scmp.ne.s32.totalorder %s294, %s295
      %p306 = scmp.eq.s32.totalorder %s47, 0
      %p307 = por %p305, %p306
      %p308 = scmp.ne.s32.totalorder %s294, %s295
      %p309 = scmp.eq.s32.totalorder %s48, 1
      %p310 = por %p308, %p309
      %p312 = scmp.ne.s32.totalorder %s295, %s311
      %p313 = scmp.eq.s32.totalorder %s48, 0
      %p314 = por %p312, %p313
      %p315 = scmp.le.s32.totalorder 1, %s42
      %p316 = scmp.lt.s32.totalorder %s42, 3
      %p317 = pnand %p315, %p316
      %p318 = pneg %p317
      // Predicated region
      $region9: #{tpu_custom_call.1} parent=5 // pred_check
        _
      $region10: #{tpu_custom_call.1} parent=5 // pred_check_branch
        %320 = sbr.rel (%p317) target = $region12
      $region11: #{tpu_custom_call.1} parent=5 // pred_region
        %s321 = ssub.s32 %s42, 1
        // Predicated region
        $region13: #{tpu_custom_call.1} parent=11 // pred_check
          %p322 = pneg %p197
        $region14: #{tpu_custom_call.1} parent=11 // pred_check_branch
          %324 = sbr.rel (%p322) target = $region16
        $region15: #{tpu_custom_call.1} parent=11 // pred_region
          %326 = vsyncadd [#allocation9], 0
          %s327 = sshll.u32 %s7, 4
          %s328 = int_to_ptr.hbm [resolvable:$true] %s327
          %s329 = sshll.u32 [#allocation10], 4
          %s330 = int_to_ptr.vmem [resolvable:$true] %s329
          %335 = dma.hbm_to_vmem [thread:$0]  %s328, 4096, %s330, [#allocation9], 128, 128, 8
        $region16: #{tpu_custom_call.1} parent=11 // pred_fallthru
          _
        // Predicated region
        $region17: #{tpu_custom_call.1} parent=11 // pred_check
          %p336 = pneg %p218
        $region18: #{tpu_custom_call.1} parent=11 // pred_check_branch
          %338 = sbr.rel (%p336) target = $region20
        $region19: #{tpu_custom_call.1} parent=11 // pred_region
          %340 = vsyncadd [#allocation12], 0
          %s341 = sshll.u32 %s8, 4
          %s342 = int_to_ptr.hbm [resolvable:$true] %s341
          %s343 = sshll.u32 [#allocation11], 4
          %s344 = int_to_ptr.vmem [resolvable:$true] %s343
          %349 = dma.hbm_to_vmem [thread:$0]  %s342, 2048, %s344, [#allocation12], 128, 128, 8
        $region20: #{tpu_custom_call.1} parent=11 // pred_fallthru
          _
        // Predicated region
        $region21: #{tpu_custom_call.1} parent=11 // pred_check
          %p350 = pneg %p239
        $region22: #{tpu_custom_call.1} parent=11 // pred_check_branch
          %352 = sbr.rel (%p350) target = $region24
        $region23: #{tpu_custom_call.1} parent=11 // pred_region
          %354 = vsyncadd [#allocation12], 0
          %s355 = sshll.u32 %s9, 4
          %s356 = int_to_ptr.hbm [resolvable:$true] %s355
          %s357 = sshll.u32 [#allocation13], 4
          %s358 = int_to_ptr.vmem [resolvable:$true] %s357
          %363 = dma.hbm_to_vmem [thread:$0]  %s356, 4096, %s358, [#allocation12], 128, 128, 8
        $region24: #{tpu_custom_call.1} parent=11 // pred_fallthru
          _
        // Predicated region
        $region25: #{tpu_custom_call.1} parent=11 // pred_check
          %p364 = pneg %p260
        $region26: #{tpu_custom_call.1} parent=11 // pred_check_branch
          %366 = sbr.rel (%p364) target = $region28
        $region27: #{tpu_custom_call.1} parent=11 // pred_region
          %368 = vsyncadd [#allocation15], 0
          %s369 = sshll.u32 %s10, 4
          %s370 = int_to_ptr.hbm [resolvable:$true] %s369
          %s371 = sshll.u32 [#allocation14], 4
          %s372 = int_to_ptr.vmem [resolvable:$true] %s371
          %377 = dma.hbm_to_vmem [thread:$0]  %s370, 2048, %s372, [#allocation15], 128, 128, 8
        $region28: #{tpu_custom_call.1} parent=11 // pred_fallthru
          _
        // Predicated region
        $region29: #{tpu_custom_call.1} parent=11 // pred_check
          %p378 = pneg %p281
        $region30: #{tpu_custom_call.1} parent=11 // pred_check_branch
          %380 = sbr.rel (%p378) target = $region32
        $region31: #{tpu_custom_call.1} parent=11 // pred_region
          _
        $region32: #{tpu_custom_call.1} parent=11 // pred_fallthru
          _
      $region12: #{tpu_custom_call.1} parent=5 // pred_fallthru
        _
      %p381 = scmp.lt.s32.totalorder %s42, 2
      // Predicated region
      $region33: #{tpu_custom_call.1} parent=5 // pred_check
        %p382 = pneg %p381
      $region34: #{tpu_custom_call.1} parent=5 // pred_check_branch
        %384 = sbr.rel (%p382) target = $region36
      $region35: #{tpu_custom_call.1} parent=5 // pred_region
        // Predicated region
        $region37: #{tpu_custom_call.1} parent=35 // pred_check
          %p385 = pneg %p64
        $region38: #{tpu_custom_call.1} parent=35 // pred_check_branch
          %387 = sbr.rel (%p385) target = $region40
        $region39: #{tpu_custom_call.1} parent=35 // pred_region
          %s388 = sand.u32 %s54, 1
          %s389 = scalar_lea.sflag [#allocation6], %s388
          %s390 = sand.u32 %s54, 1
          %s391 = smul.addr %s390, 16
          %s392 = scalar_lea.vmem [#allocation5], %s391
          %s393 = sld [smem:[#allocation4 + %s42]]
          %395 = vsyncadd %s389, 0
          %s396 = smul.addr %s393, 2
          %s397 = smul.addr %s396, 8
          %s398 = scalar_lea.hbm %s2, %s397
          %s400 = sshll.u32 %s398, 4
          %s401 = int_to_ptr.hbm [resolvable:$true] %s400
          %s402 = sshll.u32 %s392, 4
          %s403 = int_to_ptr.vmem [resolvable:$true] %s402
          %405 = dma.hbm_to_vmem [thread:$0]  %s401, 256, %s403, %s389
        $region40: #{tpu_custom_call.1} parent=35 // pred_fallthru
          _
        // Predicated region
        $region41: #{tpu_custom_call.1} parent=35 // pred_check
          %p406 = pneg %p92
        $region42: #{tpu_custom_call.1} parent=35 // pred_check_branch
          %408 = sbr.rel (%p406) target = $region44
        $region43: #{tpu_custom_call.1} parent=35 // pred_region
          %s409 = sand.u32 %s42, 1
          %s410 = scalar_lea.sflag [#allocation9], %s409
          %s411 = sand.u32 %s82, 1
          %s412 = smul.addr %s411, 32
          %s413 = scalar_lea.vmem [#allocation8], %s412
          %s414 = sld [smem:[#allocation3 + %s42]]
          %s415 = smul.u32 2, %s414
          %417 = vsyncadd %s410, 0
          %s418 = smul.addr %s415, 2
          %s419 = smul.addr %s418, 8
          %s420 = scalar_lea.hbm %s3, %s419
          %s421 = sshll.u32 %s420, 4
          %s422 = int_to_ptr.hbm [resolvable:$true] %s421
          %s423 = sshll.u32 %s413, 4
          %s424 = int_to_ptr.vmem [resolvable:$true] %s423
          %429 = dma.hbm_to_vmem [thread:$0]  %s422, 512, %s424, %s410, 256, 256, 16
        $region44: #{tpu_custom_call.1} parent=35 // pred_fallthru
          _
        // Predicated region
        $region45: #{tpu_custom_call.1} parent=35 // pred_check
          %p430 = pneg %p118
        $region46: #{tpu_custom_call.1} parent=35 // pred_check_branch
          %432 = sbr.rel (%p430) target = $region48
        $region47: #{tpu_custom_call.1} parent=35 // pred_region
          %p433 = scmp.lt.s32.totalorder %s42, 1
          %s434 = scalar_select %p433, %s42, 1
          %s435 = smul.addr %s434, 4
          %s436 = scalar_lea.vmem %s4, %s435
        $region48: #{tpu_custom_call.1} parent=35 // pred_fallthru
          _
        // Predicated region
        $region49: #{tpu_custom_call.1} parent=35 // pred_check
          %p437 = pneg %p144
        $region50: #{tpu_custom_call.1} parent=35 // pred_check_branch
          %439 = sbr.rel (%p437) target = $region52
        $region51: #{tpu_custom_call.1} parent=35 // pred_region
          %p440 = scmp.lt.s32.totalorder %s42, 1
          %s441 = scalar_select %p440, %s42, 1
          %s442 = smul.addr %s441, 2
          %s443 = smul.addr %s442, 4
          %s444 = scalar_lea.vmem %s5, %s443
        $region52: #{tpu_custom_call.1} parent=35 // pred_fallthru
          _
        // Predicated region
        $region53: #{tpu_custom_call.1} parent=35 // pred_check
          %p445 = pneg %p170
        $region54: #{tpu_custom_call.1} parent=35 // pred_check_branch
          %447 = sbr.rel (%p445) target = $region56
        $region55: #{tpu_custom_call.1} parent=35 // pred_region
          %p448 = scmp.lt.s32.totalorder %s42, 1
          %s449 = scalar_select %p448, %s42, 1
          %s450 = scalar_lea.vmem %s6, %s449
        $region56: #{tpu_custom_call.1} parent=35 // pred_fallthru
          _
      $region36: #{tpu_custom_call.1} parent=5 // pred_fallthru
        _
      %p451 = scmp.le.s32.totalorder 1, %s42
      %p452 = scmp.lt.s32.totalorder %s42, 3
      %p453 = pnand %p451, %p452
      %p454 = pneg %p453
      // Predicated region
      $region57: #{tpu_custom_call.1} parent=5 // pred_check
        _
      $region58: #{tpu_custom_call.1} parent=5 // pred_check_branch
        %456 = sbr.rel (%p453) target = $region60
      $region59: #{tpu_custom_call.1} parent=5 // pred_region
        %s457 = ssub.s32 %s42, 1
        %s458 = sand.u32 %s57, 1
        %s459 = scalar_lea.sflag [#allocation6], %s458
        %s460 = sand.u32 %s57, 1
        %s461 = smul.addr %s460, 16
        %s462 = scalar_lea.vmem [#allocation5], %s461
        // Predicated region
        $region61: #{tpu_custom_call.1} parent=59 // pred_check
          %p463 = pneg %p70
        $region62: #{tpu_custom_call.1} parent=59 // pred_check_branch
          %465 = sbr.rel (%p463) target = $region64
        $region63: #{tpu_custom_call.1} parent=59 // pred_region
          %467 = dma.done %s459, 256
        $region64: #{tpu_custom_call.1} parent=59 // pred_fallthru
          _
        %s468 = sand.u32 %s47, 1
        %s469 = scalar_lea.sflag [#allocation9], %s468
        %s470 = sand.u32 %s85, 1
        %s471 = smul.addr %s470, 32
        %s472 = scalar_lea.vmem [#allocation8], %s471
        // Predicated region
        $region65: #{tpu_custom_call.1} parent=59 // pred_check
          %p473 = pneg %p98
        $region66: #{tpu_custom_call.1} parent=59 // pred_check_branch
          %475 = sbr.rel (%p473) target = $region68
        $region67: #{tpu_custom_call.1} parent=59 // pred_region
          %477 = dma.done %s469, 512
        $region68: #{tpu_custom_call.1} parent=59 // pred_fallthru
          _
        // Predicated region
        $region69: #{tpu_custom_call.1} parent=59 // pred_check
          %p478 = pneg %p197
        $region70: #{tpu_custom_call.1} parent=59 // pred_check_branch
          %480 = sbr.rel (%p478) target = $region72
        $region71: #{tpu_custom_call.1} parent=59 // pred_region
          %482 = dma.done [#allocation9], 4096
        $region72: #{tpu_custom_call.1} parent=59 // pred_fallthru
          _
        // Predicated region
        $region73: #{tpu_custom_call.1} parent=59 // pred_check
          %p483 = pneg %p218
        $region74: #{tpu_custom_call.1} parent=59 // pred_check_branch
          %485 = sbr.rel (%p483) target = $region76
        $region75: #{tpu_custom_call.1} parent=59 // pred_region
          %487 = dma.done [#allocation12], 2048
        $region76: #{tpu_custom_call.1} parent=59 // pred_fallthru
          _
        // Predicated region
        $region77: #{tpu_custom_call.1} parent=59 // pred_check
          %p488 = pneg %p239
        $region78: #{tpu_custom_call.1} parent=59 // pred_check_branch
          %490 = sbr.rel (%p488) target = $region80
        $region79: #{tpu_custom_call.1} parent=59 // pred_region
          %492 = dma.done [#allocation12], 4096
        $region80: #{tpu_custom_call.1} parent=59 // pred_fallthru
          _
        // Predicated region
        $region81: #{tpu_custom_call.1} parent=59 // pred_check
          %p493 = pneg %p260
        $region82: #{tpu_custom_call.1} parent=59 // pred_check_branch
          %495 = sbr.rel (%p493) target = $region84
        $region83: #{tpu_custom_call.1} parent=59 // pred_region
          %497 = dma.done [#allocation15], 2048
        $region84: #{tpu_custom_call.1} parent=59 // pred_fallthru
          _
        %s498 = sand.u32 %s57, 1
        %s499 = scalar_lea.sflag [#allocation6], %s498
        %s500 = sand.u32 %s57, 1
        %s501 = smul.addr %s500, 16
        %s502 = scalar_lea.vmem [#allocation5], %s501
        %p503 = pneg %p70
        %p504 = pneg %p67
        %s505 = sand.u32 %s47, 1
        %s506 = scalar_lea.sflag [#allocation9], %s505
        %s507 = sand.u32 %s85, 1
        %s508 = smul.addr %s507, 32
        %s509 = scalar_lea.vmem [#allocation8], %s508
        %p510 = pneg %p98
        %p511 = pneg %p95
        %p512 = scmp.lt.s32.totalorder %s47, 1
        %s513 = scalar_select %p512, %s47, 1
        %s514 = smul.addr %s513, 4
        %s515 = scalar_lea.vmem %s4, %s514
        %p516 = pneg %p124
        %p517 = pneg %p121
        %p518 = scmp.lt.s32.totalorder %s47, 1
        %s519 = scalar_select %p518, %s47, 1
        %s520 = smul.addr %s519, 2
        %s521 = smul.addr %s520, 4
        %s522 = scalar_lea.vmem %s5, %s521
        %p523 = pneg %p150
        %p524 = pneg %p147
        %p525 = scmp.lt.s32.totalorder %s47, 1
        %s526 = scalar_select %p525, %s47, 1
        %s527 = scalar_lea.vmem %s6, %s526
        %p528 = pneg %p176
        %p529 = pneg %p173
        %p530 = pneg %p197
        %p531 = pneg %p194
        %p532 = pneg %p218
        %p533 = pneg %p215
        %p534 = pneg %p239
        %p535 = pneg %p236
        %p536 = pneg %p260
        %p537 = pneg %p257
        %p538 = pneg %p281
        %p539 = pneg %p278
        %p540 = pneg %p307
        %p541 = pneg %p304
        %s542 = sand.u32 %s294, 1
        %s543 = scalar_lea.sflag [#allocation7], %s542
        %s544 = sand.u32 %s294, 1
        %s545 = scalar_lea.vmem [#allocation16], %s544
        %s546 = sld [smem:[#allocation4 + %s47]]
        %s547 = sld [smem:[#allocation3 + %s47]]
        %s548 = smul.u32 2, %s547
        %p549 = scmp.lt.s32.totalorder %s47, 1
        %s550 = scalar_select %p549, %s47, 1
        %s551 = smul.addr %s550, 4
        %s552 = scalar_lea.vmem %s4, %s551
        %p553 = scmp.lt.s32.totalorder %s47, 1
        %s554 = scalar_select %p553, %s47, 1
        %s555 = smul.addr %s554, 2
        %s556 = smul.addr %s555, 4
        %s557 = scalar_lea.vmem %s5, %s556
        %p558 = scmp.lt.s32.totalorder %s47, 1
        %s559 = scalar_select %p558, %s47, 1
        %s560 = scalar_lea.vmem %s6, %s559
        %v562 = vld [vmem:[%s462] sm:$0xff]
        %v563 = vld [vmem:[%s462 + $0x8] sm:$0xff]
        %v564 = vld [vmem:[%s472] sm:$0xff]
        %v565 = vld [vmem:[%s472 + $0x8] sm:$0xff]
        %v566 = vld [vmem:[%s472 + $0x10] sm:$0xff]
        %v567 = vld [vmem:[%s472 + $0x18] sm:$0xff]
        %v568 = vld [vmem:[%s552] sm:$0xf]
        %v569 = vld [vmem:[%s557] sm:$0xf]
        %v570 = vld [vmem:[%s557 + $0x4] sm:$0xf]
        %v571 = vld [vmem:[%s560] sm:$0x1]
        %v572 = vld [vmem:[#allocation10] sm:$0xff]
        %v573 = vld [vmem:[#allocation10 + $0x8] sm:$0xff]
        %v574 = vld [vmem:[#allocation10 + $0x10] sm:$0xff]
        %v575 = vld [vmem:[#allocation10 + $0x18] sm:$0xff]
        %v576 = vld [vmem:[#allocation10 + $0x20] sm:$0xff]
        %v577 = vld [vmem:[#allocation10 + $0x28] sm:$0xff]
        %v578 = vld [vmem:[#allocation10 + $0x30] sm:$0xff]
        %v579 = vld [vmem:[#allocation10 + $0x38] sm:$0xff]
        %v580 = vld [vmem:[#allocation10 + $0x40] sm:$0xff]
        %v581 = vld [vmem:[#allocation10 + $0x48] sm:$0xff]
        %v582 = vld [vmem:[#allocation10 + $0x50] sm:$0xff]
        %v583 = vld [vmem:[#allocation10 + $0x58] sm:$0xff]
        %v584 = vld [vmem:[#allocation10 + $0x60] sm:$0xff]
        %v585 = vld [vmem:[#allocation10 + $0x68] sm:$0xff]
        %v586 = vld [vmem:[#allocation10 + $0x70] sm:$0xff]
        %v587 = vld [vmem:[#allocation10 + $0x78] sm:$0xff]
        %v588 = vld [vmem:[#allocation10 + $0x80] sm:$0xff]
        %v589 = vld [vmem:[#allocation10 + $0x88] sm:$0xff]
        %v590 = vld [vmem:[#allocation10 + $0x90] sm:$0xff]
        %v591 = vld [vmem:[#allocation10 + $0x98] sm:$0xff]
        %v592 = vld [vmem:[#allocation10 + $0xa0] sm:$0xff]
        %v593 = vld [vmem:[#allocation10 + $0xa8] sm:$0xff]
        %v594 = vld [vmem:[#allocation10 + $0xb0] sm:$0xff]
        %v595 = vld [vmem:[#allocation10 + $0xb8] sm:$0xff]
        %v596 = vld [vmem:[#allocation10 + $0xc0] sm:$0xff]
        %v597 = vld [vmem:[#allocation10 + $0xc8] sm:$0xff]
        %v598 = vld [vmem:[#allocation10 + $0xd0] sm:$0xff]
        %v599 = vld [vmem:[#allocation10 + $0xd8] sm:$0xff]
        %v600 = vld [vmem:[#allocation10 + $0xe0] sm:$0xff]
        %v601 = vld [vmem:[#allocation10 + $0xe8] sm:$0xff]
        %v602 = vld [vmem:[#allocation10 + $0xf0] sm:$0xff]
        %v603 = vld [vmem:[#allocation10 + $0xf8] sm:$0xff]
        %v604 = vand.u32 %v587, 4294901760
        %605 = vmatpush.msra.mxu0 %v604
        %v606 = vand.u32 %v586, 4294901760
        %607 = vmatpush.msra.mxu0 %v606
        %v608 = vand.u32 %v585, 4294901760
        %609 = vmatpush.msra.mxu0 %v608
        %v610 = vand.u32 %v584, 4294901760
        %611 = vmatpush.msra.mxu0 %v610
        %v612 = vand.u32 %v583, 4294901760
        %613 = vmatpush.msra.mxu0 %v612
        %v614 = vand.u32 %v582, 4294901760
        %615 = vmatpush.msra.mxu0 %v614
        %v616 = vand.u32 %v581, 4294901760
        %617 = vmatpush.msra.mxu0 %v616
        %v618 = vand.u32 %v580, 4294901760
        %619 = vmatpush.msra.mxu0 %v618
        %v620 = vand.u32 %v579, 4294901760
        %621 = vmatpush.msra.mxu0 %v620
        %v622 = vand.u32 %v578, 4294901760
        %623 = vmatpush.msra.mxu0 %v622
        %v624 = vand.u32 %v577, 4294901760
        %625 = vmatpush.msra.mxu0 %v624
        %v626 = vand.u32 %v576, 4294901760
        %627 = vmatpush.msra.mxu0 %v626
        %v628 = vand.u32 %v575, 4294901760
        %629 = vmatpush.msra.mxu0 %v628
        %v630 = vand.u32 %v574, 4294901760
        %631 = vmatpush.msra.mxu0 %v630
        %v632 = vand.u32 %v573, 4294901760
        %633 = vmatpush.msra.mxu0 %v632
        %v634 = vand.u32 %v572, 4294901760
        %635 = vmatpush.msra.mxu0 %v634
        %v636 = vand.u32 %v564, 4294901760
        %v637 = vsub.f32 %v564, %v636
        %v638 = vand.u32 %v637, 4294901760
        %v639 = vsub.f32 %v637, %v638
        %v640 = vand.u32 %v639, 4294901760
        %641 = vmatmul.f32.gmra.mxu0 %v640
        %v642 = vpop.f32.mrf.mxu0
        %v643 = vadd.f32 0.0, %v642
        %v644 = vand.u32 %v566, 4294901760
        %v645 = vsub.f32 %v566, %v644
        %v646 = vand.u32 %v645, 4294901760
        %v647 = vsub.f32 %v645, %v646
        %v648 = vand.u32 %v647, 4294901760
        %649 = vmatmul.f32.gmra.mxu0 %v648
        %v650 = vpop.f32.mrf.mxu0
        %v651 = vadd.f32 0.0, %v650
        %652 = vdwg.mxu0
        %v653 = vand.u32 %v587, 4294901760
        %v654 = vsub.f32 %v587, %v653
        %v655 = vand.u32 %v654, 4294901760
        %v656 = vsub.f32 %v654, %v655
        %v657 = vand.u32 %v656, 4294901760
        %658 = vmatpush.msra.mxu0 %v657
        %v659 = vand.u32 %v586, 4294901760
        %v660 = vsub.f32 %v586, %v659
        %v661 = vand.u32 %v660, 4294901760
        %v662 = vsub.f32 %v660, %v661
        %v663 = vand.u32 %v662, 4294901760
        %664 = vmatpush.msra.mxu0 %v663
        %v665 = vand.u32 %v585, 4294901760
        %v666 = vsub.f32 %v585, %v665
        %v667 = vand.u32 %v666, 4294901760
        %v668 = vsub.f32 %v666, %v667
        %v669 = vand.u32 %v668, 4294901760
        %670 = vmatpush.msra.mxu0 %v669
        %v671 = vand.u32 %v584, 4294901760
        %v672 = vsub.f32 %v584, %v671
        %v673 = vand.u32 %v672, 4294901760
        %v674 = vsub.f32 %v672, %v673
        %v675 = vand.u32 %v674, 4294901760
        %676 = vmatpush.msra.mxu0 %v675
        %v677 = vand.u32 %v583, 4294901760
        %v678 = vsub.f32 %v583, %v677
        %v679 = vand.u32 %v678, 4294901760
        %v680 = vsub.f32 %v678, %v679
        %v681 = vand.u32 %v680, 4294901760
        %682 = vmatpush.msra.mxu0 %v681
        %v683 = vand.u32 %v582, 4294901760
        %v684 = vsub.f32 %v582, %v683
        %v685 = vand.u32 %v684, 4294901760
        %v686 = vsub.f32 %v684, %v685
        %v687 = vand.u32 %v686, 4294901760
        %688 = vmatpush.msra.mxu0 %v687
        %v689 = vand.u32 %v581, 4294901760
        %v690 = vsub.f32 %v581, %v689
        %v691 = vand.u32 %v690, 4294901760
        %v692 = vsub.f32 %v690, %v691
        %v693 = vand.u32 %v692, 4294901760
        %694 = vmatpush.msra.mxu0 %v693
        %v695 = vand.u32 %v580, 4294901760
        %v696 = vsub.f32 %v580, %v695
        %v697 = vand.u32 %v696, 4294901760
        %v698 = vsub.f32 %v696, %v697
        %v699 = vand.u32 %v698, 4294901760
        %700 = vmatpush.msra.mxu0 %v699
        %v701 = vand.u32 %v579, 4294901760
        %v702 = vsub.f32 %v579, %v701
        %v703 = vand.u32 %v702, 4294901760
        %v704 = vsub.f32 %v702, %v703
        %v705 = vand.u32 %v704, 4294901760
        %706 = vmatpush.msra.mxu0 %v705
        %v707 = vand.u32 %v578, 4294901760
        %v708 = vsub.f32 %v578, %v707
        %v709 = vand.u32 %v708, 4294901760
        %v710 = vsub.f32 %v708, %v709
        %v711 = vand.u32 %v710, 4294901760
        %712 = vmatpush.msra.mxu0 %v711
        %v713 = vand.u32 %v577, 4294901760
        %v714 = vsub.f32 %v577, %v713
        %v715 = vand.u32 %v714, 4294901760
        %v716 = vsub.f32 %v714, %v715
        %v717 = vand.u32 %v716, 4294901760
        %718 = vmatpush.msra.mxu0 %v717
        %v719 = vand.u32 %v576, 4294901760
        %v720 = vsub.f32 %v576, %v719
        %v721 = vand.u32 %v720, 4294901760
        %v722 = vsub.f32 %v720, %v721
        %v723 = vand.u32 %v722, 4294901760
        %724 = vmatpush.msra.mxu0 %v723
        %v725 = vand.u32 %v575, 4294901760
        %v726 = vsub.f32 %v575, %v725
        %v727 = vand.u32 %v726, 4294901760
        %v728 = vsub.f32 %v726, %v727
        %v729 = vand.u32 %v728, 4294901760
        %730 = vmatpush.msra.mxu0 %v729
        %v731 = vand.u32 %v574, 4294901760
        %v732 = vsub.f32 %v574, %v731
        %v733 = vand.u32 %v732, 4294901760
        %v734 = vsub.f32 %v732, %v733
        %v735 = vand.u32 %v734, 4294901760
        %736 = vmatpush.msra.mxu0 %v735
        %v737 = vand.u32 %v573, 4294901760
        %v738 = vsub.f32 %v573, %v737
        %v739 = vand.u32 %v738, 4294901760
        %v740 = vsub.f32 %v738, %v739
        %v741 = vand.u32 %v740, 4294901760
        %742 = vmatpush.msra.mxu0 %v741
        %v743 = vand.u32 %v572, 4294901760
        %v744 = vsub.f32 %v572, %v743
        %v745 = vand.u32 %v744, 4294901760
        %v746 = vsub.f32 %v744, %v745
        %v747 = vand.u32 %v746, 4294901760
        %748 = vmatpush.msra.mxu0 %v747
        %v749 = vand.u32 %v564, 4294901760
        %750 = vmatmul.f32.gmra.mxu0 %v749
        %v751 = vpop.f32.mrf.mxu0
        %v752 = vadd.f32 %v643, %v751
        %v753 = vand.u32 %v566, 4294901760
        %754 = vmatmul.f32.gmra.mxu0 %v753
        %v755 = vpop.f32.mrf.mxu0
        %v756 = vadd.f32 %v651, %v755
        %757 = vdwg.mxu0
        %v758 = vand.u32 %v587, 4294901760
        %v759 = vsub.f32 %v587, %v758
        %760 = vmatpush.msra.mxu0 %v759
        %v761 = vand.u32 %v586, 4294901760
        %v762 = vsub.f32 %v586, %v761
        %763 = vmatpush.msra.mxu0 %v762
        %v764 = vand.u32 %v585, 4294901760
        %v765 = vsub.f32 %v585, %v764
        %766 = vmatpush.msra.mxu0 %v765
        %v767 = vand.u32 %v584, 4294901760
        %v768 = vsub.f32 %v584, %v767
        %769 = vmatpush.msra.mxu0 %v768
        %v770 = vand.u32 %v583, 4294901760
        %v771 = vsub.f32 %v583, %v770
        %772 = vmatpush.msra.mxu0 %v771
        %v773 = vand.u32 %v582, 4294901760
        %v774 = vsub.f32 %v582, %v773
        %775 = vmatpush.msra.mxu0 %v774
        %v776 = vand.u32 %v581, 4294901760
        %v777 = vsub.f32 %v581, %v776
        %778 = vmatpush.msra.mxu0 %v777
        %v779 = vand.u32 %v580, 4294901760
        %v780 = vsub.f32 %v580, %v779
        %781 = vmatpush.msra.mxu0 %v780
        %v782 = vand.u32 %v579, 4294901760
        %v783 = vsub.f32 %v579, %v782
        %784 = vmatpush.msra.mxu0 %v783
        %v785 = vand.u32 %v578, 4294901760
        %v786 = vsub.f32 %v578, %v785
        %787 = vmatpush.msra.mxu0 %v786
        %v788 = vand.u32 %v577, 4294901760
        %v789 = vsub.f32 %v577, %v788
        %790 = vmatpush.msra.mxu0 %v789
        %v791 = vand.u32 %v576, 4294901760
        %v792 = vsub.f32 %v576, %v791
        %793 = vmatpush.msra.mxu0 %v792
        %v794 = vand.u32 %v575, 4294901760
        %v795 = vsub.f32 %v575, %v794
        %796 = vmatpush.msra.mxu0 %v795
        %v797 = vand.u32 %v574, 4294901760
        %v798 = vsub.f32 %v574, %v797
        %799 = vmatpush.msra.mxu0 %v798
        %v800 = vand.u32 %v573, 4294901760
        %v801 = vsub.f32 %v573, %v800
        %802 = vmatpush.msra.mxu0 %v801
        %v803 = vand.u32 %v572, 4294901760
        %v804 = vsub.f32 %v572, %v803
        %805 = vmatpush.msra.mxu0 %v804
        %v806 = vand.u32 %v564, 4294901760
        %v807 = vsub.f32 %v564, %v806
        %808 = vmatmul.f32.gmra.mxu0 %v807
        %v809 = vpop.f32.mrf.mxu0
        %v810 = vadd.f32 %v752, %v809
        %v811 = vand.u32 %v566, 4294901760
        %v812 = vsub.f32 %v566, %v811
        %813 = vmatmul.f32.gmra.mxu0 %v812
        %v814 = vpop.f32.mrf.mxu0
        %v815 = vadd.f32 %v756, %v814
        %816 = vdwg.mxu0
        %v817 = vand.u32 %v587, 4294901760
        %818 = vmatpush.msra.mxu0 %v817
        %v819 = vand.u32 %v586, 4294901760
        %820 = vmatpush.msra.mxu0 %v819
        %v821 = vand.u32 %v585, 4294901760
        %822 = vmatpush.msra.mxu0 %v821
        %v823 = vand.u32 %v584, 4294901760
        %824 = vmatpush.msra.mxu0 %v823
        %v825 = vand.u32 %v583, 4294901760
        %826 = vmatpush.msra.mxu0 %v825
        %v827 = vand.u32 %v582, 4294901760
        %828 = vmatpush.msra.mxu0 %v827
        %v829 = vand.u32 %v581, 4294901760
        %830 = vmatpush.msra.mxu0 %v829
        %v831 = vand.u32 %v580, 4294901760
        %832 = vmatpush.msra.mxu0 %v831
        %v833 = vand.u32 %v579, 4294901760
        %834 = vmatpush.msra.mxu0 %v833
        %v835 = vand.u32 %v578, 4294901760
        %836 = vmatpush.msra.mxu0 %v835
        %v837 = vand.u32 %v577, 4294901760
        %838 = vmatpush.msra.mxu0 %v837
        %v839 = vand.u32 %v576, 4294901760
        %840 = vmatpush.msra.mxu0 %v839
        %v841 = vand.u32 %v575, 4294901760
        %842 = vmatpush.msra.mxu0 %v841
        %v843 = vand.u32 %v574, 4294901760
        %844 = vmatpush.msra.mxu0 %v843
        %v845 = vand.u32 %v573, 4294901760
        %846 = vmatpush.msra.mxu0 %v845
        %v847 = vand.u32 %v572, 4294901760
        %848 = vmatpush.msra.mxu0 %v847
        %v849 = vand.u32 %v564, 4294901760
        %v850 = vsub.f32 %v564, %v849
        %v851 = vand.u32 %v850, 4294901760
        %852 = vmatmul.f32.gmra.mxu0 %v851
        %v853 = vpop.f32.mrf.mxu0
        %v854 = vadd.f32 %v810, %v853
        %v855 = vand.u32 %v566, 4294901760
        %v856 = vsub.f32 %v566, %v855
        %v857 = vand.u32 %v856, 4294901760
        %858 = vmatmul.f32.gmra.mxu0 %v857
        %v859 = vpop.f32.mrf.mxu0
        %v860 = vadd.f32 %v815, %v859
        %861 = vdwg.mxu0
        %v862 = vand.u32 %v587, 4294901760
        %v863 = vsub.f32 %v587, %v862
        %v864 = vand.u32 %v863, 4294901760
        %865 = vmatpush.msra.mxu0 %v864
        %v866 = vand.u32 %v586, 4294901760
        %v867 = vsub.f32 %v586, %v866
        %v868 = vand.u32 %v867, 4294901760
        %869 = vmatpush.msra.mxu0 %v868
        %v870 = vand.u32 %v585, 4294901760
        %v871 = vsub.f32 %v585, %v870
        %v872 = vand.u32 %v871, 4294901760
        %873 = vmatpush.msra.mxu0 %v872
        %v874 = vand.u32 %v584, 4294901760
        %v875 = vsub.f32 %v584, %v874
        %v876 = vand.u32 %v875, 4294901760
        %877 = vmatpush.msra.mxu0 %v876
        %v878 = vand.u32 %v583, 4294901760
        %v879 = vsub.f32 %v583, %v878
        %v880 = vand.u32 %v879, 4294901760
        %881 = vmatpush.msra.mxu0 %v880
        %v882 = vand.u32 %v582, 4294901760
        %v883 = vsub.f32 %v582, %v882
        %v884 = vand.u32 %v883, 4294901760
        %885 = vmatpush.msra.mxu0 %v884
        %v886 = vand.u32 %v581, 4294901760
        %v887 = vsub.f32 %v581, %v886
        %v888 = vand.u32 %v887, 4294901760
        %889 = vmatpush.msra.mxu0 %v888
        %v890 = vand.u32 %v580, 4294901760
        %v891 = vsub.f32 %v580, %v890
        %v892 = vand.u32 %v891, 4294901760
        %893 = vmatpush.msra.mxu0 %v892
        %v894 = vand.u32 %v579, 4294901760
        %v895 = vsub.f32 %v579, %v894
        %v896 = vand.u32 %v895, 4294901760
        %897 = vmatpush.msra.mxu0 %v896
        %v898 = vand.u32 %v578, 4294901760
        %v899 = vsub.f32 %v578, %v898
        %v900 = vand.u32 %v899, 4294901760
        %901 = vmatpush.msra.mxu0 %v900
        %v902 = vand.u32 %v577, 4294901760
        %v903 = vsub.f32 %v577, %v902
        %v904 = vand.u32 %v903, 4294901760
        %905 = vmatpush.msra.mxu0 %v904
        %v906 = vand.u32 %v576, 4294901760
        %v907 = vsub.f32 %v576, %v906
        %v908 = vand.u32 %v907, 4294901760
        %909 = vmatpush.msra.mxu0 %v908
        %v910 = vand.u32 %v575, 4294901760
        %v911 = vsub.f32 %v575, %v910
        %v912 = vand.u32 %v911, 4294901760
        %913 = vmatpush.msra.mxu0 %v912
        %v914 = vand.u32 %v574, 4294901760
        %v915 = vsub.f32 %v574, %v914
        %v916 = vand.u32 %v915, 4294901760
        %917 = vmatpush.msra.mxu0 %v916
        %v918 = vand.u32 %v573, 4294901760
        %v919 = vsub.f32 %v573, %v918
        %v920 = vand.u32 %v919, 4294901760
        %921 = vmatpush.msra.mxu0 %v920
        %v922 = vand.u32 %v572, 4294901760
        %v923 = vsub.f32 %v572, %v922
        %v924 = vand.u32 %v923, 4294901760
        %925 = vmatpush.msra.mxu0 %v924
        %v926 = vand.u32 %v564, 4294901760
        %927 = vmatmul.f32.gmra.mxu0 %v926
        %v928 = vpop.f32.mrf.mxu0
        %v929 = vadd.f32 %v854, %v928
        %v930 = vand.u32 %v566, 4294901760
        %931 = vmatmul.f32.gmra.mxu0 %v930
        %v932 = vpop.f32.mrf.mxu0
        %v933 = vadd.f32 %v860, %v932
        %934 = vdwg.mxu0
        %v935 = vand.u32 %v587, 4294901760
        %936 = vmatpush.msra.mxu0 %v935
        %v937 = vand.u32 %v586, 4294901760
        %938 = vmatpush.msra.mxu0 %v937
        %v939 = vand.u32 %v585, 4294901760
        %940 = vmatpush.msra.mxu0 %v939
        %v941 = vand.u32 %v584, 4294901760
        %942 = vmatpush.msra.mxu0 %v941
        %v943 = vand.u32 %v583, 4294901760
        %944 = vmatpush.msra.mxu0 %v943
        %v945 = vand.u32 %v582, 4294901760
        %946 = vmatpush.msra.mxu0 %v945
        %v947 = vand.u32 %v581, 4294901760
        %948 = vmatpush.msra.mxu0 %v947
        %v949 = vand.u32 %v580, 4294901760
        %950 = vmatpush.msra.mxu0 %v949
        %v951 = vand.u32 %v579, 4294901760
        %952 = vmatpush.msra.mxu0 %v951
        %v953 = vand.u32 %v578, 4294901760
        %954 = vmatpush.msra.mxu0 %v953
        %v955 = vand.u32 %v577, 4294901760
        %956 = vmatpush.msra.mxu0 %v955
        %v957 = vand.u32 %v576, 4294901760
        %958 = vmatpush.msra.mxu0 %v957
        %v959 = vand.u32 %v575, 4294901760
        %960 = vmatpush.msra.mxu0 %v959
        %v961 = vand.u32 %v574, 4294901760
        %962 = vmatpush.msra.mxu0 %v961
        %v963 = vand.u32 %v573, 4294901760
        %964 = vmatpush.msra.mxu0 %v963
        %v965 = vand.u32 %v572, 4294901760
        %966 = vmatpush.msra.mxu0 %v965
        %v967 = vand.u32 %v564, 4294901760
        %968 = vmatmul.f32.gmra.mxu0 %v967
        %v969 = vpop.f32.mrf.mxu0
        %v970 = vadd.f32 %v929, %v969
        %v971 = vand.u32 %v566, 4294901760
        %972 = vmatmul.f32.gmra.mxu0 %v971
        %v973 = vpop.f32.mrf.mxu0
        %v974 = vadd.f32 %v933, %v973
        %975 = vdwg.mxu0
        %v976 = vand.u32 %v603, 4294901760
        %977 = vmatpush.msra.mxu0 %v976
        %v978 = vand.u32 %v602, 4294901760
        %979 = vmatpush.msra.mxu0 %v978
        %v980 = vand.u32 %v601, 4294901760
        %981 = vmatpush.msra.mxu0 %v980
        %v982 = vand.u32 %v600, 4294901760
        %983 = vmatpush.msra.mxu0 %v982
        %v984 = vand.u32 %v599, 4294901760
        %985 = vmatpush.msra.mxu0 %v984
        %v986 = vand.u32 %v598, 4294901760
        %987 = vmatpush.msra.mxu0 %v986
        %v988 = vand.u32 %v597, 4294901760
        %989 = vmatpush.msra.mxu0 %v988
        %v990 = vand.u32 %v596, 4294901760
        %991 = vmatpush.msra.mxu0 %v990
        %v992 = vand.u32 %v595, 4294901760
        %993 = vmatpush.msra.mxu0 %v992
        %v994 = vand.u32 %v594, 4294901760
        %995 = vmatpush.msra.mxu0 %v994
        %v996 = vand.u32 %v593, 4294901760
        %997 = vmatpush.msra.mxu0 %v996
        %v998 = vand.u32 %v592, 4294901760
        %999 = vmatpush.msra.mxu0 %v998
        %v1000 = vand.u32 %v591, 4294901760
        %1001 = vmatpush.msra.mxu0 %v1000
        %v1002 = vand.u32 %v590, 4294901760
        %1003 = vmatpush.msra.mxu0 %v1002
        %v1004 = vand.u32 %v589, 4294901760
        %1005 = vmatpush.msra.mxu0 %v1004
        %v1006 = vand.u32 %v588, 4294901760
        %1007 = vmatpush.msra.mxu0 %v1006
        %v1008 = vand.u32 %v565, 4294901760
        %v1009 = vsub.f32 %v565, %v1008
        %v1010 = vand.u32 %v1009, 4294901760
        %v1011 = vsub.f32 %v1009, %v1010
        %v1012 = vand.u32 %v1011, 4294901760
        %1013 = vmatmul.f32.gmra.mxu0 %v1012
        %v1014 = vpop.f32.mrf.mxu0
        %v1015 = vadd.f32 %v970, %v1014
        %v1016 = vand.u32 %v567, 4294901760
        %v1017 = vsub.f32 %v567, %v1016
        %v1018 = vand.u32 %v1017, 4294901760
        %v1019 = vsub.f32 %v1017, %v1018
        %v1020 = vand.u32 %v1019, 4294901760
        %1021 = vmatmul.f32.gmra.mxu0 %v1020
        %v1022 = vpop.f32.mrf.mxu0
        %v1023 = vadd.f32 %v974, %v1022
        %1024 = vdwg.mxu0
        %v1025 = vand.u32 %v603, 4294901760
        %v1026 = vsub.f32 %v603, %v1025
        %v1027 = vand.u32 %v1026, 4294901760
        %v1028 = vsub.f32 %v1026, %v1027
        %v1029 = vand.u32 %v1028, 4294901760
        %1030 = vmatpush.msra.mxu0 %v1029
        %v1031 = vand.u32 %v602, 4294901760
        %v1032 = vsub.f32 %v602, %v1031
        %v1033 = vand.u32 %v1032, 4294901760
        %v1034 = vsub.f32 %v1032, %v1033
        %v1035 = vand.u32 %v1034, 4294901760
        %1036 = vmatpush.msra.mxu0 %v1035
        %v1037 = vand.u32 %v601, 4294901760
        %v1038 = vsub.f32 %v601, %v1037
        %v1039 = vand.u32 %v1038, 4294901760
        %v1040 = vsub.f32 %v1038, %v1039
        %v1041 = vand.u32 %v1040, 4294901760
        %1042 = vmatpush.msra.mxu0 %v1041
        %v1043 = vand.u32 %v600, 4294901760
        %v1044 = vsub.f32 %v600, %v1043
        %v1045 = vand.u32 %v1044, 4294901760
        %v1046 = vsub.f32 %v1044, %v1045
        %v1047 = vand.u32 %v1046, 4294901760
        %1048 = vmatpush.msra.mxu0 %v1047
        %v1049 = vand.u32 %v599, 4294901760
        %v1050 = vsub.f32 %v599, %v1049
        %v1051 = vand.u32 %v1050, 4294901760
        %v1052 = vsub.f32 %v1050, %v1051
        %v1053 = vand.u32 %v1052, 4294901760
        %1054 = vmatpush.msra.mxu0 %v1053
        %v1055 = vand.u32 %v598, 4294901760
        %v1056 = vsub.f32 %v598, %v1055
        %v1057 = vand.u32 %v1056, 4294901760
        %v1058 = vsub.f32 %v1056, %v1057
        %v1059 = vand.u32 %v1058, 4294901760
        %1060 = vmatpush.msra.mxu0 %v1059
        %v1061 = vand.u32 %v597, 4294901760
        %v1062 = vsub.f32 %v597, %v1061
        %v1063 = vand.u32 %v1062, 4294901760
        %v1064 = vsub.f32 %v1062, %v1063
        %v1065 = vand.u32 %v1064, 4294901760
        %1066 = vmatpush.msra.mxu0 %v1065
        %v1067 = vand.u32 %v596, 4294901760
        %v1068 = vsub.f32 %v596, %v1067
        %v1069 = vand.u32 %v1068, 4294901760
        %v1070 = vsub.f32 %v1068, %v1069
        %v1071 = vand.u32 %v1070, 4294901760
        %1072 = vmatpush.msra.mxu0 %v1071
        %v1073 = vand.u32 %v595, 4294901760
        %v1074 = vsub.f32 %v595, %v1073
        %v1075 = vand.u32 %v1074, 4294901760
        %v1076 = vsub.f32 %v1074, %v1075
        %v1077 = vand.u32 %v1076, 4294901760
        %1078 = vmatpush.msra.mxu0 %v1077
        %v1079 = vand.u32 %v594, 4294901760
        %v1080 = vsub.f32 %v594, %v1079
        %v1081 = vand.u32 %v1080, 4294901760
        %v1082 = vsub.f32 %v1080, %v1081
        %v1083 = vand.u32 %v1082, 4294901760
        %1084 = vmatpush.msra.mxu0 %v1083
        %v1085 = vand.u32 %v593, 4294901760
        %v1086 = vsub.f32 %v593, %v1085
        %v1087 = vand.u32 %v1086, 4294901760
        %v1088 = vsub.f32 %v1086, %v1087
        %v1089 = vand.u32 %v1088, 4294901760
        %1090 = vmatpush.msra.mxu0 %v1089
        %v1091 = vand.u32 %v592, 4294901760
        %v1092 = vsub.f32 %v592, %v1091
        %v1093 = vand.u32 %v1092, 4294901760
        %v1094 = vsub.f32 %v1092, %v1093
        %v1095 = vand.u32 %v1094, 4294901760
        %1096 = vmatpush.msra.mxu0 %v1095
        %v1097 = vand.u32 %v591, 4294901760
        %v1098 = vsub.f32 %v591, %v1097
        %v1099 = vand.u32 %v1098, 4294901760
        %v1100 = vsub.f32 %v1098, %v1099
        %v1101 = vand.u32 %v1100, 4294901760
        %1102 = vmatpush.msra.mxu0 %v1101
        %v1103 = vand.u32 %v590, 4294901760
        %v1104 = vsub.f32 %v590, %v1103
        %v1105 = vand.u32 %v1104, 4294901760
        %v1106 = vsub.f32 %v1104, %v1105
        %v1107 = vand.u32 %v1106, 4294901760
        %1108 = vmatpush.msra.mxu0 %v1107
        %v1109 = vand.u32 %v589, 4294901760
        %v1110 = vsub.f32 %v589, %v1109
        %v1111 = vand.u32 %v1110, 4294901760
        %v1112 = vsub.f32 %v1110, %v1111
        %v1113 = vand.u32 %v1112, 4294901760
        %1114 = vmatpush.msra.mxu0 %v1113
        %v1115 = vand.u32 %v588, 4294901760
        %v1116 = vsub.f32 %v588, %v1115
        %v1117 = vand.u32 %v1116, 4294901760
        %v1118 = vsub.f32 %v1116, %v1117
        %v1119 = vand.u32 %v1118, 4294901760
        %1120 = vmatpush.msra.mxu0 %v1119
        %v1121 = vand.u32 %v565, 4294901760
        %1122 = vmatmul.f32.gmra.mxu0 %v1121
        %v1123 = vpop.f32.mrf.mxu0
        %v1124 = vadd.f32 %v1015, %v1123
        %v1125 = vand.u32 %v567, 4294901760
        %1126 = vmatmul.f32.gmra.mxu0 %v1125
        %v1127 = vpop.f32.mrf.mxu0
        %v1128 = vadd.f32 %v1023, %v1127
        %1129 = vdwg.mxu0
        %v1130 = vand.u32 %v603, 4294901760
        %v1131 = vsub.f32 %v603, %v1130
        %1132 = vmatpush.msra.mxu0 %v1131
        %v1133 = vand.u32 %v602, 4294901760
        %v1134 = vsub.f32 %v602, %v1133
        %1135 = vmatpush.msra.mxu0 %v1134
        %v1136 = vand.u32 %v601, 4294901760
        %v1137 = vsub.f32 %v601, %v1136
        %1138 = vmatpush.msra.mxu0 %v1137
        %v1139 = vand.u32 %v600, 4294901760
        %v1140 = vsub.f32 %v600, %v1139
        %1141 = vmatpush.msra.mxu0 %v1140
        %v1142 = vand.u32 %v599, 4294901760
        %v1143 = vsub.f32 %v599, %v1142
        %1144 = vmatpush.msra.mxu0 %v1143
        %v1145 = vand.u32 %v598, 4294901760
        %v1146 = vsub.f32 %v598, %v1145
        %1147 = vmatpush.msra.mxu0 %v1146
        %v1148 = vand.u32 %v597, 4294901760
        %v1149 = vsub.f32 %v597, %v1148
        %1150 = vmatpush.msra.mxu0 %v1149
        %v1151 = vand.u32 %v596, 4294901760
        %v1152 = vsub.f32 %v596, %v1151
        %1153 = vmatpush.msra.mxu0 %v1152
        %v1154 = vand.u32 %v595, 4294901760
        %v1155 = vsub.f32 %v595, %v1154
        %1156 = vmatpush.msra.mxu0 %v1155
        %v1157 = vand.u32 %v594, 4294901760
        %v1158 = vsub.f32 %v594, %v1157
        %1159 = vmatpush.msra.mxu0 %v1158
        %v1160 = vand.u32 %v593, 4294901760
        %v1161 = vsub.f32 %v593, %v1160
        %1162 = vmatpush.msra.mxu0 %v1161
        %v1163 = vand.u32 %v592, 4294901760
        %v1164 = vsub.f32 %v592, %v1163
        %1165 = vmatpush.msra.mxu0 %v1164
        %v1166 = vand.u32 %v591, 4294901760
        %v1167 = vsub.f32 %v591, %v1166
        %1168 = vmatpush.msra.mxu0 %v1167
        %v1169 = vand.u32 %v590, 4294901760
        %v1170 = vsub.f32 %v590, %v1169
        %1171 = vmatpush.msra.mxu0 %v1170
        %v1172 = vand.u32 %v589, 4294901760
        %v1173 = vsub.f32 %v589, %v1172
        %1174 = vmatpush.msra.mxu0 %v1173
        %v1175 = vand.u32 %v588, 4294901760
        %v1176 = vsub.f32 %v588, %v1175
        %1177 = vmatpush.msra.mxu0 %v1176
        %v1178 = vand.u32 %v565, 4294901760
        %v1179 = vsub.f32 %v565, %v1178
        %1180 = vmatmul.f32.gmra.mxu0 %v1179
        %v1181 = vpop.f32.mrf.mxu0
        %v1182 = vadd.f32 %v1124, %v1181
        %v1183 = vand.u32 %v567, 4294901760
        %v1184 = vsub.f32 %v567, %v1183
        %1185 = vmatmul.f32.gmra.mxu0 %v1184
        %v1186 = vpop.f32.mrf.mxu0
        %v1187 = vadd.f32 %v1128, %v1186
        %1188 = vdwg.mxu0
        %v1189 = vand.u32 %v603, 4294901760
        %1190 = vmatpush.msra.mxu0 %v1189
        %v1191 = vand.u32 %v602, 4294901760
        %1192 = vmatpush.msra.mxu0 %v1191
        %v1193 = vand.u32 %v601, 4294901760
        %1194 = vmatpush.msra.mxu0 %v1193
        %v1195 = vand.u32 %v600, 4294901760
        %1196 = vmatpush.msra.mxu0 %v1195
        %v1197 = vand.u32 %v599, 4294901760
        %1198 = vmatpush.msra.mxu0 %v1197
        %v1199 = vand.u32 %v598, 4294901760
        %1200 = vmatpush.msra.mxu0 %v1199
        %v1201 = vand.u32 %v597, 4294901760
        %1202 = vmatpush.msra.mxu0 %v1201
        %v1203 = vand.u32 %v596, 4294901760
        %1204 = vmatpush.msra.mxu0 %v1203
        %v1205 = vand.u32 %v595, 4294901760
        %1206 = vmatpush.msra.mxu0 %v1205
        %v1207 = vand.u32 %v594, 4294901760
        %1208 = vmatpush.msra.mxu0 %v1207
        %v1209 = vand.u32 %v593, 4294901760
        %1210 = vmatpush.msra.mxu0 %v1209
        %v1211 = vand.u32 %v592, 4294901760
        %1212 = vmatpush.msra.mxu0 %v1211
        %v1213 = vand.u32 %v591, 4294901760
        %1214 = vmatpush.msra.mxu0 %v1213
        %v1215 = vand.u32 %v590, 4294901760
        %1216 = vmatpush.msra.mxu0 %v1215
        %v1217 = vand.u32 %v589, 4294901760
        %1218 = vmatpush.msra.mxu0 %v1217
        %v1219 = vand.u32 %v588, 4294901760
        %1220 = vmatpush.msra.mxu0 %v1219
        %v1221 = vand.u32 %v565, 4294901760
        %v1222 = vsub.f32 %v565, %v1221
        %v1223 = vand.u32 %v1222, 4294901760
        %1224 = vmatmul.f32.gmra.mxu0 %v1223
        %v1225 = vpop.f32.mrf.mxu0
        %v1226 = vadd.f32 %v1182, %v1225
        %v1227 = vand.u32 %v567, 4294901760
        %v1228 = vsub.f32 %v567, %v1227
        %v1229 = vand.u32 %v1228, 4294901760
        %1230 = vmatmul.f32.gmra.mxu0 %v1229
        %v1231 = vpop.f32.mrf.mxu0
        %v1232 = vadd.f32 %v1187, %v1231
        %1233 = vdwg.mxu0
        %v1234 = vand.u32 %v603, 4294901760
        %v1235 = vsub.f32 %v603, %v1234
        %v1236 = vand.u32 %v1235, 4294901760
        %1237 = vmatpush.msra.mxu0 %v1236
        %v1238 = vand.u32 %v602, 4294901760
        %v1239 = vsub.f32 %v602, %v1238
        %v1240 = vand.u32 %v1239, 4294901760
        %1241 = vmatpush.msra.mxu0 %v1240
        %v1242 = vand.u32 %v601, 4294901760
        %v1243 = vsub.f32 %v601, %v1242
        %v1244 = vand.u32 %v1243, 4294901760
        %1245 = vmatpush.msra.mxu0 %v1244
        %v1246 = vand.u32 %v600, 4294901760
        %v1247 = vsub.f32 %v600, %v1246
        %v1248 = vand.u32 %v1247, 4294901760
        %1249 = vmatpush.msra.mxu0 %v1248
        %v1250 = vand.u32 %v599, 4294901760
        %v1251 = vsub.f32 %v599, %v1250
        %v1252 = vand.u32 %v1251, 4294901760
        %1253 = vmatpush.msra.mxu0 %v1252
        %v1254 = vand.u32 %v598, 4294901760
        %v1255 = vsub.f32 %v598, %v1254
        %v1256 = vand.u32 %v1255, 4294901760
        %1257 = vmatpush.msra.mxu0 %v1256
        %v1258 = vand.u32 %v597, 4294901760
        %v1259 = vsub.f32 %v597, %v1258
        %v1260 = vand.u32 %v1259, 4294901760
        %1261 = vmatpush.msra.mxu0 %v1260
        %v1262 = vand.u32 %v596, 4294901760
        %v1263 = vsub.f32 %v596, %v1262
        %v1264 = vand.u32 %v1263, 4294901760
        %1265 = vmatpush.msra.mxu0 %v1264
        %v1266 = vand.u32 %v595, 4294901760
        %v1267 = vsub.f32 %v595, %v1266
        %v1268 = vand.u32 %v1267, 4294901760
        %1269 = vmatpush.msra.mxu0 %v1268
        %v1270 = vand.u32 %v594, 4294901760
        %v1271 = vsub.f32 %v594, %v1270
        %v1272 = vand.u32 %v1271, 4294901760
        %1273 = vmatpush.msra.mxu0 %v1272
        %v1274 = vand.u32 %v593, 4294901760
        %v1275 = vsub.f32 %v593, %v1274
        %v1276 = vand.u32 %v1275, 4294901760
        %1277 = vmatpush.msra.mxu0 %v1276
        %v1278 = vand.u32 %v592, 4294901760
        %v1279 = vsub.f32 %v592, %v1278
        %v1280 = vand.u32 %v1279, 4294901760
        %1281 = vmatpush.msra.mxu0 %v1280
        %v1282 = vand.u32 %v591, 4294901760
        %v1283 = vsub.f32 %v591, %v1282
        %v1284 = vand.u32 %v1283, 4294901760
        %1285 = vmatpush.msra.mxu0 %v1284
        %v1286 = vand.u32 %v590, 4294901760
        %v1287 = vsub.f32 %v590, %v1286
        %v1288 = vand.u32 %v1287, 4294901760
        %1289 = vmatpush.msra.mxu0 %v1288
        %v1290 = vand.u32 %v589, 4294901760
        %v1291 = vsub.f32 %v589, %v1290
        %v1292 = vand.u32 %v1291, 4294901760
        %1293 = vmatpush.msra.mxu0 %v1292
        %v1294 = vand.u32 %v588, 4294901760
        %v1295 = vsub.f32 %v588, %v1294
        %v1296 = vand.u32 %v1295, 4294901760
        %1297 = vmatpush.msra.mxu0 %v1296
        %v1298 = vand.u32 %v565, 4294901760
        %1299 = vmatmul.f32.gmra.mxu0 %v1298
        %v1300 = vpop.f32.mrf.mxu0
        %v1301 = vadd.f32 %v1226, %v1300
        %v1302 = vand.u32 %v567, 4294901760
        %1303 = vmatmul.f32.gmra.mxu0 %v1302
        %v1304 = vpop.f32.mrf.mxu0
        %v1305 = vadd.f32 %v1232, %v1304
        %1306 = vdwg.mxu0
        %v1307 = vand.u32 %v603, 4294901760
        %1308 = vmatpush.msra.mxu0 %v1307
        %v1309 = vand.u32 %v602, 4294901760
        %1310 = vmatpush.msra.mxu0 %v1309
        %v1311 = vand.u32 %v601, 4294901760
        %1312 = vmatpush.msra.mxu0 %v1311
        %v1313 = vand.u32 %v600, 4294901760
        %1314 = vmatpush.msra.mxu0 %v1313
        %v1315 = vand.u32 %v599, 4294901760
        %1316 = vmatpush.msra.mxu0 %v1315
        %v1317 = vand.u32 %v598, 4294901760
        %1318 = vmatpush.msra.mxu0 %v1317
        %v1319 = vand.u32 %v597, 4294901760
        %1320 = vmatpush.msra.mxu0 %v1319
        %v1321 = vand.u32 %v596, 4294901760
        %1322 = vmatpush.msra.mxu0 %v1321
        %v1323 = vand.u32 %v595, 4294901760
        %1324 = vmatpush.msra.mxu0 %v1323
        %v1325 = vand.u32 %v594, 4294901760
        %1326 = vmatpush.msra.mxu0 %v1325
        %v1327 = vand.u32 %v593, 4294901760
        %1328 = vmatpush.msra.mxu0 %v1327
        %v1329 = vand.u32 %v592, 4294901760
        %1330 = vmatpush.msra.mxu0 %v1329
        %v1331 = vand.u32 %v591, 4294901760
        %1332 = vmatpush.msra.mxu0 %v1331
        %v1333 = vand.u32 %v590, 4294901760
        %1334 = vmatpush.msra.mxu0 %v1333
        %v1335 = vand.u32 %v589, 4294901760
        %1336 = vmatpush.msra.mxu0 %v1335
        %v1337 = vand.u32 %v588, 4294901760
        %1338 = vmatpush.msra.mxu0 %v1337
        %v1339 = vand.u32 %v565, 4294901760
        %1340 = vmatmul.f32.gmra.mxu0 %v1339
        %v1341 = vpop.f32.mrf.mxu0
        %v1342 = vadd.f32 %v1301, %v1341
        %v1343 = vand.u32 %v567, 4294901760
        %1344 = vmatmul.f32.gmra.mxu0 %v1343
        %v1345 = vpop.f32.mrf.mxu0
        %v1346 = vadd.f32 %v1305, %v1345
        %1347 = vdwg.mxu0
        %v1348 = vmax.f32 %v1342, 0.0
        %v1349 = vmax.f32 %v1346, 0.0
        %v1350 = vlaneseq
        %v1351 = vshrl.u32 %v1350, 7
        %v1352 = vadd.s32 %v1351, 8
        %v1353 = vand.u32 %v1351, 1
        %v1354 = vand.u32 %v1352, 1
        %vm1355 = vcmp.eq.s32.totalorder %v1353, 0
        %vm1356 = vcmp.eq.s32.totalorder %v1354, 0
        %v1357 = vpack.c.bf16 %v1349, %v1348
        %vm1358 = vcmask 130048
        %v1360 = vsel %vm1358, %v568, 0
        %1362 = vmatpush.bf16.msra.mxu0 0
        %1363 = vmatpush.bf16.msra.mxu0 0
        %1364 = vmatpush.bf16.msra.mxu0 0
        %1365 = vmatpush.bf16.msra.mxu0 0
        %1366 = vmatpush.bf16.msra.mxu0 0
        %1367 = vmatpush.bf16.msra.mxu0 0
        %1368 = vmatpush.bf16.msra.mxu0 0
        %1369 = vmatpush.bf16.msra.mxu0 %v1357
        %1370 = vmatmul.bf16.gmra.mxu0 %v1360
        %v1371 = vpop.f32.mrf.mxu0
        %v1372 = vadd.f32 0.0, %v1371
        %v1373 = vpop.f32.mrf.mxu0
        %1374 = vdwg.mxu0
        %v1375 = vpack.c.bf16 %v1372, %v1372
        %v1378 = vunpack.c.l.b16 %v569
        %v1379 = vunpack.c.l.b16 %v570
        %v1380 = vpack.c.b16 %v1379, %v1378
        %vm1381 = vcmask 64512
        %v1383 = vsel %vm1381, %v1380, 0
        %vm1385 = vcmask 1043456
        %v1387 = vsel %vm1385, %v1375, 0
        %1389 = vmatpush.bf16.msra.mxu0 0
        %1390 = vmatpush.bf16.msra.mxu0 0
        %1391 = vmatpush.bf16.msra.mxu0 0
        %1392 = vmatpush.bf16.msra.mxu0 0
        %1393 = vmatpush.bf16.msra.mxu0 0
        %1394 = vmatpush.bf16.msra.mxu0 0
        %1395 = vmatpush.bf16.msra.mxu0 0
        %1396 = vmatpush.bf16.msra.mxu0 %v1387
        %1397 = vmatmul.bf16.gmra.mxu0 %v1383
        %v1398 = vpop.f32.mrf.mxu0
        %v1399 = vadd.f32 0.0, %v1398
        %v1400 = vpop.f32.mrf.mxu0
        %v1401 = vadd.f32 0.0, %v1400
        %1402 = vdwg.mxu0
        %v1403 = vrot.slane %v1348, 1
        %v1404 = vrot.slane %v1349, 1
        %vm1405 = vcmp.lt.s32.totalorder %v1351, 7
        %v1406 = vsel %vm1405, %v1403, %v1404
        %v1407 = vsel %vm1405, %v1404, %v1403
        %v1408 = vrot.slane %v1348, 7
        %v1409 = vrot.slane %v1349, 7
        %vm1410 = vcmp.lt.s32.totalorder %v1351, 1
        %v1411 = vsel %vm1410, %v1408, %v1409
        %v1412 = vsel %vm1410, %v1409, %v1408
        %v1413 = vsel %vm1355, %v1406, %v1412
        %v1414 = vsel %vm1356, %v1407, %v1411
        %v1415 = vsub.f32 %v1399, %v1413
        %v1416 = vsub.f32 %v1401, %v1414
        %v1417 = vld [vmem:[#allocation11] sm:$0xff]
        %v1418 = vld [vmem:[#allocation11 + $0x8] sm:$0xff]
        %v1419 = vld [vmem:[#allocation11 + $0x10] sm:$0xff]
        %v1420 = vld [vmem:[#allocation11 + $0x18] sm:$0xff]
        %v1421 = vld [vmem:[#allocation11 + $0x20] sm:$0xff]
        %v1422 = vld [vmem:[#allocation11 + $0x28] sm:$0xff]
        %v1423 = vld [vmem:[#allocation11 + $0x30] sm:$0xff]
        %v1424 = vld [vmem:[#allocation11 + $0x38] sm:$0xff]
        %v1425 = vld [vmem:[#allocation11 + $0x40] sm:$0xff]
        %v1426 = vld [vmem:[#allocation11 + $0x48] sm:$0xff]
        %v1427 = vld [vmem:[#allocation11 + $0x50] sm:$0xff]
        %v1428 = vld [vmem:[#allocation11 + $0x58] sm:$0xff]
        %v1429 = vld [vmem:[#allocation11 + $0x60] sm:$0xff]
        %v1430 = vld [vmem:[#allocation11 + $0x68] sm:$0xff]
        %v1431 = vld [vmem:[#allocation11 + $0x70] sm:$0xff]
        %v1432 = vld [vmem:[#allocation11 + $0x78] sm:$0xff]
        %v1433 = vand.u32 %v1432, 4294901760
        %1434 = vmatpush.msra.mxu0 %v1433
        %v1435 = vand.u32 %v1431, 4294901760
        %1436 = vmatpush.msra.mxu0 %v1435
        %v1437 = vand.u32 %v1430, 4294901760
        %1438 = vmatpush.msra.mxu0 %v1437
        %v1439 = vand.u32 %v1429, 4294901760
        %1440 = vmatpush.msra.mxu0 %v1439
        %v1441 = vand.u32 %v1428, 4294901760
        %1442 = vmatpush.msra.mxu0 %v1441
        %v1443 = vand.u32 %v1427, 4294901760
        %1444 = vmatpush.msra.mxu0 %v1443
        %v1445 = vand.u32 %v1426, 4294901760
        %1446 = vmatpush.msra.mxu0 %v1445
        %v1447 = vand.u32 %v1425, 4294901760
        %1448 = vmatpush.msra.mxu0 %v1447
        %v1449 = vand.u32 %v1424, 4294901760
        %1450 = vmatpush.msra.mxu0 %v1449
        %v1451 = vand.u32 %v1423, 4294901760
        %1452 = vmatpush.msra.mxu0 %v1451
        %v1453 = vand.u32 %v1422, 4294901760
        %1454 = vmatpush.msra.mxu0 %v1453
        %v1455 = vand.u32 %v1421, 4294901760
        %1456 = vmatpush.msra.mxu0 %v1455
        %v1457 = vand.u32 %v1420, 4294901760
        %1458 = vmatpush.msra.mxu0 %v1457
        %v1459 = vand.u32 %v1419, 4294901760
        %1460 = vmatpush.msra.mxu0 %v1459
        %v1461 = vand.u32 %v1418, 4294901760
        %1462 = vmatpush.msra.mxu0 %v1461
        %v1463 = vand.u32 %v1417, 4294901760
        %1464 = vmatpush.msra.mxu0 %v1463
        %v1465 = vand.u32 %v1415, 4294901760
        %v1466 = vsub.f32 %v1415, %v1465
        %v1467 = vand.u32 %v1466, 4294901760
        %v1468 = vsub.f32 %v1466, %v1467
        %v1469 = vand.u32 %v1468, 4294901760
        %1470 = vmatmul.f32.gmra.mxu0 %v1469
        %v1471 = vpop.f32.mrf.mxu0
        %v1472 = vadd.f32 0.0, %v1471
        %v1473 = vand.u32 %v1416, 4294901760
        %v1474 = vsub.f32 %v1416, %v1473
        %v1475 = vand.u32 %v1474, 4294901760
        %v1476 = vsub.f32 %v1474, %v1475
        %v1477 = vand.u32 %v1476, 4294901760
        %1478 = vmatmul.f32.gmra.mxu0 %v1477
        %v1479 = vpop.f32.mrf.mxu0
        %v1480 = vadd.f32 0.0, %v1479
        %1481 = vdwg.mxu0
        %v1482 = vand.u32 %v1432, 4294901760
        %v1483 = vsub.f32 %v1432, %v1482
        %v1484 = vand.u32 %v1483, 4294901760
        %v1485 = vsub.f32 %v1483, %v1484
        %v1486 = vand.u32 %v1485, 4294901760
        %1487 = vmatpush.msra.mxu0 %v1486
        %v1488 = vand.u32 %v1431, 4294901760
        %v1489 = vsub.f32 %v1431, %v1488
        %v1490 = vand.u32 %v1489, 4294901760
        %v1491 = vsub.f32 %v1489, %v1490
        %v1492 = vand.u32 %v1491, 4294901760
        %1493 = vmatpush.msra.mxu0 %v1492
        %v1494 = vand.u32 %v1430, 4294901760
        %v1495 = vsub.f32 %v1430, %v1494
        %v1496 = vand.u32 %v1495, 4294901760
        %v1497 = vsub.f32 %v1495, %v1496
        %v1498 = vand.u32 %v1497, 4294901760
        %1499 = vmatpush.msra.mxu0 %v1498
        %v1500 = vand.u32 %v1429, 4294901760
        %v1501 = vsub.f32 %v1429, %v1500
        %v1502 = vand.u32 %v1501, 4294901760
        %v1503 = vsub.f32 %v1501, %v1502
        %v1504 = vand.u32 %v1503, 4294901760
        %1505 = vmatpush.msra.mxu0 %v1504
        %v1506 = vand.u32 %v1428, 4294901760
        %v1507 = vsub.f32 %v1428, %v1506
        %v1508 = vand.u32 %v1507, 4294901760
        %v1509 = vsub.f32 %v1507, %v1508
        %v1510 = vand.u32 %v1509, 4294901760
        %1511 = vmatpush.msra.mxu0 %v1510
        %v1512 = vand.u32 %v1427, 4294901760
        %v1513 = vsub.f32 %v1427, %v1512
        %v1514 = vand.u32 %v1513, 4294901760
        %v1515 = vsub.f32 %v1513, %v1514
        %v1516 = vand.u32 %v1515, 4294901760
        %1517 = vmatpush.msra.mxu0 %v1516
        %v1518 = vand.u32 %v1426, 4294901760
        %v1519 = vsub.f32 %v1426, %v1518
        %v1520 = vand.u32 %v1519, 4294901760
        %v1521 = vsub.f32 %v1519, %v1520
        %v1522 = vand.u32 %v1521, 4294901760
        %1523 = vmatpush.msra.mxu0 %v1522
        %v1524 = vand.u32 %v1425, 4294901760
        %v1525 = vsub.f32 %v1425, %v1524
        %v1526 = vand.u32 %v1525, 4294901760
        %v1527 = vsub.f32 %v1525, %v1526
        %v1528 = vand.u32 %v1527, 4294901760
        %1529 = vmatpush.msra.mxu0 %v1528
        %v1530 = vand.u32 %v1424, 4294901760
        %v1531 = vsub.f32 %v1424, %v1530
        %v1532 = vand.u32 %v1531, 4294901760
        %v1533 = vsub.f32 %v1531, %v1532
        %v1534 = vand.u32 %v1533, 4294901760
        %1535 = vmatpush.msra.mxu0 %v1534
        %v1536 = vand.u32 %v1423, 4294901760
        %v1537 = vsub.f32 %v1423, %v1536
        %v1538 = vand.u32 %v1537, 4294901760
        %v1539 = vsub.f32 %v1537, %v1538
        %v1540 = vand.u32 %v1539, 4294901760
        %1541 = vmatpush.msra.mxu0 %v1540
        %v1542 = vand.u32 %v1422, 4294901760
        %v1543 = vsub.f32 %v1422, %v1542
        %v1544 = vand.u32 %v1543, 4294901760
        %v1545 = vsub.f32 %v1543, %v1544
        %v1546 = vand.u32 %v1545, 4294901760
        %1547 = vmatpush.msra.mxu0 %v1546
        %v1548 = vand.u32 %v1421, 4294901760
        %v1549 = vsub.f32 %v1421, %v1548
        %v1550 = vand.u32 %v1549, 4294901760
        %v1551 = vsub.f32 %v1549, %v1550
        %v1552 = vand.u32 %v1551, 4294901760
        %1553 = vmatpush.msra.mxu0 %v1552
        %v1554 = vand.u32 %v1420, 4294901760
        %v1555 = vsub.f32 %v1420, %v1554
        %v1556 = vand.u32 %v1555, 4294901760
        %v1557 = vsub.f32 %v1555, %v1556
        %v1558 = vand.u32 %v1557, 4294901760
        %1559 = vmatpush.msra.mxu0 %v1558
        %v1560 = vand.u32 %v1419, 4294901760
        %v1561 = vsub.f32 %v1419, %v1560
        %v1562 = vand.u32 %v1561, 4294901760
        %v1563 = vsub.f32 %v1561, %v1562
        %v1564 = vand.u32 %v1563, 4294901760
        %1565 = vmatpush.msra.mxu0 %v1564
        %v1566 = vand.u32 %v1418, 4294901760
        %v1567 = vsub.f32 %v1418, %v1566
        %v1568 = vand.u32 %v1567, 4294901760
        %v1569 = vsub.f32 %v1567, %v1568
        %v1570 = vand.u32 %v1569, 4294901760
        %1571 = vmatpush.msra.mxu0 %v1570
        %v1572 = vand.u32 %v1417, 4294901760
        %v1573 = vsub.f32 %v1417, %v1572
        %v1574 = vand.u32 %v1573, 4294901760
        %v1575 = vsub.f32 %v1573, %v1574
        %v1576 = vand.u32 %v1575, 4294901760
        %1577 = vmatpush.msra.mxu0 %v1576
        %v1578 = vand.u32 %v1415, 4294901760
        %1579 = vmatmul.f32.gmra.mxu0 %v1578
        %v1580 = vpop.f32.mrf.mxu0
        %v1581 = vadd.f32 %v1472, %v1580
        %v1582 = vand.u32 %v1416, 4294901760
        %1583 = vmatmul.f32.gmra.mxu0 %v1582
        %v1584 = vpop.f32.mrf.mxu0
        %v1585 = vadd.f32 %v1480, %v1584
        %1586 = vdwg.mxu0
        %v1587 = vand.u32 %v1432, 4294901760
        %v1588 = vsub.f32 %v1432, %v1587
        %1589 = vmatpush.msra.mxu0 %v1588
        %v1590 = vand.u32 %v1431, 4294901760
        %v1591 = vsub.f32 %v1431, %v1590
        %1592 = vmatpush.msra.mxu0 %v1591
        %v1593 = vand.u32 %v1430, 4294901760
        %v1594 = vsub.f32 %v1430, %v1593
        %1595 = vmatpush.msra.mxu0 %v1594
        %v1596 = vand.u32 %v1429, 4294901760
        %v1597 = vsub.f32 %v1429, %v1596
        %1598 = vmatpush.msra.mxu0 %v1597
        %v1599 = vand.u32 %v1428, 4294901760
        %v1600 = vsub.f32 %v1428, %v1599
        %1601 = vmatpush.msra.mxu0 %v1600
        %v1602 = vand.u32 %v1427, 4294901760
        %v1603 = vsub.f32 %v1427, %v1602
        %1604 = vmatpush.msra.mxu0 %v1603
        %v1605 = vand.u32 %v1426, 4294901760
        %v1606 = vsub.f32 %v1426, %v1605
        %1607 = vmatpush.msra.mxu0 %v1606
        %v1608 = vand.u32 %v1425, 4294901760
        %v1609 = vsub.f32 %v1425, %v1608
        %1610 = vmatpush.msra.mxu0 %v1609
        %v1611 = vand.u32 %v1424, 4294901760
        %v1612 = vsub.f32 %v1424, %v1611
        %1613 = vmatpush.msra.mxu0 %v1612
        %v1614 = vand.u32 %v1423, 4294901760
        %v1615 = vsub.f32 %v1423, %v1614
        %1616 = vmatpush.msra.mxu0 %v1615
        %v1617 = vand.u32 %v1422, 4294901760
        %v1618 = vsub.f32 %v1422, %v1617
        %1619 = vmatpush.msra.mxu0 %v1618
        %v1620 = vand.u32 %v1421, 4294901760
        %v1621 = vsub.f32 %v1421, %v1620
        %1622 = vmatpush.msra.mxu0 %v1621
        %v1623 = vand.u32 %v1420, 4294901760
        %v1624 = vsub.f32 %v1420, %v1623
        %1625 = vmatpush.msra.mxu0 %v1624
        %v1626 = vand.u32 %v1419, 4294901760
        %v1627 = vsub.f32 %v1419, %v1626
        %1628 = vmatpush.msra.mxu0 %v1627
        %v1629 = vand.u32 %v1418, 4294901760
        %v1630 = vsub.f32 %v1418, %v1629
        %1631 = vmatpush.msra.mxu0 %v1630
        %v1632 = vand.u32 %v1417, 4294901760
        %v1633 = vsub.f32 %v1417, %v1632
        %1634 = vmatpush.msra.mxu0 %v1633
        %v1635 = vand.u32 %v1415, 4294901760
        %v1636 = vsub.f32 %v1415, %v1635
        %1637 = vmatmul.f32.gmra.mxu0 %v1636
        %v1638 = vpop.f32.mrf.mxu0
        %v1639 = vadd.f32 %v1581, %v1638
        %v1640 = vand.u32 %v1416, 4294901760
        %v1641 = vsub.f32 %v1416, %v1640
        %1642 = vmatmul.f32.gmra.mxu0 %v1641
        %v1643 = vpop.f32.mrf.mxu0
        %v1644 = vadd.f32 %v1585, %v1643
        %1645 = vdwg.mxu0
        %v1646 = vand.u32 %v1432, 4294901760
        %1647 = vmatpush.msra.mxu0 %v1646
        %v1648 = vand.u32 %v1431, 4294901760
        %1649 = vmatpush.msra.mxu0 %v1648
        %v1650 = vand.u32 %v1430, 4294901760
        %1651 = vmatpush.msra.mxu0 %v1650
        %v1652 = vand.u32 %v1429, 4294901760
        %1653 = vmatpush.msra.mxu0 %v1652
        %v1654 = vand.u32 %v1428, 4294901760
        %1655 = vmatpush.msra.mxu0 %v1654
        %v1656 = vand.u32 %v1427, 4294901760
        %1657 = vmatpush.msra.mxu0 %v1656
        %v1658 = vand.u32 %v1426, 4294901760
        %1659 = vmatpush.msra.mxu0 %v1658
        %v1660 = vand.u32 %v1425, 4294901760
        %1661 = vmatpush.msra.mxu0 %v1660
        %v1662 = vand.u32 %v1424, 4294901760
        %1663 = vmatpush.msra.mxu0 %v1662
        %v1664 = vand.u32 %v1423, 4294901760
        %1665 = vmatpush.msra.mxu0 %v1664
        %v1666 = vand.u32 %v1422, 4294901760
        %1667 = vmatpush.msra.mxu0 %v1666
        %v1668 = vand.u32 %v1421, 4294901760
        %1669 = vmatpush.msra.mxu0 %v1668
        %v1670 = vand.u32 %v1420, 4294901760
        %1671 = vmatpush.msra.mxu0 %v1670
        %v1672 = vand.u32 %v1419, 4294901760
        %1673 = vmatpush.msra.mxu0 %v1672
        %v1674 = vand.u32 %v1418, 4294901760
        %1675 = vmatpush.msra.mxu0 %v1674
        %v1676 = vand.u32 %v1417, 4294901760
        %1677 = vmatpush.msra.mxu0 %v1676
        %v1678 = vand.u32 %v1415, 4294901760
        %v1679 = vsub.f32 %v1415, %v1678
        %v1680 = vand.u32 %v1679, 4294901760
        %1681 = vmatmul.f32.gmra.mxu0 %v1680
        %v1682 = vpop.f32.mrf.mxu0
        %v1683 = vadd.f32 %v1639, %v1682
        %v1684 = vand.u32 %v1416, 4294901760
        %v1685 = vsub.f32 %v1416, %v1684
        %v1686 = vand.u32 %v1685, 4294901760
        %1687 = vmatmul.f32.gmra.mxu0 %v1686
        %v1688 = vpop.f32.mrf.mxu0
        %v1689 = vadd.f32 %v1644, %v1688
        %1690 = vdwg.mxu0
        %v1691 = vand.u32 %v1432, 4294901760
        %v1692 = vsub.f32 %v1432, %v1691
        %v1693 = vand.u32 %v1692, 4294901760
        %1694 = vmatpush.msra.mxu0 %v1693
        %v1695 = vand.u32 %v1431, 4294901760
        %v1696 = vsub.f32 %v1431, %v1695
        %v1697 = vand.u32 %v1696, 4294901760
        %1698 = vmatpush.msra.mxu0 %v1697
        %v1699 = vand.u32 %v1430, 4294901760
        %v1700 = vsub.f32 %v1430, %v1699
        %v1701 = vand.u32 %v1700, 4294901760
        %1702 = vmatpush.msra.mxu0 %v1701
        %v1703 = vand.u32 %v1429, 4294901760
        %v1704 = vsub.f32 %v1429, %v1703
        %v1705 = vand.u32 %v1704, 4294901760
        %1706 = vmatpush.msra.mxu0 %v1705
        %v1707 = vand.u32 %v1428, 4294901760
        %v1708 = vsub.f32 %v1428, %v1707
        %v1709 = vand.u32 %v1708, 4294901760
        %1710 = vmatpush.msra.mxu0 %v1709
        %v1711 = vand.u32 %v1427, 4294901760
        %v1712 = vsub.f32 %v1427, %v1711
        %v1713 = vand.u32 %v1712, 4294901760
        %1714 = vmatpush.msra.mxu0 %v1713
        %v1715 = vand.u32 %v1426, 4294901760
        %v1716 = vsub.f32 %v1426, %v1715
        %v1717 = vand.u32 %v1716, 4294901760
        %1718 = vmatpush.msra.mxu0 %v1717
        %v1719 = vand.u32 %v1425, 4294901760
        %v1720 = vsub.f32 %v1425, %v1719
        %v1721 = vand.u32 %v1720, 4294901760
        %1722 = vmatpush.msra.mxu0 %v1721
        %v1723 = vand.u32 %v1424, 4294901760
        %v1724 = vsub.f32 %v1424, %v1723
        %v1725 = vand.u32 %v1724, 4294901760
        %1726 = vmatpush.msra.mxu0 %v1725
        %v1727 = vand.u32 %v1423, 4294901760
        %v1728 = vsub.f32 %v1423, %v1727
        %v1729 = vand.u32 %v1728, 4294901760
        %1730 = vmatpush.msra.mxu0 %v1729
        %v1731 = vand.u32 %v1422, 4294901760
        %v1732 = vsub.f32 %v1422, %v1731
        %v1733 = vand.u32 %v1732, 4294901760
        %1734 = vmatpush.msra.mxu0 %v1733
        %v1735 = vand.u32 %v1421, 4294901760
        %v1736 = vsub.f32 %v1421, %v1735
        %v1737 = vand.u32 %v1736, 4294901760
        %1738 = vmatpush.msra.mxu0 %v1737
        %v1739 = vand.u32 %v1420, 4294901760
        %v1740 = vsub.f32 %v1420, %v1739
        %v1741 = vand.u32 %v1740, 4294901760
        %1742 = vmatpush.msra.mxu0 %v1741
        %v1743 = vand.u32 %v1419, 4294901760
        %v1744 = vsub.f32 %v1419, %v1743
        %v1745 = vand.u32 %v1744, 4294901760
        %1746 = vmatpush.msra.mxu0 %v1745
        %v1747 = vand.u32 %v1418, 4294901760
        %v1748 = vsub.f32 %v1418, %v1747
        %v1749 = vand.u32 %v1748, 4294901760
        %1750 = vmatpush.msra.mxu0 %v1749
        %v1751 = vand.u32 %v1417, 4294901760
        %v1752 = vsub.f32 %v1417, %v1751
        %v1753 = vand.u32 %v1752, 4294901760
        %1754 = vmatpush.msra.mxu0 %v1753
        %v1755 = vand.u32 %v1415, 4294901760
        %1756 = vmatmul.f32.gmra.mxu0 %v1755
        %v1757 = vpop.f32.mrf.mxu0
        %v1758 = vadd.f32 %v1683, %v1757
        %v1759 = vand.u32 %v1416, 4294901760
        %1760 = vmatmul.f32.gmra.mxu0 %v1759
        %v1761 = vpop.f32.mrf.mxu0
        %v1762 = vadd.f32 %v1689, %v1761
        %1763 = vdwg.mxu0
        %v1764 = vand.u32 %v1432, 4294901760
        %1765 = vmatpush.msra.mxu0 %v1764
        %v1766 = vand.u32 %v1431, 4294901760
        %1767 = vmatpush.msra.mxu0 %v1766
        %v1768 = vand.u32 %v1430, 4294901760
        %1769 = vmatpush.msra.mxu0 %v1768
        %v1770 = vand.u32 %v1429, 4294901760
        %1771 = vmatpush.msra.mxu0 %v1770
        %v1772 = vand.u32 %v1428, 4294901760
        %1773 = vmatpush.msra.mxu0 %v1772
        %v1774 = vand.u32 %v1427, 4294901760
        %1775 = vmatpush.msra.mxu0 %v1774
        %v1776 = vand.u32 %v1426, 4294901760
        %1777 = vmatpush.msra.mxu0 %v1776
        %v1778 = vand.u32 %v1425, 4294901760
        %1779 = vmatpush.msra.mxu0 %v1778
        %v1780 = vand.u32 %v1424, 4294901760
        %1781 = vmatpush.msra.mxu0 %v1780
        %v1782 = vand.u32 %v1423, 4294901760
        %1783 = vmatpush.msra.mxu0 %v1782
        %v1784 = vand.u32 %v1422, 4294901760
        %1785 = vmatpush.msra.mxu0 %v1784
        %v1786 = vand.u32 %v1421, 4294901760
        %1787 = vmatpush.msra.mxu0 %v1786
        %v1788 = vand.u32 %v1420, 4294901760
        %1789 = vmatpush.msra.mxu0 %v1788
        %v1790 = vand.u32 %v1419, 4294901760
        %1791 = vmatpush.msra.mxu0 %v1790
        %v1792 = vand.u32 %v1418, 4294901760
        %1793 = vmatpush.msra.mxu0 %v1792
        %v1794 = vand.u32 %v1417, 4294901760
        %1795 = vmatpush.msra.mxu0 %v1794
        %v1796 = vand.u32 %v1415, 4294901760
        %1797 = vmatmul.f32.gmra.mxu0 %v1796
        %v1798 = vpop.f32.mrf.mxu0
        %v1799 = vadd.f32 %v1758, %v1798
        %v1800 = vand.u32 %v1416, 4294901760
        %1801 = vmatmul.f32.gmra.mxu0 %v1800
        %v1802 = vpop.f32.mrf.mxu0
        %v1803 = vadd.f32 %v1762, %v1802
        %1804 = vdwg.mxu0
        %v1805 = vadd.f32 %v1342, %v1799
        %v1806 = vadd.f32 %v1346, %v1803
        %v1807 = vmax.f32 %v1805, 0.0
        %v1808 = vmax.f32 %v1806, 0.0
        %v1809 = vpack.c.bf16 %v1808, %v1807
        %1810 = vmatpush.bf16.msra.mxu0 0
        %1811 = vmatpush.bf16.msra.mxu0 0
        %1812 = vmatpush.bf16.msra.mxu0 0
        %1813 = vmatpush.bf16.msra.mxu0 0
        %1814 = vmatpush.bf16.msra.mxu0 0
        %1815 = vmatpush.bf16.msra.mxu0 0
        %1816 = vmatpush.bf16.msra.mxu0 0
        %1817 = vmatpush.bf16.msra.mxu0 %v1809
        %1818 = vmatmul.bf16.gmra.mxu0 %v1360
        %v1819 = vpop.f32.mrf.mxu0
        %v1820 = vadd.f32 0.0, %v1819
        %v1821 = vpop.f32.mrf.mxu0
        %1822 = vdwg.mxu0
        %v1823 = vpack.c.bf16 %v1820, %v1820
        %v1825 = vsel %vm1385, %v1823, 0
        %1827 = vmatpush.bf16.msra.mxu0 0
        %1828 = vmatpush.bf16.msra.mxu0 0
        %1829 = vmatpush.bf16.msra.mxu0 0
        %1830 = vmatpush.bf16.msra.mxu0 0
        %1831 = vmatpush.bf16.msra.mxu0 0
        %1832 = vmatpush.bf16.msra.mxu0 0
        %1833 = vmatpush.bf16.msra.mxu0 0
        %1834 = vmatpush.bf16.msra.mxu0 %v1825
        %1835 = vmatmul.bf16.gmra.mxu0 %v1383
        %v1836 = vpop.f32.mrf.mxu0
        %v1837 = vadd.f32 0.0, %v1836
        %v1838 = vpop.f32.mrf.mxu0
        %v1839 = vadd.f32 0.0, %v1838
        %1840 = vdwg.mxu0
        %v1841 = vrot.slane %v1807, 1
        %v1842 = vrot.slane %v1808, 1
        %v1843 = vsel %vm1405, %v1841, %v1842
        %v1844 = vsel %vm1405, %v1842, %v1841
        %v1845 = vrot.slane %v1807, 7
        %v1846 = vrot.slane %v1808, 7
        %v1847 = vsel %vm1410, %v1845, %v1846
        %v1848 = vsel %vm1410, %v1846, %v1845
        %v1849 = vsel %vm1355, %v1843, %v1848
        %v1850 = vsel %vm1356, %v1844, %v1847
        %v1851 = vsub.f32 %v1837, %v1849
        %v1852 = vsub.f32 %v1839, %v1850
        %v1853 = vand.u32 %v1432, 4294901760
        %1854 = vmatpush.msra.mxu0 %v1853
        %v1855 = vand.u32 %v1431, 4294901760
        %1856 = vmatpush.msra.mxu0 %v1855
        %v1857 = vand.u32 %v1430, 4294901760
        %1858 = vmatpush.msra.mxu0 %v1857
        %v1859 = vand.u32 %v1429, 4294901760
        %1860 = vmatpush.msra.mxu0 %v1859
        %v1861 = vand.u32 %v1428, 4294901760
        %1862 = vmatpush.msra.mxu0 %v1861
        %v1863 = vand.u32 %v1427, 4294901760
        %1864 = vmatpush.msra.mxu0 %v1863
        %v1865 = vand.u32 %v1426, 4294901760
        %1866 = vmatpush.msra.mxu0 %v1865
        %v1867 = vand.u32 %v1425, 4294901760
        %1868 = vmatpush.msra.mxu0 %v1867
        %v1869 = vand.u32 %v1424, 4294901760
        %1870 = vmatpush.msra.mxu0 %v1869
        %v1871 = vand.u32 %v1423, 4294901760
        %1872 = vmatpush.msra.mxu0 %v1871
        %v1873 = vand.u32 %v1422, 4294901760
        %1874 = vmatpush.msra.mxu0 %v1873
        %v1875 = vand.u32 %v1421, 4294901760
        %1876 = vmatpush.msra.mxu0 %v1875
        %v1877 = vand.u32 %v1420, 4294901760
        %1878 = vmatpush.msra.mxu0 %v1877
        %v1879 = vand.u32 %v1419, 4294901760
        %1880 = vmatpush.msra.mxu0 %v1879
        %v1881 = vand.u32 %v1418, 4294901760
        %1882 = vmatpush.msra.mxu0 %v1881
        %v1883 = vand.u32 %v1417, 4294901760
        %1884 = vmatpush.msra.mxu0 %v1883
        %v1885 = vand.u32 %v1851, 4294901760
        %v1886 = vsub.f32 %v1851, %v1885
        %v1887 = vand.u32 %v1886, 4294901760
        %v1888 = vsub.f32 %v1886, %v1887
        %v1889 = vand.u32 %v1888, 4294901760
        %1890 = vmatmul.f32.gmra.mxu0 %v1889
        %v1891 = vpop.f32.mrf.mxu0
        %v1892 = vadd.f32 0.0, %v1891
        %v1893 = vand.u32 %v1852, 4294901760
        %v1894 = vsub.f32 %v1852, %v1893
        %v1895 = vand.u32 %v1894, 4294901760
        %v1896 = vsub.f32 %v1894, %v1895
        %v1897 = vand.u32 %v1896, 4294901760
        %1898 = vmatmul.f32.gmra.mxu0 %v1897
        %v1899 = vpop.f32.mrf.mxu0
        %v1900 = vadd.f32 0.0, %v1899
        %1901 = vdwg.mxu0
        %v1902 = vand.u32 %v1432, 4294901760
        %v1903 = vsub.f32 %v1432, %v1902
        %v1904 = vand.u32 %v1903, 4294901760
        %v1905 = vsub.f32 %v1903, %v1904
        %v1906 = vand.u32 %v1905, 4294901760
        %1907 = vmatpush.msra.mxu0 %v1906
        %v1908 = vand.u32 %v1431, 4294901760
        %v1909 = vsub.f32 %v1431, %v1908
        %v1910 = vand.u32 %v1909, 4294901760
        %v1911 = vsub.f32 %v1909, %v1910
        %v1912 = vand.u32 %v1911, 4294901760
        %1913 = vmatpush.msra.mxu0 %v1912
        %v1914 = vand.u32 %v1430, 4294901760
        %v1915 = vsub.f32 %v1430, %v1914
        %v1916 = vand.u32 %v1915, 4294901760
        %v1917 = vsub.f32 %v1915, %v1916
        %v1918 = vand.u32 %v1917, 4294901760
        %1919 = vmatpush.msra.mxu0 %v1918
        %v1920 = vand.u32 %v1429, 4294901760
        %v1921 = vsub.f32 %v1429, %v1920
        %v1922 = vand.u32 %v1921, 4294901760
        %v1923 = vsub.f32 %v1921, %v1922
        %v1924 = vand.u32 %v1923, 4294901760
        %1925 = vmatpush.msra.mxu0 %v1924
        %v1926 = vand.u32 %v1428, 4294901760
        %v1927 = vsub.f32 %v1428, %v1926
        %v1928 = vand.u32 %v1927, 4294901760
        %v1929 = vsub.f32 %v1927, %v1928
        %v1930 = vand.u32 %v1929, 4294901760
        %1931 = vmatpush.msra.mxu0 %v1930
        %v1932 = vand.u32 %v1427, 4294901760
        %v1933 = vsub.f32 %v1427, %v1932
        %v1934 = vand.u32 %v1933, 4294901760
        %v1935 = vsub.f32 %v1933, %v1934
        %v1936 = vand.u32 %v1935, 4294901760
        %1937 = vmatpush.msra.mxu0 %v1936
        %v1938 = vand.u32 %v1426, 4294901760
        %v1939 = vsub.f32 %v1426, %v1938
        %v1940 = vand.u32 %v1939, 4294901760
        %v1941 = vsub.f32 %v1939, %v1940
        %v1942 = vand.u32 %v1941, 4294901760
        %1943 = vmatpush.msra.mxu0 %v1942
        %v1944 = vand.u32 %v1425, 4294901760
        %v1945 = vsub.f32 %v1425, %v1944
        %v1946 = vand.u32 %v1945, 4294901760
        %v1947 = vsub.f32 %v1945, %v1946
        %v1948 = vand.u32 %v1947, 4294901760
        %1949 = vmatpush.msra.mxu0 %v1948
        %v1950 = vand.u32 %v1424, 4294901760
        %v1951 = vsub.f32 %v1424, %v1950
        %v1952 = vand.u32 %v1951, 4294901760
        %v1953 = vsub.f32 %v1951, %v1952
        %v1954 = vand.u32 %v1953, 4294901760
        %1955 = vmatpush.msra.mxu0 %v1954
        %v1956 = vand.u32 %v1423, 4294901760
        %v1957 = vsub.f32 %v1423, %v1956
        %v1958 = vand.u32 %v1957, 4294901760
        %v1959 = vsub.f32 %v1957, %v1958
        %v1960 = vand.u32 %v1959, 4294901760
        %1961 = vmatpush.msra.mxu0 %v1960
        %v1962 = vand.u32 %v1422, 4294901760
        %v1963 = vsub.f32 %v1422, %v1962
        %v1964 = vand.u32 %v1963, 4294901760
        %v1965 = vsub.f32 %v1963, %v1964
        %v1966 = vand.u32 %v1965, 4294901760
        %1967 = vmatpush.msra.mxu0 %v1966
        %v1968 = vand.u32 %v1421, 4294901760
        %v1969 = vsub.f32 %v1421, %v1968
        %v1970 = vand.u32 %v1969, 4294901760
        %v1971 = vsub.f32 %v1969, %v1970
        %v1972 = vand.u32 %v1971, 4294901760
        %1973 = vmatpush.msra.mxu0 %v1972
        %v1974 = vand.u32 %v1420, 4294901760
        %v1975 = vsub.f32 %v1420, %v1974
        %v1976 = vand.u32 %v1975, 4294901760
        %v1977 = vsub.f32 %v1975, %v1976
        %v1978 = vand.u32 %v1977, 4294901760
        %1979 = vmatpush.msra.mxu0 %v1978
        %v1980 = vand.u32 %v1419, 4294901760
        %v1981 = vsub.f32 %v1419, %v1980
        %v1982 = vand.u32 %v1981, 4294901760
        %v1983 = vsub.f32 %v1981, %v1982
        %v1984 = vand.u32 %v1983, 4294901760
        %1985 = vmatpush.msra.mxu0 %v1984
        %v1986 = vand.u32 %v1418, 4294901760
        %v1987 = vsub.f32 %v1418, %v1986
        %v1988 = vand.u32 %v1987, 4294901760
        %v1989 = vsub.f32 %v1987, %v1988
        %v1990 = vand.u32 %v1989, 4294901760
        %1991 = vmatpush.msra.mxu0 %v1990
        %v1992 = vand.u32 %v1417, 4294901760
        %v1993 = vsub.f32 %v1417, %v1992
        %v1994 = vand.u32 %v1993, 4294901760
        %v1995 = vsub.f32 %v1993, %v1994
        %v1996 = vand.u32 %v1995, 4294901760
        %1997 = vmatpush.msra.mxu0 %v1996
        %v1998 = vand.u32 %v1851, 4294901760
        %1999 = vmatmul.f32.gmra.mxu0 %v1998
        %v2000 = vpop.f32.mrf.mxu0
        %v2001 = vadd.f32 %v1892, %v2000
        %v2002 = vand.u32 %v1852, 4294901760
        %2003 = vmatmul.f32.gmra.mxu0 %v2002
        %v2004 = vpop.f32.mrf.mxu0
        %v2005 = vadd.f32 %v1900, %v2004
        %2006 = vdwg.mxu0
        %v2007 = vand.u32 %v1432, 4294901760
        %v2008 = vsub.f32 %v1432, %v2007
        %2009 = vmatpush.msra.mxu0 %v2008
        %v2010 = vand.u32 %v1431, 4294901760
        %v2011 = vsub.f32 %v1431, %v2010
        %2012 = vmatpush.msra.mxu0 %v2011
        %v2013 = vand.u32 %v1430, 4294901760
        %v2014 = vsub.f32 %v1430, %v2013
        %2015 = vmatpush.msra.mxu0 %v2014
        %v2016 = vand.u32 %v1429, 4294901760
        %v2017 = vsub.f32 %v1429, %v2016
        %2018 = vmatpush.msra.mxu0 %v2017
        %v2019 = vand.u32 %v1428, 4294901760
        %v2020 = vsub.f32 %v1428, %v2019
        %2021 = vmatpush.msra.mxu0 %v2020
        %v2022 = vand.u32 %v1427, 4294901760
        %v2023 = vsub.f32 %v1427, %v2022
        %2024 = vmatpush.msra.mxu0 %v2023
        %v2025 = vand.u32 %v1426, 4294901760
        %v2026 = vsub.f32 %v1426, %v2025
        %2027 = vmatpush.msra.mxu0 %v2026
        %v2028 = vand.u32 %v1425, 4294901760
        %v2029 = vsub.f32 %v1425, %v2028
        %2030 = vmatpush.msra.mxu0 %v2029
        %v2031 = vand.u32 %v1424, 4294901760
        %v2032 = vsub.f32 %v1424, %v2031
        %2033 = vmatpush.msra.mxu0 %v2032
        %v2034 = vand.u32 %v1423, 4294901760
        %v2035 = vsub.f32 %v1423, %v2034
        %2036 = vmatpush.msra.mxu0 %v2035
        %v2037 = vand.u32 %v1422, 4294901760
        %v2038 = vsub.f32 %v1422, %v2037
        %2039 = vmatpush.msra.mxu0 %v2038
        %v2040 = vand.u32 %v1421, 4294901760
        %v2041 = vsub.f32 %v1421, %v2040
        %2042 = vmatpush.msra.mxu0 %v2041
        %v2043 = vand.u32 %v1420, 4294901760
        %v2044 = vsub.f32 %v1420, %v2043
        %2045 = vmatpush.msra.mxu0 %v2044
        %v2046 = vand.u32 %v1419, 4294901760
        %v2047 = vsub.f32 %v1419, %v2046
        %2048 = vmatpush.msra.mxu0 %v2047
        %v2049 = vand.u32 %v1418, 4294901760
        %v2050 = vsub.f32 %v1418, %v2049
        %2051 = vmatpush.msra.mxu0 %v2050
        %v2052 = vand.u32 %v1417, 4294901760
        %v2053 = vsub.f32 %v1417, %v2052
        %2054 = vmatpush.msra.mxu0 %v2053
        %v2055 = vand.u32 %v1851, 4294901760
        %v2056 = vsub.f32 %v1851, %v2055
        %2057 = vmatmul.f32.gmra.mxu0 %v2056
        %v2058 = vpop.f32.mrf.mxu0
        %v2059 = vadd.f32 %v2001, %v2058
        %v2060 = vand.u32 %v1852, 4294901760
        %v2061 = vsub.f32 %v1852, %v2060
        %2062 = vmatmul.f32.gmra.mxu0 %v2061
        %v2063 = vpop.f32.mrf.mxu0
        %v2064 = vadd.f32 %v2005, %v2063
        %2065 = vdwg.mxu0
        %v2066 = vand.u32 %v1432, 4294901760
        %2067 = vmatpush.msra.mxu0 %v2066
        %v2068 = vand.u32 %v1431, 4294901760
        %2069 = vmatpush.msra.mxu0 %v2068
        %v2070 = vand.u32 %v1430, 4294901760
        %2071 = vmatpush.msra.mxu0 %v2070
        %v2072 = vand.u32 %v1429, 4294901760
        %2073 = vmatpush.msra.mxu0 %v2072
        %v2074 = vand.u32 %v1428, 4294901760
        %2075 = vmatpush.msra.mxu0 %v2074
        %v2076 = vand.u32 %v1427, 4294901760
        %2077 = vmatpush.msra.mxu0 %v2076
        %v2078 = vand.u32 %v1426, 4294901760
        %2079 = vmatpush.msra.mxu0 %v2078
        %v2080 = vand.u32 %v1425, 4294901760
        %2081 = vmatpush.msra.mxu0 %v2080
        %v2082 = vand.u32 %v1424, 4294901760
        %2083 = vmatpush.msra.mxu0 %v2082
        %v2084 = vand.u32 %v1423, 4294901760
        %2085 = vmatpush.msra.mxu0 %v2084
        %v2086 = vand.u32 %v1422, 4294901760
        %2087 = vmatpush.msra.mxu0 %v2086
        %v2088 = vand.u32 %v1421, 4294901760
        %2089 = vmatpush.msra.mxu0 %v2088
        %v2090 = vand.u32 %v1420, 4294901760
        %2091 = vmatpush.msra.mxu0 %v2090
        %v2092 = vand.u32 %v1419, 4294901760
        %2093 = vmatpush.msra.mxu0 %v2092
        %v2094 = vand.u32 %v1418, 4294901760
        %2095 = vmatpush.msra.mxu0 %v2094
        %v2096 = vand.u32 %v1417, 4294901760
        %2097 = vmatpush.msra.mxu0 %v2096
        %v2098 = vand.u32 %v1851, 4294901760
        %v2099 = vsub.f32 %v1851, %v2098
        %v2100 = vand.u32 %v2099, 4294901760
        %2101 = vmatmul.f32.gmra.mxu0 %v2100
        %v2102 = vpop.f32.mrf.mxu0
        %v2103 = vadd.f32 %v2059, %v2102
        %v2104 = vand.u32 %v1852, 4294901760
        %v2105 = vsub.f32 %v1852, %v2104
        %v2106 = vand.u32 %v2105, 4294901760
        %2107 = vmatmul.f32.gmra.mxu0 %v2106
        %v2108 = vpop.f32.mrf.mxu0
        %v2109 = vadd.f32 %v2064, %v2108
        %2110 = vdwg.mxu0
        %v2111 = vand.u32 %v1432, 4294901760
        %v2112 = vsub.f32 %v1432, %v2111
        %v2113 = vand.u32 %v2112, 4294901760
        %2114 = vmatpush.msra.mxu0 %v2113
        %v2115 = vand.u32 %v1431, 4294901760
        %v2116 = vsub.f32 %v1431, %v2115
        %v2117 = vand.u32 %v2116, 4294901760
        %2118 = vmatpush.msra.mxu0 %v2117
        %v2119 = vand.u32 %v1430, 4294901760
        %v2120 = vsub.f32 %v1430, %v2119
        %v2121 = vand.u32 %v2120, 4294901760
        %2122 = vmatpush.msra.mxu0 %v2121
        %v2123 = vand.u32 %v1429, 4294901760
        %v2124 = vsub.f32 %v1429, %v2123
        %v2125 = vand.u32 %v2124, 4294901760
        %2126 = vmatpush.msra.mxu0 %v2125
        %v2127 = vand.u32 %v1428, 4294901760
        %v2128 = vsub.f32 %v1428, %v2127
        %v2129 = vand.u32 %v2128, 4294901760
        %2130 = vmatpush.msra.mxu0 %v2129
        %v2131 = vand.u32 %v1427, 4294901760
        %v2132 = vsub.f32 %v1427, %v2131
        %v2133 = vand.u32 %v2132, 4294901760
        %2134 = vmatpush.msra.mxu0 %v2133
        %v2135 = vand.u32 %v1426, 4294901760
        %v2136 = vsub.f32 %v1426, %v2135
        %v2137 = vand.u32 %v2136, 4294901760
        %2138 = vmatpush.msra.mxu0 %v2137
        %v2139 = vand.u32 %v1425, 4294901760
        %v2140 = vsub.f32 %v1425, %v2139
        %v2141 = vand.u32 %v2140, 4294901760
        %2142 = vmatpush.msra.mxu0 %v2141
        %v2143 = vand.u32 %v1424, 4294901760
        %v2144 = vsub.f32 %v1424, %v2143
        %v2145 = vand.u32 %v2144, 4294901760
        %2146 = vmatpush.msra.mxu0 %v2145
        %v2147 = vand.u32 %v1423, 4294901760
        %v2148 = vsub.f32 %v1423, %v2147
        %v2149 = vand.u32 %v2148, 4294901760
        %2150 = vmatpush.msra.mxu0 %v2149
        %v2151 = vand.u32 %v1422, 4294901760
        %v2152 = vsub.f32 %v1422, %v2151
        %v2153 = vand.u32 %v2152, 4294901760
        %2154 = vmatpush.msra.mxu0 %v2153
        %v2155 = vand.u32 %v1421, 4294901760
        %v2156 = vsub.f32 %v1421, %v2155
        %v2157 = vand.u32 %v2156, 4294901760
        %2158 = vmatpush.msra.mxu0 %v2157
        %v2159 = vand.u32 %v1420, 4294901760
        %v2160 = vsub.f32 %v1420, %v2159
        %v2161 = vand.u32 %v2160, 4294901760
        %2162 = vmatpush.msra.mxu0 %v2161
        %v2163 = vand.u32 %v1419, 4294901760
        %v2164 = vsub.f32 %v1419, %v2163
        %v2165 = vand.u32 %v2164, 4294901760
        %2166 = vmatpush.msra.mxu0 %v2165
        %v2167 = vand.u32 %v1418, 4294901760
        %v2168 = vsub.f32 %v1418, %v2167
        %v2169 = vand.u32 %v2168, 4294901760
        %2170 = vmatpush.msra.mxu0 %v2169
        %v2171 = vand.u32 %v1417, 4294901760
        %v2172 = vsub.f32 %v1417, %v2171
        %v2173 = vand.u32 %v2172, 4294901760
        %2174 = vmatpush.msra.mxu0 %v2173
        %v2175 = vand.u32 %v1851, 4294901760
        %2176 = vmatmul.f32.gmra.mxu0 %v2175
        %v2177 = vpop.f32.mrf.mxu0
        %v2178 = vadd.f32 %v2103, %v2177
        %v2179 = vand.u32 %v1852, 4294901760
        %2180 = vmatmul.f32.gmra.mxu0 %v2179
        %v2181 = vpop.f32.mrf.mxu0
        %v2182 = vadd.f32 %v2109, %v2181
        %2183 = vdwg.mxu0
        %v2184 = vand.u32 %v1432, 4294901760
        %2185 = vmatpush.msra.mxu0 %v2184
        %v2186 = vand.u32 %v1431, 4294901760
        %2187 = vmatpush.msra.mxu0 %v2186
        %v2188 = vand.u32 %v1430, 4294901760
        %2189 = vmatpush.msra.mxu0 %v2188
        %v2190 = vand.u32 %v1429, 4294901760
        %2191 = vmatpush.msra.mxu0 %v2190
        %v2192 = vand.u32 %v1428, 4294901760
        %2193 = vmatpush.msra.mxu0 %v2192
        %v2194 = vand.u32 %v1427, 4294901760
        %2195 = vmatpush.msra.mxu0 %v2194
        %v2196 = vand.u32 %v1426, 4294901760
        %2197 = vmatpush.msra.mxu0 %v2196
        %v2198 = vand.u32 %v1425, 4294901760
        %2199 = vmatpush.msra.mxu0 %v2198
        %v2200 = vand.u32 %v1424, 4294901760
        %2201 = vmatpush.msra.mxu0 %v2200
        %v2202 = vand.u32 %v1423, 4294901760
        %2203 = vmatpush.msra.mxu0 %v2202
        %v2204 = vand.u32 %v1422, 4294901760
        %2205 = vmatpush.msra.mxu0 %v2204
        %v2206 = vand.u32 %v1421, 4294901760
        %2207 = vmatpush.msra.mxu0 %v2206
        %v2208 = vand.u32 %v1420, 4294901760
        %2209 = vmatpush.msra.mxu0 %v2208
        %v2210 = vand.u32 %v1419, 4294901760
        %2211 = vmatpush.msra.mxu0 %v2210
        %v2212 = vand.u32 %v1418, 4294901760
        %2213 = vmatpush.msra.mxu0 %v2212
        %v2214 = vand.u32 %v1417, 4294901760
        %2215 = vmatpush.msra.mxu0 %v2214
        %v2216 = vand.u32 %v1851, 4294901760
        %2217 = vmatmul.f32.gmra.mxu0 %v2216
        %v2218 = vpop.f32.mrf.mxu0
        %v2219 = vadd.f32 %v2178, %v2218
        %v2220 = vand.u32 %v1852, 4294901760
        %2221 = vmatmul.f32.gmra.mxu0 %v2220
        %v2222 = vpop.f32.mrf.mxu0
        %v2223 = vadd.f32 %v2182, %v2222
        %2224 = vdwg.mxu0
        %v2225 = vadd.f32 %v1342, %v2219
        %v2226 = vadd.f32 %v1346, %v2223
        %v2227 = vmax.f32 %v2225, 0.0
        %v2228 = vmax.f32 %v2226, 0.0
        %v2229 = vpack.c.bf16 %v2228, %v2227
        %2230 = vmatpush.bf16.msra.mxu0 0
        %2231 = vmatpush.bf16.msra.mxu0 0
        %2232 = vmatpush.bf16.msra.mxu0 0
        %2233 = vmatpush.bf16.msra.mxu0 0
        %2234 = vmatpush.bf16.msra.mxu0 0
        %2235 = vmatpush.bf16.msra.mxu0 0
        %2236 = vmatpush.bf16.msra.mxu0 0
        %2237 = vmatpush.bf16.msra.mxu0 %v2229
        %2238 = vmatmul.bf16.gmra.mxu0 %v1360
        %v2239 = vpop.f32.mrf.mxu0
        %v2240 = vadd.f32 0.0, %v2239
        %v2241 = vpop.f32.mrf.mxu0
        %2242 = vdwg.mxu0
        %v2243 = vld [vmem:[#allocation13] sm:$0xff]
        %v2244 = vld [vmem:[#allocation13 + $0x8] sm:$0xff]
        %v2245 = vld [vmem:[#allocation13 + $0x10] sm:$0xff]
        %v2246 = vld [vmem:[#allocation13 + $0x18] sm:$0xff]
        %v2247 = vld [vmem:[#allocation13 + $0x20] sm:$0xff]
        %v2248 = vld [vmem:[#allocation13 + $0x28] sm:$0xff]
        %v2249 = vld [vmem:[#allocation13 + $0x30] sm:$0xff]
        %v2250 = vld [vmem:[#allocation13 + $0x38] sm:$0xff]
        %v2251 = vld [vmem:[#allocation13 + $0x40] sm:$0xff]
        %v2252 = vld [vmem:[#allocation13 + $0x48] sm:$0xff]
        %v2253 = vld [vmem:[#allocation13 + $0x50] sm:$0xff]
        %v2254 = vld [vmem:[#allocation13 + $0x58] sm:$0xff]
        %v2255 = vld [vmem:[#allocation13 + $0x60] sm:$0xff]
        %v2256 = vld [vmem:[#allocation13 + $0x68] sm:$0xff]
        %v2257 = vld [vmem:[#allocation13 + $0x70] sm:$0xff]
        %v2258 = vld [vmem:[#allocation13 + $0x78] sm:$0xff]
        %v2259 = vld [vmem:[#allocation13 + $0x80] sm:$0xff]
        %v2260 = vld [vmem:[#allocation13 + $0x88] sm:$0xff]
        %v2261 = vld [vmem:[#allocation13 + $0x90] sm:$0xff]
        %v2262 = vld [vmem:[#allocation13 + $0x98] sm:$0xff]
        %v2263 = vld [vmem:[#allocation13 + $0xa0] sm:$0xff]
        %v2264 = vld [vmem:[#allocation13 + $0xa8] sm:$0xff]
        %v2265 = vld [vmem:[#allocation13 + $0xb0] sm:$0xff]
        %v2266 = vld [vmem:[#allocation13 + $0xb8] sm:$0xff]
        %v2267 = vld [vmem:[#allocation13 + $0xc0] sm:$0xff]
        %v2268 = vld [vmem:[#allocation13 + $0xc8] sm:$0xff]
        %v2269 = vld [vmem:[#allocation13 + $0xd0] sm:$0xff]
        %v2270 = vld [vmem:[#allocation13 + $0xd8] sm:$0xff]
        %v2271 = vld [vmem:[#allocation13 + $0xe0] sm:$0xff]
        %v2272 = vld [vmem:[#allocation13 + $0xe8] sm:$0xff]
        %v2273 = vld [vmem:[#allocation13 + $0xf0] sm:$0xff]
        %v2274 = vld [vmem:[#allocation13 + $0xf8] sm:$0xff]
        %v2275 = vld [vmem:[#allocation14] sm:$0xff]
        %v2276 = vld [vmem:[#allocation14 + $0x8] sm:$0xff]
        %v2277 = vld [vmem:[#allocation14 + $0x10] sm:$0xff]
        %v2278 = vld [vmem:[#allocation14 + $0x18] sm:$0xff]
        %v2279 = vld [vmem:[#allocation14 + $0x20] sm:$0xff]
        %v2280 = vld [vmem:[#allocation14 + $0x28] sm:$0xff]
        %v2281 = vld [vmem:[#allocation14 + $0x30] sm:$0xff]
        %v2282 = vld [vmem:[#allocation14 + $0x38] sm:$0xff]
        %v2283 = vld [vmem:[#allocation14 + $0x40] sm:$0xff]
        %v2284 = vld [vmem:[#allocation14 + $0x48] sm:$0xff]
        %v2285 = vld [vmem:[#allocation14 + $0x50] sm:$0xff]
        %v2286 = vld [vmem:[#allocation14 + $0x58] sm:$0xff]
        %v2287 = vld [vmem:[#allocation14 + $0x60] sm:$0xff]
        %v2288 = vld [vmem:[#allocation14 + $0x68] sm:$0xff]
        %v2289 = vld [vmem:[#allocation14 + $0x70] sm:$0xff]
        %v2290 = vld [vmem:[#allocation14 + $0x78] sm:$0xff]
        %v2291 = vand.u32 %v2290, 4294901760
        %2292 = vmatpush.msra.mxu0 %v2291
        %v2293 = vand.u32 %v2289, 4294901760
        %2294 = vmatpush.msra.mxu0 %v2293
        %v2295 = vand.u32 %v2288, 4294901760
        %2296 = vmatpush.msra.mxu0 %v2295
        %v2297 = vand.u32 %v2287, 4294901760
        %2298 = vmatpush.msra.mxu0 %v2297
        %v2299 = vand.u32 %v2286, 4294901760
        %2300 = vmatpush.msra.mxu0 %v2299
        %v2301 = vand.u32 %v2285, 4294901760
        %2302 = vmatpush.msra.mxu0 %v2301
        %v2303 = vand.u32 %v2284, 4294901760
        %2304 = vmatpush.msra.mxu0 %v2303
        %v2305 = vand.u32 %v2283, 4294901760
        %2306 = vmatpush.msra.mxu0 %v2305
        %v2307 = vand.u32 %v2282, 4294901760
        %2308 = vmatpush.msra.mxu0 %v2307
        %v2309 = vand.u32 %v2281, 4294901760
        %2310 = vmatpush.msra.mxu0 %v2309
        %v2311 = vand.u32 %v2280, 4294901760
        %2312 = vmatpush.msra.mxu0 %v2311
        %v2313 = vand.u32 %v2279, 4294901760
        %2314 = vmatpush.msra.mxu0 %v2313
        %v2315 = vand.u32 %v2278, 4294901760
        %2316 = vmatpush.msra.mxu0 %v2315
        %v2317 = vand.u32 %v2277, 4294901760
        %2318 = vmatpush.msra.mxu0 %v2317
        %v2319 = vand.u32 %v2276, 4294901760
        %2320 = vmatpush.msra.mxu0 %v2319
        %v2321 = vand.u32 %v2275, 4294901760
        %2322 = vmatpush.msra.mxu0 %v2321
        %v2323 = vand.u32 %v2240, 4294901760
        %v2324 = vsub.f32 %v2240, %v2323
        %v2325 = vand.u32 %v2324, 4294901760
        %v2326 = vsub.f32 %v2324, %v2325
        %v2327 = vand.u32 %v2326, 4294901760
        %2328 = vmatmul.f32.gmra.mxu0 %v2327
        %v2329 = vpop.f32.mrf.mxu0
        %v2330 = vadd.f32 0.0, %v2329
        %2331 = vdwg.mxu0
        %v2332 = vand.u32 %v2290, 4294901760
        %v2333 = vsub.f32 %v2290, %v2332
        %v2334 = vand.u32 %v2333, 4294901760
        %v2335 = vsub.f32 %v2333, %v2334
        %v2336 = vand.u32 %v2335, 4294901760
        %2337 = vmatpush.msra.mxu0 %v2336
        %v2338 = vand.u32 %v2289, 4294901760
        %v2339 = vsub.f32 %v2289, %v2338
        %v2340 = vand.u32 %v2339, 4294901760
        %v2341 = vsub.f32 %v2339, %v2340
        %v2342 = vand.u32 %v2341, 4294901760
        %2343 = vmatpush.msra.mxu0 %v2342
        %v2344 = vand.u32 %v2288, 4294901760
        %v2345 = vsub.f32 %v2288, %v2344
        %v2346 = vand.u32 %v2345, 4294901760
        %v2347 = vsub.f32 %v2345, %v2346
        %v2348 = vand.u32 %v2347, 4294901760
        %2349 = vmatpush.msra.mxu0 %v2348
        %v2350 = vand.u32 %v2287, 4294901760
        %v2351 = vsub.f32 %v2287, %v2350
        %v2352 = vand.u32 %v2351, 4294901760
        %v2353 = vsub.f32 %v2351, %v2352
        %v2354 = vand.u32 %v2353, 4294901760
        %2355 = vmatpush.msra.mxu0 %v2354
        %v2356 = vand.u32 %v2286, 4294901760
        %v2357 = vsub.f32 %v2286, %v2356
        %v2358 = vand.u32 %v2357, 4294901760
        %v2359 = vsub.f32 %v2357, %v2358
        %v2360 = vand.u32 %v2359, 4294901760
        %2361 = vmatpush.msra.mxu0 %v2360
        %v2362 = vand.u32 %v2285, 4294901760
        %v2363 = vsub.f32 %v2285, %v2362
        %v2364 = vand.u32 %v2363, 4294901760
        %v2365 = vsub.f32 %v2363, %v2364
        %v2366 = vand.u32 %v2365, 4294901760
        %2367 = vmatpush.msra.mxu0 %v2366
        %v2368 = vand.u32 %v2284, 4294901760
        %v2369 = vsub.f32 %v2284, %v2368
        %v2370 = vand.u32 %v2369, 4294901760
        %v2371 = vsub.f32 %v2369, %v2370
        %v2372 = vand.u32 %v2371, 4294901760
        %2373 = vmatpush.msra.mxu0 %v2372
        %v2374 = vand.u32 %v2283, 4294901760
        %v2375 = vsub.f32 %v2283, %v2374
        %v2376 = vand.u32 %v2375, 4294901760
        %v2377 = vsub.f32 %v2375, %v2376
        %v2378 = vand.u32 %v2377, 4294901760
        %2379 = vmatpush.msra.mxu0 %v2378
        %v2380 = vand.u32 %v2282, 4294901760
        %v2381 = vsub.f32 %v2282, %v2380
        %v2382 = vand.u32 %v2381, 4294901760
        %v2383 = vsub.f32 %v2381, %v2382
        %v2384 = vand.u32 %v2383, 4294901760
        %2385 = vmatpush.msra.mxu0 %v2384
        %v2386 = vand.u32 %v2281, 4294901760
        %v2387 = vsub.f32 %v2281, %v2386
        %v2388 = vand.u32 %v2387, 4294901760
        %v2389 = vsub.f32 %v2387, %v2388
        %v2390 = vand.u32 %v2389, 4294901760
        %2391 = vmatpush.msra.mxu0 %v2390
        %v2392 = vand.u32 %v2280, 4294901760
        %v2393 = vsub.f32 %v2280, %v2392
        %v2394 = vand.u32 %v2393, 4294901760
        %v2395 = vsub.f32 %v2393, %v2394
        %v2396 = vand.u32 %v2395, 4294901760
        %2397 = vmatpush.msra.mxu0 %v2396
        %v2398 = vand.u32 %v2279, 4294901760
        %v2399 = vsub.f32 %v2279, %v2398
        %v2400 = vand.u32 %v2399, 4294901760
        %v2401 = vsub.f32 %v2399, %v2400
        %v2402 = vand.u32 %v2401, 4294901760
        %2403 = vmatpush.msra.mxu0 %v2402
        %v2404 = vand.u32 %v2278, 4294901760
        %v2405 = vsub.f32 %v2278, %v2404
        %v2406 = vand.u32 %v2405, 4294901760
        %v2407 = vsub.f32 %v2405, %v2406
        %v2408 = vand.u32 %v2407, 4294901760
        %2409 = vmatpush.msra.mxu0 %v2408
        %v2410 = vand.u32 %v2277, 4294901760
        %v2411 = vsub.f32 %v2277, %v2410
        %v2412 = vand.u32 %v2411, 4294901760
        %v2413 = vsub.f32 %v2411, %v2412
        %v2414 = vand.u32 %v2413, 4294901760
        %2415 = vmatpush.msra.mxu0 %v2414
        %v2416 = vand.u32 %v2276, 4294901760
        %v2417 = vsub.f32 %v2276, %v2416
        %v2418 = vand.u32 %v2417, 4294901760
        %v2419 = vsub.f32 %v2417, %v2418
        %v2420 = vand.u32 %v2419, 4294901760
        %2421 = vmatpush.msra.mxu0 %v2420
        %v2422 = vand.u32 %v2275, 4294901760
        %v2423 = vsub.f32 %v2275, %v2422
        %v2424 = vand.u32 %v2423, 4294901760
        %v2425 = vsub.f32 %v2423, %v2424
        %v2426 = vand.u32 %v2425, 4294901760
        %2427 = vmatpush.msra.mxu0 %v2426
        %v2428 = vand.u32 %v2240, 4294901760
        %2429 = vmatmul.f32.gmra.mxu0 %v2428
        %v2430 = vpop.f32.mrf.mxu0
        %v2431 = vadd.f32 %v2330, %v2430
        %2432 = vdwg.mxu0
        %v2433 = vand.u32 %v2290, 4294901760
        %v2434 = vsub.f32 %v2290, %v2433
        %2435 = vmatpush.msra.mxu0 %v2434
        %v2436 = vand.u32 %v2289, 4294901760
        %v2437 = vsub.f32 %v2289, %v2436
        %2438 = vmatpush.msra.mxu0 %v2437
        %v2439 = vand.u32 %v2288, 4294901760
        %v2440 = vsub.f32 %v2288, %v2439
        %2441 = vmatpush.msra.mxu0 %v2440
        %v2442 = vand.u32 %v2287, 4294901760
        %v2443 = vsub.f32 %v2287, %v2442
        %2444 = vmatpush.msra.mxu0 %v2443
        %v2445 = vand.u32 %v2286, 4294901760
        %v2446 = vsub.f32 %v2286, %v2445
        %2447 = vmatpush.msra.mxu0 %v2446
        %v2448 = vand.u32 %v2285, 4294901760
        %v2449 = vsub.f32 %v2285, %v2448
        %2450 = vmatpush.msra.mxu0 %v2449
        %v2451 = vand.u32 %v2284, 4294901760
        %v2452 = vsub.f32 %v2284, %v2451
        %2453 = vmatpush.msra.mxu0 %v2452
        %v2454 = vand.u32 %v2283, 4294901760
        %v2455 = vsub.f32 %v2283, %v2454
        %2456 = vmatpush.msra.mxu0 %v2455
        %v2457 = vand.u32 %v2282, 4294901760
        %v2458 = vsub.f32 %v2282, %v2457
        %2459 = vmatpush.msra.mxu0 %v2458
        %v2460 = vand.u32 %v2281, 4294901760
        %v2461 = vsub.f32 %v2281, %v2460
        %2462 = vmatpush.msra.mxu0 %v2461
        %v2463 = vand.u32 %v2280, 4294901760
        %v2464 = vsub.f32 %v2280, %v2463
        %2465 = vmatpush.msra.mxu0 %v2464
        %v2466 = vand.u32 %v2279, 4294901760
        %v2467 = vsub.f32 %v2279, %v2466
        %2468 = vmatpush.msra.mxu0 %v2467
        %v2469 = vand.u32 %v2278, 4294901760
        %v2470 = vsub.f32 %v2278, %v2469
        %2471 = vmatpush.msra.mxu0 %v2470
        %v2472 = vand.u32 %v2277, 4294901760
        %v2473 = vsub.f32 %v2277, %v2472
        %2474 = vmatpush.msra.mxu0 %v2473
        %v2475 = vand.u32 %v2276, 4294901760
        %v2476 = vsub.f32 %v2276, %v2475
        %2477 = vmatpush.msra.mxu0 %v2476
        %v2478 = vand.u32 %v2275, 4294901760
        %v2479 = vsub.f32 %v2275, %v2478
        %2480 = vmatpush.msra.mxu0 %v2479
        %v2481 = vand.u32 %v2240, 4294901760
        %v2482 = vsub.f32 %v2240, %v2481
        %2483 = vmatmul.f32.gmra.mxu0 %v2482
        %v2484 = vpop.f32.mrf.mxu0
        %v2485 = vadd.f32 %v2431, %v2484
        %2486 = vdwg.mxu0
        %v2487 = vand.u32 %v2290, 4294901760
        %2488 = vmatpush.msra.mxu0 %v2487
        %v2489 = vand.u32 %v2289, 4294901760
        %2490 = vmatpush.msra.mxu0 %v2489
        %v2491 = vand.u32 %v2288, 4294901760
        %2492 = vmatpush.msra.mxu0 %v2491
        %v2493 = vand.u32 %v2287, 4294901760
        %2494 = vmatpush.msra.mxu0 %v2493
        %v2495 = vand.u32 %v2286, 4294901760
        %2496 = vmatpush.msra.mxu0 %v2495
        %v2497 = vand.u32 %v2285, 4294901760
        %2498 = vmatpush.msra.mxu0 %v2497
        %v2499 = vand.u32 %v2284, 4294901760
        %2500 = vmatpush.msra.mxu0 %v2499
        %v2501 = vand.u32 %v2283, 4294901760
        %2502 = vmatpush.msra.mxu0 %v2501
        %v2503 = vand.u32 %v2282, 4294901760
        %2504 = vmatpush.msra.mxu0 %v2503
        %v2505 = vand.u32 %v2281, 4294901760
        %2506 = vmatpush.msra.mxu0 %v2505
        %v2507 = vand.u32 %v2280, 4294901760
        %2508 = vmatpush.msra.mxu0 %v2507
        %v2509 = vand.u32 %v2279, 4294901760
        %2510 = vmatpush.msra.mxu0 %v2509
        %v2511 = vand.u32 %v2278, 4294901760
        %2512 = vmatpush.msra.mxu0 %v2511
        %v2513 = vand.u32 %v2277, 4294901760
        %2514 = vmatpush.msra.mxu0 %v2513
        %v2515 = vand.u32 %v2276, 4294901760
        %2516 = vmatpush.msra.mxu0 %v2515
        %v2517 = vand.u32 %v2275, 4294901760
        %2518 = vmatpush.msra.mxu0 %v2517
        %v2519 = vand.u32 %v2240, 4294901760
        %v2520 = vsub.f32 %v2240, %v2519
        %v2521 = vand.u32 %v2520, 4294901760
        %2522 = vmatmul.f32.gmra.mxu0 %v2521
        %v2523 = vpop.f32.mrf.mxu0
        %v2524 = vadd.f32 %v2485, %v2523
        %2525 = vdwg.mxu0
        %v2526 = vand.u32 %v2290, 4294901760
        %v2527 = vsub.f32 %v2290, %v2526
        %v2528 = vand.u32 %v2527, 4294901760
        %2529 = vmatpush.msra.mxu0 %v2528
        %v2530 = vand.u32 %v2289, 4294901760
        %v2531 = vsub.f32 %v2289, %v2530
        %v2532 = vand.u32 %v2531, 4294901760
        %2533 = vmatpush.msra.mxu0 %v2532
        %v2534 = vand.u32 %v2288, 4294901760
        %v2535 = vsub.f32 %v2288, %v2534
        %v2536 = vand.u32 %v2535, 4294901760
        %2537 = vmatpush.msra.mxu0 %v2536
        %v2538 = vand.u32 %v2287, 4294901760
        %v2539 = vsub.f32 %v2287, %v2538
        %v2540 = vand.u32 %v2539, 4294901760
        %2541 = vmatpush.msra.mxu0 %v2540
        %v2542 = vand.u32 %v2286, 4294901760
        %v2543 = vsub.f32 %v2286, %v2542
        %v2544 = vand.u32 %v2543, 4294901760
        %2545 = vmatpush.msra.mxu0 %v2544
        %v2546 = vand.u32 %v2285, 4294901760
        %v2547 = vsub.f32 %v2285, %v2546
        %v2548 = vand.u32 %v2547, 4294901760
        %2549 = vmatpush.msra.mxu0 %v2548
        %v2550 = vand.u32 %v2284, 4294901760
        %v2551 = vsub.f32 %v2284, %v2550
        %v2552 = vand.u32 %v2551, 4294901760
        %2553 = vmatpush.msra.mxu0 %v2552
        %v2554 = vand.u32 %v2283, 4294901760
        %v2555 = vsub.f32 %v2283, %v2554
        %v2556 = vand.u32 %v2555, 4294901760
        %2557 = vmatpush.msra.mxu0 %v2556
        %v2558 = vand.u32 %v2282, 4294901760
        %v2559 = vsub.f32 %v2282, %v2558
        %v2560 = vand.u32 %v2559, 4294901760
        %2561 = vmatpush.msra.mxu0 %v2560
        %v2562 = vand.u32 %v2281, 4294901760
        %v2563 = vsub.f32 %v2281, %v2562
        %v2564 = vand.u32 %v2563, 4294901760
        %2565 = vmatpush.msra.mxu0 %v2564
        %v2566 = vand.u32 %v2280, 4294901760
        %v2567 = vsub.f32 %v2280, %v2566
        %v2568 = vand.u32 %v2567, 4294901760
        %2569 = vmatpush.msra.mxu0 %v2568
        %v2570 = vand.u32 %v2279, 4294901760
        %v2571 = vsub.f32 %v2279, %v2570
        %v2572 = vand.u32 %v2571, 4294901760
        %2573 = vmatpush.msra.mxu0 %v2572
        %v2574 = vand.u32 %v2278, 4294901760
        %v2575 = vsub.f32 %v2278, %v2574
        %v2576 = vand.u32 %v2575, 4294901760
        %2577 = vmatpush.msra.mxu0 %v2576
        %v2578 = vand.u32 %v2277, 4294901760
        %v2579 = vsub.f32 %v2277, %v2578
        %v2580 = vand.u32 %v2579, 4294901760
        %2581 = vmatpush.msra.mxu0 %v2580
        %v2582 = vand.u32 %v2276, 4294901760
        %v2583 = vsub.f32 %v2276, %v2582
        %v2584 = vand.u32 %v2583, 4294901760
        %2585 = vmatpush.msra.mxu0 %v2584
        %v2586 = vand.u32 %v2275, 4294901760
        %v2587 = vsub.f32 %v2275, %v2586
        %v2588 = vand.u32 %v2587, 4294901760
        %2589 = vmatpush.msra.mxu0 %v2588
        %v2590 = vand.u32 %v2240, 4294901760
        %2591 = vmatmul.f32.gmra.mxu0 %v2590
        %v2592 = vpop.f32.mrf.mxu0
        %v2593 = vadd.f32 %v2524, %v2592
        %2594 = vdwg.mxu0
        %v2595 = vand.u32 %v2290, 4294901760
        %2596 = vmatpush.msra.mxu0 %v2595
        %v2597 = vand.u32 %v2289, 4294901760
        %2598 = vmatpush.msra.mxu0 %v2597
        %v2599 = vand.u32 %v2288, 4294901760
        %2600 = vmatpush.msra.mxu0 %v2599
        %v2601 = vand.u32 %v2287, 4294901760
        %2602 = vmatpush.msra.mxu0 %v2601
        %v2603 = vand.u32 %v2286, 4294901760
        %2604 = vmatpush.msra.mxu0 %v2603
        %v2605 = vand.u32 %v2285, 4294901760
        %2606 = vmatpush.msra.mxu0 %v2605
        %v2607 = vand.u32 %v2284, 4294901760
        %2608 = vmatpush.msra.mxu0 %v2607
        %v2609 = vand.u32 %v2283, 4294901760
        %2610 = vmatpush.msra.mxu0 %v2609
        %v2611 = vand.u32 %v2282, 4294901760
        %2612 = vmatpush.msra.mxu0 %v2611
        %v2613 = vand.u32 %v2281, 4294901760
        %2614 = vmatpush.msra.mxu0 %v2613
        %v2615 = vand.u32 %v2280, 4294901760
        %2616 = vmatpush.msra.mxu0 %v2615
        %v2617 = vand.u32 %v2279, 4294901760
        %2618 = vmatpush.msra.mxu0 %v2617
        %v2619 = vand.u32 %v2278, 4294901760
        %2620 = vmatpush.msra.mxu0 %v2619
        %v2621 = vand.u32 %v2277, 4294901760
        %2622 = vmatpush.msra.mxu0 %v2621
        %v2623 = vand.u32 %v2276, 4294901760
        %2624 = vmatpush.msra.mxu0 %v2623
        %v2625 = vand.u32 %v2275, 4294901760
        %2626 = vmatpush.msra.mxu0 %v2625
        %v2627 = vand.u32 %v2240, 4294901760
        %2628 = vmatmul.f32.gmra.mxu0 %v2627
        %v2629 = vpop.f32.mrf.mxu0
        %v2630 = vadd.f32 %v2593, %v2629
        %2631 = vdwg.mxu0
        %v2632 = vand.u32 %v2258, 4294901760
        %2633 = vmatpush.msra.mxu0 %v2632
        %v2634 = vand.u32 %v2257, 4294901760
        %2635 = vmatpush.msra.mxu0 %v2634
        %v2636 = vand.u32 %v2256, 4294901760
        %2637 = vmatpush.msra.mxu0 %v2636
        %v2638 = vand.u32 %v2255, 4294901760
        %2639 = vmatpush.msra.mxu0 %v2638
        %v2640 = vand.u32 %v2254, 4294901760
        %2641 = vmatpush.msra.mxu0 %v2640
        %v2642 = vand.u32 %v2253, 4294901760
        %2643 = vmatpush.msra.mxu0 %v2642
        %v2644 = vand.u32 %v2252, 4294901760
        %2645 = vmatpush.msra.mxu0 %v2644
        %v2646 = vand.u32 %v2251, 4294901760
        %2647 = vmatpush.msra.mxu0 %v2646
        %v2648 = vand.u32 %v2250, 4294901760
        %2649 = vmatpush.msra.mxu0 %v2648
        %v2650 = vand.u32 %v2249, 4294901760
        %2651 = vmatpush.msra.mxu0 %v2650
        %v2652 = vand.u32 %v2248, 4294901760
        %2653 = vmatpush.msra.mxu0 %v2652
        %v2654 = vand.u32 %v2247, 4294901760
        %2655 = vmatpush.msra.mxu0 %v2654
        %v2656 = vand.u32 %v2246, 4294901760
        %2657 = vmatpush.msra.mxu0 %v2656
        %v2658 = vand.u32 %v2245, 4294901760
        %2659 = vmatpush.msra.mxu0 %v2658
        %v2660 = vand.u32 %v2244, 4294901760
        %2661 = vmatpush.msra.mxu0 %v2660
        %v2662 = vand.u32 %v2243, 4294901760
        %2663 = vmatpush.msra.mxu0 %v2662
        %v2664 = vand.u32 %v562, 4294901760
        %v2665 = vsub.f32 %v562, %v2664
        %v2666 = vand.u32 %v2665, 4294901760
        %v2667 = vsub.f32 %v2665, %v2666
        %v2668 = vand.u32 %v2667, 4294901760
        %2669 = vmatmul.f32.gmra.mxu0 %v2668
        %v2670 = vpop.f32.mrf.mxu0
        %v2671 = vadd.f32 %v2630, %v2670
        %2672 = vdwg.mxu0
        %v2673 = vand.u32 %v2258, 4294901760
        %v2674 = vsub.f32 %v2258, %v2673
        %v2675 = vand.u32 %v2674, 4294901760
        %v2676 = vsub.f32 %v2674, %v2675
        %v2677 = vand.u32 %v2676, 4294901760
        %2678 = vmatpush.msra.mxu0 %v2677
        %v2679 = vand.u32 %v2257, 4294901760
        %v2680 = vsub.f32 %v2257, %v2679
        %v2681 = vand.u32 %v2680, 4294901760
        %v2682 = vsub.f32 %v2680, %v2681
        %v2683 = vand.u32 %v2682, 4294901760
        %2684 = vmatpush.msra.mxu0 %v2683
        %v2685 = vand.u32 %v2256, 4294901760
        %v2686 = vsub.f32 %v2256, %v2685
        %v2687 = vand.u32 %v2686, 4294901760
        %v2688 = vsub.f32 %v2686, %v2687
        %v2689 = vand.u32 %v2688, 4294901760
        %2690 = vmatpush.msra.mxu0 %v2689
        %v2691 = vand.u32 %v2255, 4294901760
        %v2692 = vsub.f32 %v2255, %v2691
        %v2693 = vand.u32 %v2692, 4294901760
        %v2694 = vsub.f32 %v2692, %v2693
        %v2695 = vand.u32 %v2694, 4294901760
        %2696 = vmatpush.msra.mxu0 %v2695
        %v2697 = vand.u32 %v2254, 4294901760
        %v2698 = vsub.f32 %v2254, %v2697
        %v2699 = vand.u32 %v2698, 4294901760
        %v2700 = vsub.f32 %v2698, %v2699
        %v2701 = vand.u32 %v2700, 4294901760
        %2702 = vmatpush.msra.mxu0 %v2701
        %v2703 = vand.u32 %v2253, 4294901760
        %v2704 = vsub.f32 %v2253, %v2703
        %v2705 = vand.u32 %v2704, 4294901760
        %v2706 = vsub.f32 %v2704, %v2705
        %v2707 = vand.u32 %v2706, 4294901760
        %2708 = vmatpush.msra.mxu0 %v2707
        %v2709 = vand.u32 %v2252, 4294901760
        %v2710 = vsub.f32 %v2252, %v2709
        %v2711 = vand.u32 %v2710, 4294901760
        %v2712 = vsub.f32 %v2710, %v2711
        %v2713 = vand.u32 %v2712, 4294901760
        %2714 = vmatpush.msra.mxu0 %v2713
        %v2715 = vand.u32 %v2251, 4294901760
        %v2716 = vsub.f32 %v2251, %v2715
        %v2717 = vand.u32 %v2716, 4294901760
        %v2718 = vsub.f32 %v2716, %v2717
        %v2719 = vand.u32 %v2718, 4294901760
        %2720 = vmatpush.msra.mxu0 %v2719
        %v2721 = vand.u32 %v2250, 4294901760
        %v2722 = vsub.f32 %v2250, %v2721
        %v2723 = vand.u32 %v2722, 4294901760
        %v2724 = vsub.f32 %v2722, %v2723
        %v2725 = vand.u32 %v2724, 4294901760
        %2726 = vmatpush.msra.mxu0 %v2725
        %v2727 = vand.u32 %v2249, 4294901760
        %v2728 = vsub.f32 %v2249, %v2727
        %v2729 = vand.u32 %v2728, 4294901760
        %v2730 = vsub.f32 %v2728, %v2729
        %v2731 = vand.u32 %v2730, 4294901760
        %2732 = vmatpush.msra.mxu0 %v2731
        %v2733 = vand.u32 %v2248, 4294901760
        %v2734 = vsub.f32 %v2248, %v2733
        %v2735 = vand.u32 %v2734, 4294901760
        %v2736 = vsub.f32 %v2734, %v2735
        %v2737 = vand.u32 %v2736, 4294901760
        %2738 = vmatpush.msra.mxu0 %v2737
        %v2739 = vand.u32 %v2247, 4294901760
        %v2740 = vsub.f32 %v2247, %v2739
        %v2741 = vand.u32 %v2740, 4294901760
        %v2742 = vsub.f32 %v2740, %v2741
        %v2743 = vand.u32 %v2742, 4294901760
        %2744 = vmatpush.msra.mxu0 %v2743
        %v2745 = vand.u32 %v2246, 4294901760
        %v2746 = vsub.f32 %v2246, %v2745
        %v2747 = vand.u32 %v2746, 4294901760
        %v2748 = vsub.f32 %v2746, %v2747
        %v2749 = vand.u32 %v2748, 4294901760
        %2750 = vmatpush.msra.mxu0 %v2749
        %v2751 = vand.u32 %v2245, 4294901760
        %v2752 = vsub.f32 %v2245, %v2751
        %v2753 = vand.u32 %v2752, 4294901760
        %v2754 = vsub.f32 %v2752, %v2753
        %v2755 = vand.u32 %v2754, 4294901760
        %2756 = vmatpush.msra.mxu0 %v2755
        %v2757 = vand.u32 %v2244, 4294901760
        %v2758 = vsub.f32 %v2244, %v2757
        %v2759 = vand.u32 %v2758, 4294901760
        %v2760 = vsub.f32 %v2758, %v2759
        %v2761 = vand.u32 %v2760, 4294901760
        %2762 = vmatpush.msra.mxu0 %v2761
        %v2763 = vand.u32 %v2243, 4294901760
        %v2764 = vsub.f32 %v2243, %v2763
        %v2765 = vand.u32 %v2764, 4294901760
        %v2766 = vsub.f32 %v2764, %v2765
        %v2767 = vand.u32 %v2766, 4294901760
        %2768 = vmatpush.msra.mxu0 %v2767
        %v2769 = vand.u32 %v562, 4294901760
        %2770 = vmatmul.f32.gmra.mxu0 %v2769
        %v2771 = vpop.f32.mrf.mxu0
        %v2772 = vadd.f32 %v2671, %v2771
        %2773 = vdwg.mxu0
        %v2774 = vand.u32 %v2258, 4294901760
        %v2775 = vsub.f32 %v2258, %v2774
        %2776 = vmatpush.msra.mxu0 %v2775
        %v2777 = vand.u32 %v2257, 4294901760
        %v2778 = vsub.f32 %v2257, %v2777
        %2779 = vmatpush.msra.mxu0 %v2778
        %v2780 = vand.u32 %v2256, 4294901760
        %v2781 = vsub.f32 %v2256, %v2780
        %2782 = vmatpush.msra.mxu0 %v2781
        %v2783 = vand.u32 %v2255, 4294901760
        %v2784 = vsub.f32 %v2255, %v2783
        %2785 = vmatpush.msra.mxu0 %v2784
        %v2786 = vand.u32 %v2254, 4294901760
        %v2787 = vsub.f32 %v2254, %v2786
        %2788 = vmatpush.msra.mxu0 %v2787
        %v2789 = vand.u32 %v2253, 4294901760
        %v2790 = vsub.f32 %v2253, %v2789
        %2791 = vmatpush.msra.mxu0 %v2790
        %v2792 = vand.u32 %v2252, 4294901760
        %v2793 = vsub.f32 %v2252, %v2792
        %2794 = vmatpush.msra.mxu0 %v2793
        %v2795 = vand.u32 %v2251, 4294901760
        %v2796 = vsub.f32 %v2251, %v2795
        %2797 = vmatpush.msra.mxu0 %v2796
        %v2798 = vand.u32 %v2250, 4294901760
        %v2799 = vsub.f32 %v2250, %v2798
        %2800 = vmatpush.msra.mxu0 %v2799
        %v2801 = vand.u32 %v2249, 4294901760
        %v2802 = vsub.f32 %v2249, %v2801
        %2803 = vmatpush.msra.mxu0 %v2802
        %v2804 = vand.u32 %v2248, 4294901760
        %v2805 = vsub.f32 %v2248, %v2804
        %2806 = vmatpush.msra.mxu0 %v2805
        %v2807 = vand.u32 %v2247, 4294901760
        %v2808 = vsub.f32 %v2247, %v2807
        %2809 = vmatpush.msra.mxu0 %v2808
        %v2810 = vand.u32 %v2246, 4294901760
        %v2811 = vsub.f32 %v2246, %v2810
        %2812 = vmatpush.msra.mxu0 %v2811
        %v2813 = vand.u32 %v2245, 4294901760
        %v2814 = vsub.f32 %v2245, %v2813
        %2815 = vmatpush.msra.mxu0 %v2814
        %v2816 = vand.u32 %v2244, 4294901760
        %v2817 = vsub.f32 %v2244, %v2816
        %2818 = vmatpush.msra.mxu0 %v2817
        %v2819 = vand.u32 %v2243, 4294901760
        %v2820 = vsub.f32 %v2243, %v2819
        %2821 = vmatpush.msra.mxu0 %v2820
        %v2822 = vand.u32 %v562, 4294901760
        %v2823 = vsub.f32 %v562, %v2822
        %2824 = vmatmul.f32.gmra.mxu0 %v2823
        %v2825 = vpop.f32.mrf.mxu0
        %v2826 = vadd.f32 %v2772, %v2825
        %2827 = vdwg.mxu0
        %v2828 = vand.u32 %v2258, 4294901760
        %2829 = vmatpush.msra.mxu0 %v2828
        %v2830 = vand.u32 %v2257, 4294901760
        %2831 = vmatpush.msra.mxu0 %v2830
        %v2832 = vand.u32 %v2256, 4294901760
        %2833 = vmatpush.msra.mxu0 %v2832
        %v2834 = vand.u32 %v2255, 4294901760
        %2835 = vmatpush.msra.mxu0 %v2834
        %v2836 = vand.u32 %v2254, 4294901760
        %2837 = vmatpush.msra.mxu0 %v2836
        %v2838 = vand.u32 %v2253, 4294901760
        %2839 = vmatpush.msra.mxu0 %v2838
        %v2840 = vand.u32 %v2252, 4294901760
        %2841 = vmatpush.msra.mxu0 %v2840
        %v2842 = vand.u32 %v2251, 4294901760
        %2843 = vmatpush.msra.mxu0 %v2842
        %v2844 = vand.u32 %v2250, 4294901760
        %2845 = vmatpush.msra.mxu0 %v2844
        %v2846 = vand.u32 %v2249, 4294901760
        %2847 = vmatpush.msra.mxu0 %v2846
        %v2848 = vand.u32 %v2248, 4294901760
        %2849 = vmatpush.msra.mxu0 %v2848
        %v2850 = vand.u32 %v2247, 4294901760
        %2851 = vmatpush.msra.mxu0 %v2850
        %v2852 = vand.u32 %v2246, 4294901760
        %2853 = vmatpush.msra.mxu0 %v2852
        %v2854 = vand.u32 %v2245, 4294901760
        %2855 = vmatpush.msra.mxu0 %v2854
        %v2856 = vand.u32 %v2244, 4294901760
        %2857 = vmatpush.msra.mxu0 %v2856
        %v2858 = vand.u32 %v2243, 4294901760
        %2859 = vmatpush.msra.mxu0 %v2858
        %v2860 = vand.u32 %v562, 4294901760
        %v2861 = vsub.f32 %v562, %v2860
        %v2862 = vand.u32 %v2861, 4294901760
        %2863 = vmatmul.f32.gmra.mxu0 %v2862
        %v2864 = vpop.f32.mrf.mxu0
        %v2865 = vadd.f32 %v2826, %v2864
        %2866 = vdwg.mxu0
        %v2867 = vand.u32 %v2258, 4294901760
        %v2868 = vsub.f32 %v2258, %v2867
        %v2869 = vand.u32 %v2868, 4294901760
        %2870 = vmatpush.msra.mxu0 %v2869
        %v2871 = vand.u32 %v2257, 4294901760
        %v2872 = vsub.f32 %v2257, %v2871
        %v2873 = vand.u32 %v2872, 4294901760
        %2874 = vmatpush.msra.mxu0 %v2873
        %v2875 = vand.u32 %v2256, 4294901760
        %v2876 = vsub.f32 %v2256, %v2875
        %v2877 = vand.u32 %v2876, 4294901760
        %2878 = vmatpush.msra.mxu0 %v2877
        %v2879 = vand.u32 %v2255, 4294901760
        %v2880 = vsub.f32 %v2255, %v2879
        %v2881 = vand.u32 %v2880, 4294901760
        %2882 = vmatpush.msra.mxu0 %v2881
        %v2883 = vand.u32 %v2254, 4294901760
        %v2884 = vsub.f32 %v2254, %v2883
        %v2885 = vand.u32 %v2884, 4294901760
        %2886 = vmatpush.msra.mxu0 %v2885
        %v2887 = vand.u32 %v2253, 4294901760
        %v2888 = vsub.f32 %v2253, %v2887
        %v2889 = vand.u32 %v2888, 4294901760
        %2890 = vmatpush.msra.mxu0 %v2889
        %v2891 = vand.u32 %v2252, 4294901760
        %v2892 = vsub.f32 %v2252, %v2891
        %v2893 = vand.u32 %v2892, 4294901760
        %2894 = vmatpush.msra.mxu0 %v2893
        %v2895 = vand.u32 %v2251, 4294901760
        %v2896 = vsub.f32 %v2251, %v2895
        %v2897 = vand.u32 %v2896, 4294901760
        %2898 = vmatpush.msra.mxu0 %v2897
        %v2899 = vand.u32 %v2250, 4294901760
        %v2900 = vsub.f32 %v2250, %v2899
        %v2901 = vand.u32 %v2900, 4294901760
        %2902 = vmatpush.msra.mxu0 %v2901
        %v2903 = vand.u32 %v2249, 4294901760
        %v2904 = vsub.f32 %v2249, %v2903
        %v2905 = vand.u32 %v2904, 4294901760
        %2906 = vmatpush.msra.mxu0 %v2905
        %v2907 = vand.u32 %v2248, 4294901760
        %v2908 = vsub.f32 %v2248, %v2907
        %v2909 = vand.u32 %v2908, 4294901760
        %2910 = vmatpush.msra.mxu0 %v2909
        %v2911 = vand.u32 %v2247, 4294901760
        %v2912 = vsub.f32 %v2247, %v2911
        %v2913 = vand.u32 %v2912, 4294901760
        %2914 = vmatpush.msra.mxu0 %v2913
        %v2915 = vand.u32 %v2246, 4294901760
        %v2916 = vsub.f32 %v2246, %v2915
        %v2917 = vand.u32 %v2916, 4294901760
        %2918 = vmatpush.msra.mxu0 %v2917
        %v2919 = vand.u32 %v2245, 4294901760
        %v2920 = vsub.f32 %v2245, %v2919
        %v2921 = vand.u32 %v2920, 4294901760
        %2922 = vmatpush.msra.mxu0 %v2921
        %v2923 = vand.u32 %v2244, 4294901760
        %v2924 = vsub.f32 %v2244, %v2923
        %v2925 = vand.u32 %v2924, 4294901760
        %2926 = vmatpush.msra.mxu0 %v2925
        %v2927 = vand.u32 %v2243, 4294901760
        %v2928 = vsub.f32 %v2243, %v2927
        %v2929 = vand.u32 %v2928, 4294901760
        %2930 = vmatpush.msra.mxu0 %v2929
        %v2931 = vand.u32 %v562, 4294901760
        %2932 = vmatmul.f32.gmra.mxu0 %v2931
        %v2933 = vpop.f32.mrf.mxu0
        %v2934 = vadd.f32 %v2865, %v2933
        %2935 = vdwg.mxu0
        %v2936 = vand.u32 %v2258, 4294901760
        %2937 = vmatpush.msra.mxu0 %v2936
        %v2938 = vand.u32 %v2257, 4294901760
        %2939 = vmatpush.msra.mxu0 %v2938
        %v2940 = vand.u32 %v2256, 4294901760
        %2941 = vmatpush.msra.mxu0 %v2940
        %v2942 = vand.u32 %v2255, 4294901760
        %2943 = vmatpush.msra.mxu0 %v2942
        %v2944 = vand.u32 %v2254, 4294901760
        %2945 = vmatpush.msra.mxu0 %v2944
        %v2946 = vand.u32 %v2253, 4294901760
        %2947 = vmatpush.msra.mxu0 %v2946
        %v2948 = vand.u32 %v2252, 4294901760
        %2949 = vmatpush.msra.mxu0 %v2948
        %v2950 = vand.u32 %v2251, 4294901760
        %2951 = vmatpush.msra.mxu0 %v2950
        %v2952 = vand.u32 %v2250, 4294901760
        %2953 = vmatpush.msra.mxu0 %v2952
        %v2954 = vand.u32 %v2249, 4294901760
        %2955 = vmatpush.msra.mxu0 %v2954
        %v2956 = vand.u32 %v2248, 4294901760
        %2957 = vmatpush.msra.mxu0 %v2956
        %v2958 = vand.u32 %v2247, 4294901760
        %2959 = vmatpush.msra.mxu0 %v2958
        %v2960 = vand.u32 %v2246, 4294901760
        %2961 = vmatpush.msra.mxu0 %v2960
        %v2962 = vand.u32 %v2245, 4294901760
        %2963 = vmatpush.msra.mxu0 %v2962
        %v2964 = vand.u32 %v2244, 4294901760
        %2965 = vmatpush.msra.mxu0 %v2964
        %v2966 = vand.u32 %v2243, 4294901760
        %2967 = vmatpush.msra.mxu0 %v2966
        %v2968 = vand.u32 %v562, 4294901760
        %2969 = vmatmul.f32.gmra.mxu0 %v2968
        %v2970 = vpop.f32.mrf.mxu0
        %v2971 = vadd.f32 %v2934, %v2970
        %2972 = vdwg.mxu0
        %v2973 = vand.u32 %v2274, 4294901760
        %2974 = vmatpush.msra.mxu0 %v2973
        %v2975 = vand.u32 %v2273, 4294901760
        %2976 = vmatpush.msra.mxu0 %v2975
        %v2977 = vand.u32 %v2272, 4294901760
        %2978 = vmatpush.msra.mxu0 %v2977
        %v2979 = vand.u32 %v2271, 4294901760
        %2980 = vmatpush.msra.mxu0 %v2979
        %v2981 = vand.u32 %v2270, 4294901760
        %2982 = vmatpush.msra.mxu0 %v2981
        %v2983 = vand.u32 %v2269, 4294901760
        %2984 = vmatpush.msra.mxu0 %v2983
        %v2985 = vand.u32 %v2268, 4294901760
        %2986 = vmatpush.msra.mxu0 %v2985
        %v2987 = vand.u32 %v2267, 4294901760
        %2988 = vmatpush.msra.mxu0 %v2987
        %v2989 = vand.u32 %v2266, 4294901760
        %2990 = vmatpush.msra.mxu0 %v2989
        %v2991 = vand.u32 %v2265, 4294901760
        %2992 = vmatpush.msra.mxu0 %v2991
        %v2993 = vand.u32 %v2264, 4294901760
        %2994 = vmatpush.msra.mxu0 %v2993
        %v2995 = vand.u32 %v2263, 4294901760
        %2996 = vmatpush.msra.mxu0 %v2995
        %v2997 = vand.u32 %v2262, 4294901760
        %2998 = vmatpush.msra.mxu0 %v2997
        %v2999 = vand.u32 %v2261, 4294901760
        %3000 = vmatpush.msra.mxu0 %v2999
        %v3001 = vand.u32 %v2260, 4294901760
        %3002 = vmatpush.msra.mxu0 %v3001
        %v3003 = vand.u32 %v2259, 4294901760
        %3004 = vmatpush.msra.mxu0 %v3003
        %v3005 = vand.u32 %v563, 4294901760
        %v3006 = vsub.f32 %v563, %v3005
        %v3007 = vand.u32 %v3006, 4294901760
        %v3008 = vsub.f32 %v3006, %v3007
        %v3009 = vand.u32 %v3008, 4294901760
        %3010 = vmatmul.f32.gmra.mxu0 %v3009
        %v3011 = vpop.f32.mrf.mxu0
        %v3012 = vadd.f32 %v2971, %v3011
        %3013 = vdwg.mxu0
        %v3014 = vand.u32 %v2274, 4294901760
        %v3015 = vsub.f32 %v2274, %v3014
        %v3016 = vand.u32 %v3015, 4294901760
        %v3017 = vsub.f32 %v3015, %v3016
        %v3018 = vand.u32 %v3017, 4294901760
        %3019 = vmatpush.msra.mxu0 %v3018
        %v3020 = vand.u32 %v2273, 4294901760
        %v3021 = vsub.f32 %v2273, %v3020
        %v3022 = vand.u32 %v3021, 4294901760
        %v3023 = vsub.f32 %v3021, %v3022
        %v3024 = vand.u32 %v3023, 4294901760
        %3025 = vmatpush.msra.mxu0 %v3024
        %v3026 = vand.u32 %v2272, 4294901760
        %v3027 = vsub.f32 %v2272, %v3026
        %v3028 = vand.u32 %v3027, 4294901760
        %v3029 = vsub.f32 %v3027, %v3028
        %v3030 = vand.u32 %v3029, 4294901760
        %3031 = vmatpush.msra.mxu0 %v3030
        %v3032 = vand.u32 %v2271, 4294901760
        %v3033 = vsub.f32 %v2271, %v3032
        %v3034 = vand.u32 %v3033, 4294901760
        %v3035 = vsub.f32 %v3033, %v3034
        %v3036 = vand.u32 %v3035, 4294901760
        %3037 = vmatpush.msra.mxu0 %v3036
        %v3038 = vand.u32 %v2270, 4294901760
        %v3039 = vsub.f32 %v2270, %v3038
        %v3040 = vand.u32 %v3039, 4294901760
        %v3041 = vsub.f32 %v3039, %v3040
        %v3042 = vand.u32 %v3041, 4294901760
        %3043 = vmatpush.msra.mxu0 %v3042
        %v3044 = vand.u32 %v2269, 4294901760
        %v3045 = vsub.f32 %v2269, %v3044
        %v3046 = vand.u32 %v3045, 4294901760
        %v3047 = vsub.f32 %v3045, %v3046
        %v3048 = vand.u32 %v3047, 4294901760
        %3049 = vmatpush.msra.mxu0 %v3048
        %v3050 = vand.u32 %v2268, 4294901760
        %v3051 = vsub.f32 %v2268, %v3050
        %v3052 = vand.u32 %v3051, 4294901760
        %v3053 = vsub.f32 %v3051, %v3052
        %v3054 = vand.u32 %v3053, 4294901760
        %3055 = vmatpush.msra.mxu0 %v3054
        %v3056 = vand.u32 %v2267, 4294901760
        %v3057 = vsub.f32 %v2267, %v3056
        %v3058 = vand.u32 %v3057, 4294901760
        %v3059 = vsub.f32 %v3057, %v3058
        %v3060 = vand.u32 %v3059, 4294901760
        %3061 = vmatpush.msra.mxu0 %v3060
        %v3062 = vand.u32 %v2266, 4294901760
        %v3063 = vsub.f32 %v2266, %v3062
        %v3064 = vand.u32 %v3063, 4294901760
        %v3065 = vsub.f32 %v3063, %v3064
        %v3066 = vand.u32 %v3065, 4294901760
        %3067 = vmatpush.msra.mxu0 %v3066
        %v3068 = vand.u32 %v2265, 4294901760
        %v3069 = vsub.f32 %v2265, %v3068
        %v3070 = vand.u32 %v3069, 4294901760
        %v3071 = vsub.f32 %v3069, %v3070
        %v3072 = vand.u32 %v3071, 4294901760
        %3073 = vmatpush.msra.mxu0 %v3072
        %v3074 = vand.u32 %v2264, 4294901760
        %v3075 = vsub.f32 %v2264, %v3074
        %v3076 = vand.u32 %v3075, 4294901760
        %v3077 = vsub.f32 %v3075, %v3076
        %v3078 = vand.u32 %v3077, 4294901760
        %3079 = vmatpush.msra.mxu0 %v3078
        %v3080 = vand.u32 %v2263, 4294901760
        %v3081 = vsub.f32 %v2263, %v3080
        %v3082 = vand.u32 %v3081, 4294901760
        %v3083 = vsub.f32 %v3081, %v3082
        %v3084 = vand.u32 %v3083, 4294901760
        %3085 = vmatpush.msra.mxu0 %v3084
        %v3086 = vand.u32 %v2262, 4294901760
        %v3087 = vsub.f32 %v2262, %v3086
        %v3088 = vand.u32 %v3087, 4294901760
        %v3089 = vsub.f32 %v3087, %v3088
        %v3090 = vand.u32 %v3089, 4294901760
        %3091 = vmatpush.msra.mxu0 %v3090
        %v3092 = vand.u32 %v2261, 4294901760
        %v3093 = vsub.f32 %v2261, %v3092
        %v3094 = vand.u32 %v3093, 4294901760
        %v3095 = vsub.f32 %v3093, %v3094
        %v3096 = vand.u32 %v3095, 4294901760
        %3097 = vmatpush.msra.mxu0 %v3096
        %v3098 = vand.u32 %v2260, 4294901760
        %v3099 = vsub.f32 %v2260, %v3098
        %v3100 = vand.u32 %v3099, 4294901760
        %v3101 = vsub.f32 %v3099, %v3100
        %v3102 = vand.u32 %v3101, 4294901760
        %3103 = vmatpush.msra.mxu0 %v3102
        %v3104 = vand.u32 %v2259, 4294901760
        %v3105 = vsub.f32 %v2259, %v3104
        %v3106 = vand.u32 %v3105, 4294901760
        %v3107 = vsub.f32 %v3105, %v3106
        %v3108 = vand.u32 %v3107, 4294901760
        %3109 = vmatpush.msra.mxu0 %v3108
        %v3110 = vand.u32 %v563, 4294901760
        %3111 = vmatmul.f32.gmra.mxu0 %v3110
        %v3112 = vpop.f32.mrf.mxu0
        %v3113 = vadd.f32 %v3012, %v3112
        %3114 = vdwg.mxu0
        %v3115 = vand.u32 %v2274, 4294901760
        %v3116 = vsub.f32 %v2274, %v3115
        %3117 = vmatpush.msra.mxu0 %v3116
        %v3118 = vand.u32 %v2273, 4294901760
        %v3119 = vsub.f32 %v2273, %v3118
        %3120 = vmatpush.msra.mxu0 %v3119
        %v3121 = vand.u32 %v2272, 4294901760
        %v3122 = vsub.f32 %v2272, %v3121
        %3123 = vmatpush.msra.mxu0 %v3122
        %v3124 = vand.u32 %v2271, 4294901760
        %v3125 = vsub.f32 %v2271, %v3124
        %3126 = vmatpush.msra.mxu0 %v3125
        %v3127 = vand.u32 %v2270, 4294901760
        %v3128 = vsub.f32 %v2270, %v3127
        %3129 = vmatpush.msra.mxu0 %v3128
        %v3130 = vand.u32 %v2269, 4294901760
        %v3131 = vsub.f32 %v2269, %v3130
        %3132 = vmatpush.msra.mxu0 %v3131
        %v3133 = vand.u32 %v2268, 4294901760
        %v3134 = vsub.f32 %v2268, %v3133
        %3135 = vmatpush.msra.mxu0 %v3134
        %v3136 = vand.u32 %v2267, 4294901760
        %v3137 = vsub.f32 %v2267, %v3136
        %3138 = vmatpush.msra.mxu0 %v3137
        %v3139 = vand.u32 %v2266, 4294901760
        %v3140 = vsub.f32 %v2266, %v3139
        %3141 = vmatpush.msra.mxu0 %v3140
        %v3142 = vand.u32 %v2265, 4294901760
        %v3143 = vsub.f32 %v2265, %v3142
        %3144 = vmatpush.msra.mxu0 %v3143
        %v3145 = vand.u32 %v2264, 4294901760
        %v3146 = vsub.f32 %v2264, %v3145
        %3147 = vmatpush.msra.mxu0 %v3146
        %v3148 = vand.u32 %v2263, 4294901760
        %v3149 = vsub.f32 %v2263, %v3148
        %3150 = vmatpush.msra.mxu0 %v3149
        %v3151 = vand.u32 %v2262, 4294901760
        %v3152 = vsub.f32 %v2262, %v3151
        %3153 = vmatpush.msra.mxu0 %v3152
        %v3154 = vand.u32 %v2261, 4294901760
        %v3155 = vsub.f32 %v2261, %v3154
        %3156 = vmatpush.msra.mxu0 %v3155
        %v3157 = vand.u32 %v2260, 4294901760
        %v3158 = vsub.f32 %v2260, %v3157
        %3159 = vmatpush.msra.mxu0 %v3158
        %v3160 = vand.u32 %v2259, 4294901760
        %v3161 = vsub.f32 %v2259, %v3160
        %3162 = vmatpush.msra.mxu0 %v3161
        %v3163 = vand.u32 %v563, 4294901760
        %v3164 = vsub.f32 %v563, %v3163
        %3165 = vmatmul.f32.gmra.mxu0 %v3164
        %v3166 = vpop.f32.mrf.mxu0
        %v3167 = vadd.f32 %v3113, %v3166
        %3168 = vdwg.mxu0
        %v3169 = vand.u32 %v2274, 4294901760
        %3170 = vmatpush.msra.mxu0 %v3169
        %v3171 = vand.u32 %v2273, 4294901760
        %3172 = vmatpush.msra.mxu0 %v3171
        %v3173 = vand.u32 %v2272, 4294901760
        %3174 = vmatpush.msra.mxu0 %v3173
        %v3175 = vand.u32 %v2271, 4294901760
        %3176 = vmatpush.msra.mxu0 %v3175
        %v3177 = vand.u32 %v2270, 4294901760
        %3178 = vmatpush.msra.mxu0 %v3177
        %v3179 = vand.u32 %v2269, 4294901760
        %3180 = vmatpush.msra.mxu0 %v3179
        %v3181 = vand.u32 %v2268, 4294901760
        %3182 = vmatpush.msra.mxu0 %v3181
        %v3183 = vand.u32 %v2267, 4294901760
        %3184 = vmatpush.msra.mxu0 %v3183
        %v3185 = vand.u32 %v2266, 4294901760
        %3186 = vmatpush.msra.mxu0 %v3185
        %v3187 = vand.u32 %v2265, 4294901760
        %3188 = vmatpush.msra.mxu0 %v3187
        %v3189 = vand.u32 %v2264, 4294901760
        %3190 = vmatpush.msra.mxu0 %v3189
        %v3191 = vand.u32 %v2263, 4294901760
        %3192 = vmatpush.msra.mxu0 %v3191
        %v3193 = vand.u32 %v2262, 4294901760
        %3194 = vmatpush.msra.mxu0 %v3193
        %v3195 = vand.u32 %v2261, 4294901760
        %3196 = vmatpush.msra.mxu0 %v3195
        %v3197 = vand.u32 %v2260, 4294901760
        %3198 = vmatpush.msra.mxu0 %v3197
        %v3199 = vand.u32 %v2259, 4294901760
        %3200 = vmatpush.msra.mxu0 %v3199
        %v3201 = vand.u32 %v563, 4294901760
        %v3202 = vsub.f32 %v563, %v3201
        %v3203 = vand.u32 %v3202, 4294901760
        %3204 = vmatmul.f32.gmra.mxu0 %v3203
        %v3205 = vpop.f32.mrf.mxu0
        %v3206 = vadd.f32 %v3167, %v3205
        %3207 = vdwg.mxu0
        %v3208 = vand.u32 %v2274, 4294901760
        %v3209 = vsub.f32 %v2274, %v3208
        %v3210 = vand.u32 %v3209, 4294901760
        %3211 = vmatpush.msra.mxu0 %v3210
        %v3212 = vand.u32 %v2273, 4294901760
        %v3213 = vsub.f32 %v2273, %v3212
        %v3214 = vand.u32 %v3213, 4294901760
        %3215 = vmatpush.msra.mxu0 %v3214
        %v3216 = vand.u32 %v2272, 4294901760
        %v3217 = vsub.f32 %v2272, %v3216
        %v3218 = vand.u32 %v3217, 4294901760
        %3219 = vmatpush.msra.mxu0 %v3218
        %v3220 = vand.u32 %v2271, 4294901760
        %v3221 = vsub.f32 %v2271, %v3220
        %v3222 = vand.u32 %v3221, 4294901760
        %3223 = vmatpush.msra.mxu0 %v3222
        %v3224 = vand.u32 %v2270, 4294901760
        %v3225 = vsub.f32 %v2270, %v3224
        %v3226 = vand.u32 %v3225, 4294901760
        %3227 = vmatpush.msra.mxu0 %v3226
        %v3228 = vand.u32 %v2269, 4294901760
        %v3229 = vsub.f32 %v2269, %v3228
        %v3230 = vand.u32 %v3229, 4294901760
        %3231 = vmatpush.msra.mxu0 %v3230
        %v3232 = vand.u32 %v2268, 4294901760
        %v3233 = vsub.f32 %v2268, %v3232
        %v3234 = vand.u32 %v3233, 4294901760
        %3235 = vmatpush.msra.mxu0 %v3234
        %v3236 = vand.u32 %v2267, 4294901760
        %v3237 = vsub.f32 %v2267, %v3236
        %v3238 = vand.u32 %v3237, 4294901760
        %3239 = vmatpush.msra.mxu0 %v3238
        %v3240 = vand.u32 %v2266, 4294901760
        %v3241 = vsub.f32 %v2266, %v3240
        %v3242 = vand.u32 %v3241, 4294901760
        %3243 = vmatpush.msra.mxu0 %v3242
        %v3244 = vand.u32 %v2265, 4294901760
        %v3245 = vsub.f32 %v2265, %v3244
        %v3246 = vand.u32 %v3245, 4294901760
        %3247 = vmatpush.msra.mxu0 %v3246
        %v3248 = vand.u32 %v2264, 4294901760
        %v3249 = vsub.f32 %v2264, %v3248
        %v3250 = vand.u32 %v3249, 4294901760
        %3251 = vmatpush.msra.mxu0 %v3250
        %v3252 = vand.u32 %v2263, 4294901760
        %v3253 = vsub.f32 %v2263, %v3252
        %v3254 = vand.u32 %v3253, 4294901760
        %3255 = vmatpush.msra.mxu0 %v3254
        %v3256 = vand.u32 %v2262, 4294901760
        %v3257 = vsub.f32 %v2262, %v3256
        %v3258 = vand.u32 %v3257, 4294901760
        %3259 = vmatpush.msra.mxu0 %v3258
        %v3260 = vand.u32 %v2261, 4294901760
        %v3261 = vsub.f32 %v2261, %v3260
        %v3262 = vand.u32 %v3261, 4294901760
        %3263 = vmatpush.msra.mxu0 %v3262
        %v3264 = vand.u32 %v2260, 4294901760
        %v3265 = vsub.f32 %v2260, %v3264
        %v3266 = vand.u32 %v3265, 4294901760
        %3267 = vmatpush.msra.mxu0 %v3266
        %v3268 = vand.u32 %v2259, 4294901760
        %v3269 = vsub.f32 %v2259, %v3268
        %v3270 = vand.u32 %v3269, 4294901760
        %3271 = vmatpush.msra.mxu0 %v3270
        %v3272 = vand.u32 %v563, 4294901760
        %3273 = vmatmul.f32.gmra.mxu0 %v3272
        %v3274 = vpop.f32.mrf.mxu0
        %v3275 = vadd.f32 %v3206, %v3274
        %3276 = vdwg.mxu0
        %v3277 = vand.u32 %v2274, 4294901760
        %3278 = vmatpush.msra.mxu0 %v3277
        %v3279 = vand.u32 %v2273, 4294901760
        %3280 = vmatpush.msra.mxu0 %v3279
        %v3281 = vand.u32 %v2272, 4294901760
        %3282 = vmatpush.msra.mxu0 %v3281
        %v3283 = vand.u32 %v2271, 4294901760
        %3284 = vmatpush.msra.mxu0 %v3283
        %v3285 = vand.u32 %v2270, 4294901760
        %3286 = vmatpush.msra.mxu0 %v3285
        %v3287 = vand.u32 %v2269, 4294901760
        %3288 = vmatpush.msra.mxu0 %v3287
        %v3289 = vand.u32 %v2268, 4294901760
        %3290 = vmatpush.msra.mxu0 %v3289
        %v3291 = vand.u32 %v2267, 4294901760
        %3292 = vmatpush.msra.mxu0 %v3291
        %v3293 = vand.u32 %v2266, 4294901760
        %3294 = vmatpush.msra.mxu0 %v3293
        %v3295 = vand.u32 %v2265, 4294901760
        %3296 = vmatpush.msra.mxu0 %v3295
        %v3297 = vand.u32 %v2264, 4294901760
        %3298 = vmatpush.msra.mxu0 %v3297
        %v3299 = vand.u32 %v2263, 4294901760
        %3300 = vmatpush.msra.mxu0 %v3299
        %v3301 = vand.u32 %v2262, 4294901760
        %3302 = vmatpush.msra.mxu0 %v3301
        %v3303 = vand.u32 %v2261, 4294901760
        %3304 = vmatpush.msra.mxu0 %v3303
        %v3305 = vand.u32 %v2260, 4294901760
        %3306 = vmatpush.msra.mxu0 %v3305
        %v3307 = vand.u32 %v2259, 4294901760
        %3308 = vmatpush.msra.mxu0 %v3307
        %v3309 = vand.u32 %v563, 4294901760
        %3310 = vmatmul.f32.gmra.mxu0 %v3309
        %v3311 = vpop.f32.mrf.mxu0
        %v3312 = vadd.f32 %v3275, %v3311
        %3313 = vdwg.mxu0
        %v3314 = vld [vmem:[%s11] sm:$0x1]
        %v3316 = vperm.slane %v3314, 0
        %v3318 = vadd.f32 %v3312, %v3316
        %v3319 = vmax.f32 %v3318, 0.0
        %v3321 = vsel %vm1381, %v571, 0
        %3323 = vmatpush.msra.mxu0 0.0
        %3324 = vmatpush.msra.mxu0 0.0
        %3325 = vmatpush.msra.mxu0 0.0
        %3326 = vmatpush.msra.mxu0 0.0
        %3327 = vmatpush.msra.mxu0 0.0
        %3328 = vmatpush.msra.mxu0 0.0
        %3329 = vmatpush.msra.mxu0 0.0
        %3330 = vmatpush.msra.mxu0 0.0
        %3331 = vmatpush.msra.mxu0 0.0
        %3332 = vmatpush.msra.mxu0 0.0
        %3333 = vmatpush.msra.mxu0 0.0
        %3334 = vmatpush.msra.mxu0 0.0
        %3335 = vmatpush.msra.mxu0 0.0
        %3336 = vmatpush.msra.mxu0 0.0
        %3337 = vmatpush.msra.mxu0 0.0
        %v3338 = vand.u32 %v3319, 4294901760
        %3339 = vmatpush.msra.mxu0 %v3338
        %v3340 = vand.u32 %v3321, 4294901760
        %v3341 = vsub.f32 %v3321, %v3340
        %v3342 = vand.u32 %v3341, 4294901760
        %v3343 = vsub.f32 %v3341, %v3342
        %v3344 = vand.u32 %v3343, 4294901760
        %3345 = vmatmul.f32.gmra.mxu0 %v3344
        %v3346 = vpop.f32.mrf.mxu0
        %v3347 = vadd.f32 0.0, %v3346
        %3348 = vdwg.mxu0
        %3349 = vmatpush.msra.mxu0 0.0
        %3350 = vmatpush.msra.mxu0 0.0
        %3351 = vmatpush.msra.mxu0 0.0
        %3352 = vmatpush.msra.mxu0 0.0
        %3353 = vmatpush.msra.mxu0 0.0
        %3354 = vmatpush.msra.mxu0 0.0
        %3355 = vmatpush.msra.mxu0 0.0
        %3356 = vmatpush.msra.mxu0 0.0
        %3357 = vmatpush.msra.mxu0 0.0
        %3358 = vmatpush.msra.mxu0 0.0
        %3359 = vmatpush.msra.mxu0 0.0
        %3360 = vmatpush.msra.mxu0 0.0
        %3361 = vmatpush.msra.mxu0 0.0
        %3362 = vmatpush.msra.mxu0 0.0
        %3363 = vmatpush.msra.mxu0 0.0
        %v3364 = vand.u32 %v3319, 4294901760
        %v3365 = vsub.f32 %v3319, %v3364
        %v3366 = vand.u32 %v3365, 4294901760
        %v3367 = vsub.f32 %v3365, %v3366
        %v3368 = vand.u32 %v3367, 4294901760
        %3369 = vmatpush.msra.mxu0 %v3368
        %v3370 = vand.u32 %v3321, 4294901760
        %3371 = vmatmul.f32.gmra.mxu0 %v3370
        %v3372 = vpop.f32.mrf.mxu0
        %v3373 = vadd.f32 %v3347, %v3372
        %3374 = vdwg.mxu0
        %3375 = vmatpush.msra.mxu0 0.0
        %3376 = vmatpush.msra.mxu0 0.0
        %3377 = vmatpush.msra.mxu0 0.0
        %3378 = vmatpush.msra.mxu0 0.0
        %3379 = vmatpush.msra.mxu0 0.0
        %3380 = vmatpush.msra.mxu0 0.0
        %3381 = vmatpush.msra.mxu0 0.0
        %3382 = vmatpush.msra.mxu0 0.0
        %3383 = vmatpush.msra.mxu0 0.0
        %3384 = vmatpush.msra.mxu0 0.0
        %3385 = vmatpush.msra.mxu0 0.0
        %3386 = vmatpush.msra.mxu0 0.0
        %3387 = vmatpush.msra.mxu0 0.0
        %3388 = vmatpush.msra.mxu0 0.0
        %3389 = vmatpush.msra.mxu0 0.0
        %v3390 = vand.u32 %v3319, 4294901760
        %v3391 = vsub.f32 %v3319, %v3390
        %3392 = vmatpush.msra.mxu0 %v3391
        %v3393 = vand.u32 %v3321, 4294901760
        %v3394 = vsub.f32 %v3321, %v3393
        %3395 = vmatmul.f32.gmra.mxu0 %v3394
        %v3396 = vpop.f32.mrf.mxu0
        %v3397 = vadd.f32 %v3373, %v3396
        %3398 = vdwg.mxu0
        %3399 = vmatpush.msra.mxu0 0.0
        %3400 = vmatpush.msra.mxu0 0.0
        %3401 = vmatpush.msra.mxu0 0.0
        %3402 = vmatpush.msra.mxu0 0.0
        %3403 = vmatpush.msra.mxu0 0.0
        %3404 = vmatpush.msra.mxu0 0.0
        %3405 = vmatpush.msra.mxu0 0.0
        %3406 = vmatpush.msra.mxu0 0.0
        %3407 = vmatpush.msra.mxu0 0.0
        %3408 = vmatpush.msra.mxu0 0.0
        %3409 = vmatpush.msra.mxu0 0.0
        %3410 = vmatpush.msra.mxu0 0.0
        %3411 = vmatpush.msra.mxu0 0.0
        %3412 = vmatpush.msra.mxu0 0.0
        %3413 = vmatpush.msra.mxu0 0.0
        %v3414 = vand.u32 %v3319, 4294901760
        %3415 = vmatpush.msra.mxu0 %v3414
        %v3416 = vand.u32 %v3321, 4294901760
        %v3417 = vsub.f32 %v3321, %v3416
        %v3418 = vand.u32 %v3417, 4294901760
        %3419 = vmatmul.f32.gmra.mxu0 %v3418
        %v3420 = vpop.f32.mrf.mxu0
        %v3421 = vadd.f32 %v3397, %v3420
        %3422 = vdwg.mxu0
        %3423 = vmatpush.msra.mxu0 0.0
        %3424 = vmatpush.msra.mxu0 0.0
        %3425 = vmatpush.msra.mxu0 0.0
        %3426 = vmatpush.msra.mxu0 0.0
        %3427 = vmatpush.msra.mxu0 0.0
        %3428 = vmatpush.msra.mxu0 0.0
        %3429 = vmatpush.msra.mxu0 0.0
        %3430 = vmatpush.msra.mxu0 0.0
        %3431 = vmatpush.msra.mxu0 0.0
        %3432 = vmatpush.msra.mxu0 0.0
        %3433 = vmatpush.msra.mxu0 0.0
        %3434 = vmatpush.msra.mxu0 0.0
        %3435 = vmatpush.msra.mxu0 0.0
        %3436 = vmatpush.msra.mxu0 0.0
        %3437 = vmatpush.msra.mxu0 0.0
        %v3438 = vand.u32 %v3319, 4294901760
        %v3439 = vsub.f32 %v3319, %v3438
        %v3440 = vand.u32 %v3439, 4294901760
        %3441 = vmatpush.msra.mxu0 %v3440
        %v3442 = vand.u32 %v3321, 4294901760
        %3443 = vmatmul.f32.gmra.mxu0 %v3442
        %v3444 = vpop.f32.mrf.mxu0
        %v3445 = vadd.f32 %v3421, %v3444
        %3446 = vdwg.mxu0
        %3447 = vmatpush.msra.mxu0 0.0
        %3448 = vmatpush.msra.mxu0 0.0
        %3449 = vmatpush.msra.mxu0 0.0
        %3450 = vmatpush.msra.mxu0 0.0
        %3451 = vmatpush.msra.mxu0 0.0
        %3452 = vmatpush.msra.mxu0 0.0
        %3453 = vmatpush.msra.mxu0 0.0
        %3454 = vmatpush.msra.mxu0 0.0
        %3455 = vmatpush.msra.mxu0 0.0
        %3456 = vmatpush.msra.mxu0 0.0
        %3457 = vmatpush.msra.mxu0 0.0
        %3458 = vmatpush.msra.mxu0 0.0
        %3459 = vmatpush.msra.mxu0 0.0
        %3460 = vmatpush.msra.mxu0 0.0
        %3461 = vmatpush.msra.mxu0 0.0
        %v3462 = vand.u32 %v3319, 4294901760
        %3463 = vmatpush.msra.mxu0 %v3462
        %v3464 = vand.u32 %v3321, 4294901760
        %3465 = vmatmul.f32.gmra.mxu0 %v3464
        %v3466 = vpop.f32.mrf.mxu0
        %v3467 = vadd.f32 %v3445, %v3466
        %3468 = vdwg.mxu0
        %3469 = vst [vmem:[%s545] sm:$0x1] %v3467
        %s3470 = sand.u32 %s294, 1
        %s3471 = scalar_lea.sflag [#allocation7], %s3470
        %s3472 = sand.u32 %s294, 1
        %s3473 = scalar_lea.vmem [#allocation16], %s3472
        // Predicated region
        $region85: #{tpu_custom_call.1} parent=59 // pred_check
          %p3474 = pneg %p304
        $region86: #{tpu_custom_call.1} parent=59 // pred_check_branch
          %3476 = sbr.rel (%p3474) target = $region88
        $region87: #{tpu_custom_call.1} parent=59 // pred_region
          %3478 = vsyncadd %s3471, 0
          %s3479 = scalar_lea.hbm %s12, %s47
          %s3481 = sshll.u32 %s3473, 4
          %s3482 = int_to_ptr.vmem [resolvable:$true] %s3481
          %s3483 = sshll.u32 %s3479, 4
          %s3484 = int_to_ptr.hbm [resolvable:$true] %s3483
          %3486 = dma.vmem_to_hbm [thread:$0]  %s3482, 16, %s3484, %s3471
        $region88: #{tpu_custom_call.1} parent=59 // pred_fallthru
          _
      $region60: #{tpu_custom_call.1} parent=5 // pred_fallthru
        _
      %p3487 = scmp.le.s32.totalorder 2, %s42
      // Predicated region
      $region89: #{tpu_custom_call.1} parent=5 // pred_check
        %p3488 = pneg %p3487
      $region90: #{tpu_custom_call.1} parent=5 // pred_check_branch
        %3490 = sbr.rel (%p3488) target = $region92
      $region91: #{tpu_custom_call.1} parent=5 // pred_region
        %s3491 = ssub.s32 %s42, 2
        // Predicated region
        $region93: #{tpu_custom_call.1} parent=91 // pred_check
          %p3492 = pneg %p310
        $region94: #{tpu_custom_call.1} parent=91 // pred_check_branch
          %3494 = sbr.rel (%p3492) target = $region96
        $region95: #{tpu_custom_call.1} parent=91 // pred_region
          %s3495 = sand.u32 %s295, 1
          %s3496 = scalar_lea.sflag [#allocation7], %s3495
          %s3497 = sand.u32 %s295, 1
          %s3498 = scalar_lea.vmem [#allocation16], %s3497
          %3500 = dma.done %s3496, 16
        $region96: #{tpu_custom_call.1} parent=91 // pred_fallthru
          _
      $region92: #{tpu_custom_call.1} parent=5 // pred_fallthru
        _
    $region6: #{tpu_custom_call.1} parent=1 // loop_footer
      %s46 = sadd.s32 1, %s42
    $region7: #{tpu_custom_call.1} parent=1 // loop_footer_branch
      %41 = sbr.rel target = $region3
    $region8: #{tpu_custom_call.1} parent=1 // loop_exit
      _
    %3501 = vsyncpa [#allocation6], 1
    %s3502 = scalar_lea.sflag [#allocation6], 1
    %3503 = vsyncpa %s3502, 1
    %3504 = vsyncpa [#allocation9], 1
    %s3505 = scalar_lea.sflag [#allocation9], 1
    %3506 = vsyncpa %s3505, 1
    %3507 = vsyncpa [#allocation12], 1
    %3508 = vsyncpa [#allocation15], 1
    %3509 = vsyncpa [#allocation7], 1
    %s3510 = scalar_lea.sflag [#allocation7], 1
    %3511 = vsyncpa %s3510, 1

</llo_original>
